<compile_context>
chip_gen: v7x
topology: tpu7x:2x2x1
jax: 0.10.0
libtpu: 0.0.40
codegen_flags: <defaults>
</compile_context>

<pallas_src>
import functools

import jax
import jax.numpy as jnp
from jax.experimental import pallas as pl
from jax.experimental.pallas import tpu as pltpu


# ---------------------------------------------------------------------------
# Helpers
# ---------------------------------------------------------------------------

def _round_up(x, m):
    return ((x + m - 1) // m) * m


def _gelu_tanh(x):
    # tanh-approx GELU (timm's nn.GELU is exact-erf; tanh approx keeps the
    # transcendental on the EUP path and is numerically very close).
    c = jnp.float32(0.7978845608028654)
    return 0.5 * x * (1.0 + jnp.tanh(c * (x + 0.044715 * x * x * x)))


def _apply_act(y, activation):
    if activation == "relu":
        return jnp.maximum(y, 0.0)
    if activation == "gelu":
        return _gelu_tanh(y)
    return y


# ---------------------------------------------------------------------------
# Tiled linear (bf16 MXU matmul, f32 accumulator, optional fused residual add)
# ---------------------------------------------------------------------------

def _linear_kernel(x_ref, w_ref, b_ref, o_ref, acc_ref, *, activation):
    @pl.when(pl.program_id(2) == 0)
    def _():
        acc_ref[...] = jnp.zeros_like(acc_ref)

    acc_ref[...] += jnp.dot(x_ref[...], w_ref[...],
                            preferred_element_type=jnp.float32)

    @pl.when(pl.program_id(2) == pl.num_programs(2) - 1)
    def _():
        y = _apply_act(acc_ref[...] + b_ref[...], activation)
        o_ref[...] = y.astype(o_ref.dtype)


def _linear_res_kernel(x_ref, w_ref, b_ref, res_ref, o_ref, acc_ref, *, activation):
    @pl.when(pl.program_id(2) == 0)
    def _():
        acc_ref[...] = jnp.zeros_like(acc_ref)

    acc_ref[...] += jnp.dot(x_ref[...], w_ref[...],
                            preferred_element_type=jnp.float32)

    @pl.when(pl.program_id(2) == pl.num_programs(2) - 1)
    def _():
        y = _apply_act(acc_ref[...] + b_ref[...], activation) + res_ref[...]
        o_ref[...] = y.astype(o_ref.dtype)


def linear(x, w, b, activation="none", residual=None, out_dtype=jnp.float32,
           tm_max=256, tn_max=256, tk_max=512):
    """y = act(x @ w + b) [+ residual].  x: (M, K) , w: (K, N), b: (N,).

    bf16 operands, f32 accumulation in a VMEM scratch, tiled over a 3D grid.
    """
    M, K = x.shape
    K2, N = w.shape
    assert K == K2

    tm = min(tm_max, _round_up(M, 8))
    tn = min(tn_max, _round_up(N, 128))
    tk = min(tk_max, _round_up(K, 128))
    Mp, Kp, Np = _round_up(M, tm), _round_up(K, tk), _round_up(N, tn)

    xb = jnp.pad(x.astype(jnp.bfloat16), ((0, Mp - M), (0, Kp - K)))
    wb = jnp.pad(w.astype(jnp.bfloat16), ((0, Kp - K), (0, Np - N)))
    bb = jnp.pad(b.astype(jnp.float32).reshape(1, N), ((0, 0), (0, Np - N)))

    grid = (Mp // tm, Np // tn, Kp // tk)
    x_spec = pl.BlockSpec((tm, tk), lambda i, j, k: (i, k))
    w_spec = pl.BlockSpec((tk, tn), lambda i, j, k: (k, j))
    b_spec = pl.BlockSpec((1, tn), lambda i, j, k: (0, j))
    o_spec = pl.BlockSpec((tm, tn), lambda i, j, k: (i, j))
    scratch = [pltpu.VMEM((tm, tn), jnp.float32)]
    cparams = pltpu.CompilerParams(
        dimension_semantics=("parallel", "parallel", "arbitrary"))

    if residual is None:
        out = pl.pallas_call(
            functools.partial(_linear_kernel, activation=activation),
            out_shape=jax.ShapeDtypeStruct((Mp, Np), out_dtype),
            grid_spec=pltpu.PrefetchScalarGridSpec(
                num_scalar_prefetch=0, grid=grid,
                in_specs=[x_spec, w_spec, b_spec],
                out_specs=o_spec, scratch_shapes=scratch),
            compiler_params=cparams,
        )(xb, wb, bb)
    else:
        rb = jnp.pad(residual.astype(jnp.float32), ((0, Mp - M), (0, Np - N)))
        r_spec = pl.BlockSpec((tm, tn), lambda i, j, k: (i, j))
        out = pl.pallas_call(
            functools.partial(_linear_res_kernel, activation=activation),
            out_shape=jax.ShapeDtypeStruct((Mp, Np), out_dtype),
            grid_spec=pltpu.PrefetchScalarGridSpec(
                num_scalar_prefetch=0, grid=grid,
                in_specs=[x_spec, w_spec, b_spec, r_spec],
                out_specs=o_spec, scratch_shapes=scratch),
            compiler_params=cparams,
        )(xb, wb, bb, rb)

    return out[:M, :N]


# ---------------------------------------------------------------------------
# Row-tiled LayerNorm
# ---------------------------------------------------------------------------

def _layernorm_kernel(x_ref, g_ref, b_ref, o_ref, *, eps):
    x = x_ref[...]
    mu = jnp.mean(x, axis=-1, keepdims=True)
    xc = x - mu
    var = jnp.mean(xc * xc, axis=-1, keepdims=True)
    o_ref[...] = (xc * jax.lax.rsqrt(var + eps)) * g_ref[...] + b_ref[...]


def layernorm(x, gamma, beta, eps=1e-6):
    """LayerNorm over the last axis, tiled over rows.  x: (M, D)."""
    M, D = x.shape
    tm = min(256, _round_up(M, 8))
    Mp = _round_up(M, tm)
    xp = jnp.pad(x.astype(jnp.float32), ((0, Mp - M), (0, 0)))
    out = pl.pallas_call(
        functools.partial(_layernorm_kernel, eps=eps),
        out_shape=jax.ShapeDtypeStruct((Mp, D), jnp.float32),
        grid=(Mp // tm,),
        in_specs=[pl.BlockSpec((tm, D), lambda i: (i, 0)),
                  pl.BlockSpec((1, D), lambda i: (0, 0)),
                  pl.BlockSpec((1, D), lambda i: (0, 0))],
        out_specs=pl.BlockSpec((tm, D), lambda i: (i, 0)),
        compiler_params=pltpu.CompilerParams(dimension_semantics=("parallel",)),
    )(xp, gamma.reshape(1, D), beta.reshape(1, D))
    return out[:M]


# ---------------------------------------------------------------------------
# Multi-head attention: all heads of one batch element per grid step
# ---------------------------------------------------------------------------

def _attention_kernel(q_ref, k_ref, v_ref, o_ref, *, scale):
    q = q_ref[0]          # (H, T, Dh) bf16
    k = k_ref[0]          # (H, T, Dh) bf16
    v = v_ref[0]          # (H, T, Dh) bf16
    # Batched over heads, contracting on Dh (no explicit transpose of k).
    s = jnp.einsum("htd,hsd->hts", q, k,
                   preferred_element_type=jnp.float32) * scale      # (H, T, T)
    m = jnp.max(s, axis=-1, keepdims=True)
    p = jnp.exp(s - m)
    l = jnp.sum(p, axis=-1, keepdims=True)
    p = p * pl.reciprocal(l, approx=True)
    o = jnp.einsum("hts,hsd->htd", p.astype(v.dtype), v,
                   preferred_element_type=jnp.float32)               # (H, T, Dh)
    o_ref[0] = o.astype(o_ref.dtype)


def attention(q, k, v):
    """Softmax attention.  q, k, v: (B, H, T, Dh) -> (B, H, T, Dh) bf16."""
    B, H, T, Dh = q.shape
    scale = 1.0 / (Dh ** 0.5)
    spec = pl.BlockSpec((1, H, T, Dh), lambda b: (b, 0, 0, 0))
    return pl.pallas_call(
        functools.partial(_attention_kernel, scale=scale),
        out_shape=jax.ShapeDtypeStruct((B, H, T, Dh), jnp.bfloat16),
        grid=(B,),
        in_specs=[spec, spec, spec],
        out_specs=spec,
        compiler_params=pltpu.CompilerParams(dimension_semantics=("parallel",)),
    )(q.astype(jnp.bfloat16), k.astype(jnp.bfloat16), v.astype(jnp.bfloat16))


# ---------------------------------------------------------------------------
# Fused tail: final LayerNorm (cls rows only) + head Linear + FCActHead(Linear+ReLU)
# ---------------------------------------------------------------------------

def _head_kernel(x_ref, g_ref, b_ref, hw_ref, hb_ref, fw_ref, fb_ref, o_ref, *, eps):
    x = x_ref[...]                                               # (Bp, D) f32
    mu = jnp.mean(x, axis=-1, keepdims=True)
    xc = x - mu
    var = jnp.mean(xc * xc, axis=-1, keepdims=True)
    xn = (xc * jax.lax.rsqrt(var + eps)) * g_ref[...] + b_ref[...]
    logits = jnp.dot(xn, hw_ref[...],
                     preferred_element_type=jnp.float32) + hb_ref[...]
    y = jnp.dot(logits, fw_ref[...],
                preferred_element_type=jnp.float32) + fb_ref[...]
    o_ref[...] = jnp.maximum(y, 0.0)


def vit_head(cls_tok, params, eps=1e-6):
    """Fused: LN(cls) @ head_w + head_b  ->  @ fc_w + fc_b -> ReLU."""
    B, D = cls_tok.shape
    NC = params["head_w"].shape[1]
    HO = params["fc_w"].shape[1]
    Bp = _round_up(B, 8)
    xp = jnp.pad(cls_tok.astype(jnp.float32), ((0, Bp - B), (0, 0)))
    out = pl.pallas_call(
        functools.partial(_head_kernel, eps=eps),
        out_shape=jax.ShapeDtypeStruct((Bp, HO), jnp.float32),
        in_specs=[
            pl.BlockSpec((Bp, D), lambda: (0, 0)),
            pl.BlockSpec((1, D), lambda: (0, 0)),
            pl.BlockSpec((1, D), lambda: (0, 0)),
            pl.BlockSpec((D, NC), lambda: (0, 0)),
            pl.BlockSpec((1, NC), lambda: (0, 0)),
            pl.BlockSpec((NC, HO), lambda: (0, 0)),
            pl.BlockSpec((1, HO), lambda: (0, 0)),
        ],
        out_specs=pl.BlockSpec((Bp, HO), lambda: (0, 0)),
    )(xp,
      params["lnf_g"].reshape(1, D), params["lnf_b"].reshape(1, D),
      params["head_w"], params["head_b"].reshape(1, NC),
      params["fc_w"], params["fc_b"].reshape(1, HO))
    return out[:B]


# ---------------------------------------------------------------------------
# Model glue (plain JAX): patch extraction, pos-embed, head-layout reshapes
# ---------------------------------------------------------------------------

def extract_patches(x_nchw, patch):
    """NCHW image -> flattened non-overlapping patches (B*P, C*p*p).

    Matches a Conv2d(kernel=stride=patch) with weight flattened in (C, p, p)
    order, i.e. timm's PatchEmbed.
    """
    B, C, H, W = x_nchw.shape
    hp, wp = H // patch, W // patch
    x = x_nchw.reshape(B, C, hp, patch, wp, patch)
    x = x.transpose(0, 2, 4, 1, 3, 5)            # (B, hp, wp, C, p, p)
    return x.reshape(B * hp * wp, C * patch * patch)


def image_vit_forward(x_nchw, params, *, patch, num_heads):
    B = x_nchw.shape[0]
    D = params["cls_token"].shape[-1]
    Dh = D // num_heads

    # --- patch embedding (conv-as-matmul, tiled Pallas) ----------------------
    patches = extract_patches(x_nchw, patch)                      # (B*P, C*p*p)
    x = linear(patches, params["patch_w"], params["patch_b"])     # (B*P, D) f32
    P = x.shape[0] // B
    x = x.reshape(B, P, D)

    # --- cls token + positional embedding ------------------------------------
    cls = jnp.broadcast_to(params["cls_token"], (B, 1, D))
    x = jnp.concatenate([cls, x], axis=1)                         # (B, T, D)
    x = x + params["pos_embed"]
    T = x.shape[1]

    # --- transformer blocks (pre-norm, as in timm ViT) ------------------------
    for blk in params["blocks"]:
        x2d = x.reshape(B * T, D)

        # Attention branch
        h = layernorm(x2d, blk["ln1_g"], blk["ln1_b"])
        qkv = linear(h, blk["qkv_w"], blk["qkv_b"],
                     out_dtype=jnp.bfloat16)                      # (B*T, 3D) bf16
        qkv = qkv.reshape(B, T, 3, num_heads, Dh).transpose(2, 0, 3, 1, 4)
        o = attention(qkv[0], qkv[1], qkv[2])                     # (B,H,T,Dh) bf16
        o = o.transpose(0, 2, 1, 3).reshape(B * T, D)             # (B*T, D) bf16
        # proj with residual add fused into the kernel
        x = linear(o, blk["proj_w"], blk["proj_b"],
                   residual=x2d).reshape(B, T, D)

        # MLP branch
        x2d = x.reshape(B * T, D)
        h = layernorm(x2d, blk["ln2_g"], blk["ln2_b"])
        h = linear(h, blk["fc1_w"], blk["fc1_b"],
                   activation="gelu", out_dtype=jnp.bfloat16)     # (B*T, 4D) bf16
        # fc2 with residual add fused into the kernel
        x = linear(h, blk["fc2_w"], blk["fc2_b"],
                   residual=x2d).reshape(B, T, D)

    # --- fused tail: LN(cls row) + classifier head + FCActHead('relu') -------
    # (LayerNorm is per-row, so applying it only to the cls row equals
    #  normalizing all tokens and slicing the cls row.)
    cls_out = x[:, 0, :]                                          # (B, D)
    # TODO(synk): FCActHead source not provided; modeled as Linear + ReLU.
    y = vit_head(cls_out, params)                                 # (B, head_out)
    return y


# ---------------------------------------------------------------------------
# Deterministic parameter init (synthetic, no checkpoint loading)
# ---------------------------------------------------------------------------

def init_params(key, *, in_chans, patch, embed_dim, depth, num_heads,
                mlp_hidden, num_tokens, num_classes, head_out):
    def nrm(k, shape, scale=0.02):
        return (scale * jax.random.normal(k, shape)).astype(jnp.float32)

    keys = iter(jax.random.split(key, 16 + depth * 8))
    D = embed_dim
    params = {
        "patch_w": nrm(next(keys), (in_chans * patch * patch, D)),
        "patch_b": jnp.zeros((D,), jnp.float32),
        "cls_token": nrm(next(keys), (1, 1, D)),
        "pos_embed": nrm(next(keys), (1, num_tokens, D)),
        "lnf_g": jnp.ones((D,), jnp.float32),
        "lnf_b": jnp.zeros((D,), jnp.float32),
        "head_w": nrm(next(keys), (D, num_classes)),
        "head_b": jnp.zeros((num_classes,), jnp.float32),
        "fc_w": nrm(next(keys), (num_classes, head_out)),
        "fc_b": jnp.zeros((head_out,), jnp.float32),
        "blocks": [],
    }
    for _ in range(depth):
        params["blocks"].append({
            "ln1_g": jnp.ones((D,), jnp.float32),
            "ln1_b": jnp.zeros((D,), jnp.float32),
            "qkv_w": nrm(next(keys), (D, 3 * D)),
            "qkv_b": jnp.zeros((3 * D,), jnp.float32),
            "proj_w": nrm(next(keys), (D, D)),
            "proj_b": jnp.zeros((D,), jnp.float32),
            "ln2_g": jnp.ones((D,), jnp.float32),
            "ln2_b": jnp.zeros((D,), jnp.float32),
            "fc1_w": nrm(next(keys), (D, mlp_hidden)),
            "fc1_b": jnp.zeros((mlp_hidden,), jnp.float32),
            "fc2_w": nrm(next(keys), (mlp_hidden, D)),
            "fc2_b": jnp.zeros((D,), jnp.float32),
        })
    return params


# ---------------------------------------------------------------------------
# Main
# ---------------------------------------------------------------------------

if __name__ == "__main__":
    # Small shapes consistent with vit_base_patch16_224 structure (scaled down):
    B, C, IMG = 2, 3, 32
    PATCH, D, HEADS, DEPTH = 8, 32, 4, 2
    MLP_HIDDEN = 4 * D
    NUM_PATCHES = (IMG // PATCH) ** 2
    NUM_TOKENS = NUM_PATCHES + 1          # + cls token
    NUM_CLASSES = 16                      # stands in for the 1000-way timm head
    HEAD_OUT = 1                          # FCActHead output

    root = jax.random.PRNGKey(0)
    k_x, k_p = jax.random.split(root)
    stmaps = jax.random.normal(k_x, (B, C, IMG, IMG), dtype=jnp.float32)  # NCHW
    params = init_params(
        k_p, in_chans=C, patch=PATCH, embed_dim=D, depth=DEPTH,
        num_heads=HEADS, mlp_hidden=MLP_HIDDEN, num_tokens=NUM_TOKENS,
        num_classes=NUM_CLASSES, head_out=HEAD_OUT)

    fwd = jax.jit(functools.partial(image_vit_forward, patch=PATCH, num_heads=HEADS))
    y = fwd(stmaps, params)
    jax.block_until_ready(y)
    assert y.shape == (B, HEAD_OUT) and y.dtype == jnp.float32
    print("KERNEL_OK")
</pallas_src>

<mosaic_0001>
module attributes {stable_mosaic.version = 11 : i64} {
  func.func @_layernorm_kernel(%arg0: i32, %arg1: memref<40x32xf32, #tpu.memory_space<vmem>>, %arg2: memref<1x32xf32, #tpu.memory_space<vmem>>, %arg3: memref<1x32xf32, #tpu.memory_space<vmem>>, %arg4: memref<40x32xf32, #tpu.memory_space<vmem>>) attributes {dimension_semantics = [#tpu.dimension_semantics<parallel>], iteration_bounds = array<i64: 1>, scalar_prefetch = 0 : i64, scratch_operands = 0 : i64, tpu.core_type = #tpu.core_type<tc>, window_params = [{transform_indices = @transform_0, window_bounds = array<i64: 40, 32>}, {pipeline_mode = #tpu.pipeline_mode<synchronous>, transform_indices = @transform_1, window_bounds = array<i64: 1, 32>}, {pipeline_mode = #tpu.pipeline_mode<synchronous>, transform_indices = @transform_2, window_bounds = array<i64: 1, 32>}, {transform_indices = @transform_3, window_bounds = array<i64: 40, 32>}]} {
    %c0 = arith.constant 0 : index
    %c0_0 = arith.constant 0 : index
    %0 = vector.load %arg1[%c0, %c0_0] : memref<40x32xf32, #tpu.memory_space<vmem>>, vector<40x32xf32>
    %cst = arith.constant dense<0.000000e+00> : vector<40xf32>
    %1 = vector.multi_reduction <add>, %0, %cst [1] : vector<40x32xf32> to vector<40xf32>
    %2 = vector.shape_cast %1 : vector<40xf32> to vector<40x1xf32>
    %cst_1 = arith.constant 3.200000e+01 : f32
    %3 = vector.broadcast %cst_1 : f32 to vector<40x1xf32>
    %4 = arith.divf %2, %3 : vector<40x1xf32>
    %5 = vector.broadcast %4 : vector<40x1xf32> to vector<40x32xf32>
    %6 = arith.subf %0, %5 : vector<40x32xf32>
    %7 = arith.mulf %6, %6 : vector<40x32xf32>
    %cst_2 = arith.constant dense<0.000000e+00> : vector<40xf32>
    %8 = vector.multi_reduction <add>, %7, %cst_2 [1] : vector<40x32xf32> to vector<40xf32>
    %9 = vector.shape_cast %8 : vector<40xf32> to vector<40x1xf32>
    %cst_3 = arith.constant 3.200000e+01 : f32
    %10 = vector.broadcast %cst_3 : f32 to vector<40x1xf32>
    %11 = arith.divf %9, %10 : vector<40x1xf32>
    %cst_4 = arith.constant 9.99999997E-7 : f32
    %12 = vector.broadcast %cst_4 : f32 to vector<40x1xf32>
    %13 = arith.addf %11, %12 : vector<40x1xf32>
    %14 = math.rsqrt %13 : vector<40x1xf32>
    %15 = vector.broadcast %14 : vector<40x1xf32> to vector<40x32xf32>
    %16 = arith.mulf %6, %15 : vector<40x32xf32>
    %c0_5 = arith.constant 0 : index
    %c0_6 = arith.constant 0 : index
    %17 = vector.load %arg2[%c0_5, %c0_6] : memref<1x32xf32, #tpu.memory_space<vmem>>, vector<1x32xf32>
    %18 = vector.broadcast %17 : vector<1x32xf32> to vector<40x32xf32>
    %19 = arith.mulf %16, %18 : vector<40x32xf32>
    %c0_7 = arith.constant 0 : index
    %c0_8 = arith.constant 0 : index
    %20 = vector.load %arg3[%c0_7, %c0_8] : memref<1x32xf32, #tpu.memory_space<vmem>>, vector<1x32xf32>
    %21 = vector.broadcast %20 : vector<1x32xf32> to vector<40x32xf32>
    %22 = arith.addf %19, %21 : vector<40x32xf32>
    %c0_9 = arith.constant 0 : index
    %c0_10 = arith.constant 0 : index
    %23 = vector.load %arg4[%c0_9, %c0_10] : memref<40x32xf32, #tpu.memory_space<vmem>>, vector<40x32xf32>
    tpu.vector_store %arg4[%c0_9, %c0_10], %22 {strides = array<i32>} : memref<40x32xf32, #tpu.memory_space<vmem>>, vector<40x32xf32>,
    return
  }
  func.func @transform_0(%arg0: i32) -> (i32, i32) {
    %c0_i32 = arith.constant 0 : i32
    %c0_i32_0 = arith.constant 0 : i32
    return %arg0, %c0_i32 : i32, i32
  }
  func.func @transform_1(%arg0: i32) -> (i32, i32) {
    %c0_i32 = arith.constant 0 : i32
    %c0_i32_0 = arith.constant 0 : i32
    %c0_i32_1 = arith.constant 0 : i32
    return %c0_i32, %c0_i32_0 : i32, i32
  }
  func.func @transform_2(%arg0: i32) -> (i32, i32) {
    %c0_i32 = arith.constant 0 : i32
    %c0_i32_0 = arith.constant 0 : i32
    %c0_i32_1 = arith.constant 0 : i32
    return %c0_i32, %c0_i32_0 : i32, i32
  }
  func.func @transform_3(%arg0: i32) -> (i32, i32) {
    %c0_i32 = arith.constant 0 : i32
    %c0_i32_0 = arith.constant 0 : i32
    return %arg0, %c0_i32 : i32, i32
  }
}

module attributes {stable_mosaic.version = 11 : i64} {
  func.func @_linear_kernel(%arg0: i32, %arg1: i32, %arg2: i32, %arg3: memref<32x256xbf16, #tpu.memory_space<vmem>>, %arg4: memref<256x128xbf16, #tpu.memory_space<vmem>>, %arg5: memref<1x128xf32, #tpu.memory_space<vmem>>, %arg6: memref<32x128xf32, #tpu.memory_space<vmem>>, %arg7: memref<32x128xf32, #tpu.memory_space<vmem>>) attributes {dimension_semantics = [#tpu.dimension_semantics<parallel>, #tpu.dimension_semantics<parallel>, #tpu.dimension_semantics<arbitrary>], iteration_bounds = array<i64: 1, 1, 1>, scalar_prefetch = 0 : i64, scratch_operands = 1 : i64, tpu.core_type = #tpu.core_type<tc>, window_params = [{transform_indices = @transform_0, window_bounds = array<i64: 32, 256>}, {transform_indices = @transform_1, window_bounds = array<i64: 256, 128>}, {transform_indices = @transform_2, window_bounds = array<i64: 1, 128>}, {transform_indices = @transform_3, window_bounds = array<i64: 32, 128>}]} {
    %c0_i32 = arith.constant 0 : i32
    %0 = arith.cmpi eq, %arg2, %c0_i32 : i32
    %1 = arith.extui %0 : i1 to i32
    %c0_i32_0 = arith.constant 0 : i32
    %2 = arith.cmpi ne, %1, %c0_i32_0 : i32
    scf.if %2 {
      %cst_10 = arith.constant 0.000000e+00 : f32
      %12 = vector.broadcast %cst_10 : f32 to vector<32x128xf32>
      %c0_11 = arith.constant 0 : index
      %c0_12 = arith.constant 0 : index
      %13 = vector.load %arg7[%c0_11, %c0_12] : memref<32x128xf32, #tpu.memory_space<vmem>>, vector<32x128xf32>
      tpu.vector_store %arg7[%c0_11, %c0_12], %12 {strides = array<i32>} : memref<32x128xf32, #tpu.memory_space<vmem>>, vector<32x128xf32>,
    } else {
    }
    %c0 = arith.constant 0 : index
    %c0_1 = arith.constant 0 : index
    %3 = vector.load %arg7[%c0, %c0_1] : memref<32x128xf32, #tpu.memory_space<vmem>>, vector<32x128xf32>
    %c0_2 = arith.constant 0 : index
    %c0_3 = arith.constant 0 : index
    %4 = vector.load %arg3[%c0_2, %c0_3] : memref<32x256xbf16, #tpu.memory_space<vmem>>, vector<32x256xbf16>
    %c0_4 = arith.constant 0 : index
    %c0_5 = arith.constant 0 : index
    %5 = vector.load %arg4[%c0_4, %c0_5] : memref<256x128xbf16, #tpu.memory_space<vmem>>, vector<256x128xbf16>
    %cst = arith.constant dense<0.000000e+00> : vector<32x128xf32>
    %6 = tpu.matmul %4, %5, %cst {dimension_numbers = #tpu.dot_dimension_numbers<[1], [0], [0], [1], [0, 0, 1, 1], [], []>} : vector<32x256xbf16>, vector<256x128xbf16>, vector<32x128xf32> -> vector<32x128xf32>
    %7 = arith.addf %3, %6 : vector<32x128xf32>
    %c0_6 = arith.constant 0 : index
    %c0_7 = arith.constant 0 : index
    %8 = vector.load %arg7[%c0_6, %c0_7] : memref<32x128xf32, #tpu.memory_space<vmem>>, vector<32x128xf32>
    tpu.vector_store %arg7[%c0_6, %c0_7], %7 {strides = array<i32>} : memref<32x128xf32, #tpu.memory_space<vmem>>, vector<32x128xf32>,
    %c0_i32_8 = arith.constant 0 : i32
    %9 = arith.cmpi eq, %arg2, %c0_i32_8 : i32
    %10 = arith.extui %9 : i1 to i32
    %c0_i32_9 = arith.constant 0 : i32
    %11 = arith.cmpi ne, %10, %c0_i32_9 : i32
    scf.if %11 {
      %c0_10 = arith.constant 0 : index
      %c0_11 = arith.constant 0 : index
      %12 = vector.load %arg7[%c0_10, %c0_11] : memref<32x128xf32, #tpu.memory_space<vmem>>, vector<32x128xf32>
      %c0_12 = arith.constant 0 : index
      %c0_13 = arith.constant 0 : index
      %13 = vector.load %arg5[%c0_12, %c0_13] : memref<1x128xf32, #tpu.memory_space<vmem>>, vector<1x128xf32>
      %14 = vector.broadcast %13 : vector<1x128xf32> to vector<32x128xf32>
      %15 = arith.addf %12, %14 : vector<32x128xf32>
      %c0_14 = arith.constant 0 : index
      %c0_15 = arith.constant 0 : index
      %16 = vector.load %arg6[%c0_14, %c0_15] : memref<32x128xf32, #tpu.memory_space<vmem>>, vector<32x128xf32>
      tpu.vector_store %arg6[%c0_14, %c0_15], %15 {strides = array<i32>} : memref<32x128xf32, #tpu.memory_space<vmem>>, vector<32x128xf32>,
    } else {
    }
    return
  }
  func.func @transform_0(%arg0: i32, %arg1: i32, %arg2: i32) -> (i32, i32) {
    %c0_i32 = arith.constant 0 : i32
    return %arg0, %arg2 : i32, i32
  }
  func.func @transform_1(%arg0: i32, %arg1: i32, %arg2: i32) -> (i32, i32) {
    %c0_i32 = arith.constant 0 : i32
    return %arg2, %arg1 : i32, i32
  }
  func.func @transform_2(%arg0: i32, %arg1: i32, %arg2: i32) -> (i32, i32) {
    %c0_i32 = arith.constant 0 : i32
    %c0_i32_0 = arith.constant 0 : i32
    return %c0_i32, %arg1 : i32, i32
  }
  func.func @transform_3(%arg0: i32, %arg1: i32, %arg2: i32) -> (i32, i32) {
    %c0_i32 = arith.constant 0 : i32
    return %arg0, %arg1 : i32, i32
  }
}

module attributes {stable_mosaic.version = 11 : i64} {
  func.func @_linear_kernel(%arg0: i32, %arg1: i32, %arg2: i32, %arg3: memref<40x128xbf16, #tpu.memory_space<vmem>>, %arg4: memref<128x128xbf16, #tpu.memory_space<vmem>>, %arg5: memref<1x128xf32, #tpu.memory_space<vmem>>, %arg6: memref<40x128xbf16, #tpu.memory_space<vmem>>, %arg7: memref<40x128xf32, #tpu.memory_space<vmem>>) attributes {dimension_semantics = [#tpu.dimension_semantics<parallel>, #tpu.dimension_semantics<parallel>, #tpu.dimension_semantics<arbitrary>], iteration_bounds = array<i64: 1, 1, 1>, scalar_prefetch = 0 : i64, scratch_operands = 1 : i64, tpu.core_type = #tpu.core_type<tc>, window_params = [{transform_indices = @transform_0, window_bounds = array<i64: 40, 128>}, {transform_indices = @transform_1, window_bounds = array<i64: 128, 128>}, {transform_indices = @transform_2, window_bounds = array<i64: 1, 128>}, {transform_indices = @transform_3, window_bounds = array<i64: 40, 128>}]} {
    %c0_i32 = arith.constant 0 : i32
    %0 = arith.cmpi eq, %arg2, %c0_i32 : i32
    %1 = arith.extui %0 : i1 to i32
    %c0_i32_0 = arith.constant 0 : i32
    %2 = arith.cmpi ne, %1, %c0_i32_0 : i32
    scf.if %2 {
      %cst_10 = arith.constant 0.000000e+00 : f32
      %12 = vector.broadcast %cst_10 : f32 to vector<40x128xf32>
      %c0_11 = arith.constant 0 : index
      %c0_12 = arith.constant 0 : index
      %13 = vector.load %arg7[%c0_11, %c0_12] : memref<40x128xf32, #tpu.memory_space<vmem>>, vector<40x128xf32>
      tpu.vector_store %arg7[%c0_11, %c0_12], %12 {strides = array<i32>} : memref<40x128xf32, #tpu.memory_space<vmem>>, vector<40x128xf32>,
    } else {
    }
    %c0 = arith.constant 0 : index
    %c0_1 = arith.constant 0 : index
    %3 = vector.load %arg7[%c0, %c0_1] : memref<40x128xf32, #tpu.memory_space<vmem>>, vector<40x128xf32>
    %c0_2 = arith.constant 0 : index
    %c0_3 = arith.constant 0 : index
    %4 = vector.load %arg3[%c0_2, %c0_3] : memref<40x128xbf16, #tpu.memory_space<vmem>>, vector<40x128xbf16>
    %c0_4 = arith.constant 0 : index
    %c0_5 = arith.constant 0 : index
    %5 = vector.load %arg4[%c0_4, %c0_5] : memref<128x128xbf16, #tpu.memory_space<vmem>>, vector<128x128xbf16>
    %cst = arith.constant dense<0.000000e+00> : vector<40x128xf32>
    %6 = tpu.matmul %4, %5, %cst {dimension_numbers = #tpu.dot_dimension_numbers<[1], [0], [0], [1], [0, 0, 1, 1], [], []>} : vector<40x128xbf16>, vector<128x128xbf16>, vector<40x128xf32> -> vector<40x128xf32>
    %7 = arith.addf %3, %6 : vector<40x128xf32>
    %c0_6 = arith.constant 0 : index
    %c0_7 = arith.constant 0 : index
    %8 = vector.load %arg7[%c0_6, %c0_7] : memref<40x128xf32, #tpu.memory_space<vmem>>, vector<40x128xf32>
    tpu.vector_store %arg7[%c0_6, %c0_7], %7 {strides = array<i32>} : memref<40x128xf32, #tpu.memory_space<vmem>>, vector<40x128xf32>,
    %c0_i32_8 = arith.constant 0 : i32
    %9 = arith.cmpi eq, %arg2, %c0_i32_8 : i32
    %10 = arith.extui %9 : i1 to i32
    %c0_i32_9 = arith.constant 0 : i32
    %11 = arith.cmpi ne, %10, %c0_i32_9 : i32
    scf.if %11 {
      %c0_10 = arith.constant 0 : index
      %c0_11 = arith.constant 0 : index
      %12 = vector.load %arg7[%c0_10, %c0_11] : memref<40x128xf32, #tpu.memory_space<vmem>>, vector<40x128xf32>
      %c0_12 = arith.constant 0 : index
      %c0_13 = arith.constant 0 : index
      %13 = vector.load %arg5[%c0_12, %c0_13] : memref<1x128xf32, #tpu.memory_space<vmem>>, vector<1x128xf32>
      %14 = vector.broadcast %13 : vector<1x128xf32> to vector<40x128xf32>
      %15 = arith.addf %12, %14 : vector<40x128xf32>
      %16 = arith.truncf %15 : vector<40x128xf32> to vector<40x128xbf16>
      %c0_14 = arith.constant 0 : index
      %c0_15 = arith.constant 0 : index
      %17 = vector.load %arg6[%c0_14, %c0_15] : memref<40x128xbf16, #tpu.memory_space<vmem>>, vector<40x128xbf16>
      tpu.vector_store %arg6[%c0_14, %c0_15], %16 {strides = array<i32>} : memref<40x128xbf16, #tpu.memory_space<vmem>>, vector<40x128xbf16>,
    } else {
    }
    return
  }
  func.func @transform_0(%arg0: i32, %arg1: i32, %arg2: i32) -> (i32, i32) {
    %c0_i32 = arith.constant 0 : i32
    return %arg0, %arg2 : i32, i32
  }
  func.func @transform_1(%arg0: i32, %arg1: i32, %arg2: i32) -> (i32, i32) {
    %c0_i32 = arith.constant 0 : i32
    return %arg2, %arg1 : i32, i32
  }
  func.func @transform_2(%arg0: i32, %arg1: i32, %arg2: i32) -> (i32, i32) {
    %c0_i32 = arith.constant 0 : i32
    %c0_i32_0 = arith.constant 0 : i32
    return %c0_i32, %arg1 : i32, i32
  }
  func.func @transform_3(%arg0: i32, %arg1: i32, %arg2: i32) -> (i32, i32) {
    %c0_i32 = arith.constant 0 : i32
    return %arg0, %arg1 : i32, i32
  }
}

module attributes {stable_mosaic.version = 11 : i64} {
  func.func @_attention_kernel(%arg0: i32, %arg1: memref<1x4x17x8xbf16, #tpu.memory_space<vmem>>, %arg2: memref<1x4x17x8xbf16, #tpu.memory_space<vmem>>, %arg3: memref<1x4x17x8xbf16, #tpu.memory_space<vmem>>, %arg4: memref<1x4x17x8xbf16, #tpu.memory_space<vmem>>) attributes {dimension_semantics = [#tpu.dimension_semantics<parallel>], iteration_bounds = array<i64: 2>, scalar_prefetch = 0 : i64, scratch_operands = 0 : i64, tpu.core_type = #tpu.core_type<tc>, window_params = [{transform_indices = @transform_0, window_bounds = array<i64: 1, 4, 17, 8>}, {transform_indices = @transform_1, window_bounds = array<i64: 1, 4, 17, 8>}, {transform_indices = @transform_2, window_bounds = array<i64: 1, 4, 17, 8>}, {transform_indices = @transform_3, window_bounds = array<i64: 1, 4, 17, 8>}]} {
    %c0 = arith.constant 0 : index
    %c0_0 = arith.constant 0 : index
    %c0_1 = arith.constant 0 : index
    %c0_2 = arith.constant 0 : index
    %0 = vector.load %arg1[%c0, %c0_0, %c0_1, %c0_2] : memref<1x4x17x8xbf16, #tpu.memory_space<vmem>>, vector<1x4x17x8xbf16>
    %1 = vector.shape_cast %0 : vector<1x4x17x8xbf16> to vector<4x17x8xbf16>
    %c0_3 = arith.constant 0 : index
    %c0_4 = arith.constant 0 : index
    %c0_5 = arith.constant 0 : index
    %c0_6 = arith.constant 0 : index
    %2 = vector.load %arg2[%c0_3, %c0_4, %c0_5, %c0_6] : memref<1x4x17x8xbf16, #tpu.memory_space<vmem>>, vector<1x4x17x8xbf16>
    %3 = vector.shape_cast %2 : vector<1x4x17x8xbf16> to vector<4x17x8xbf16>
    %c0_7 = arith.constant 0 : index
    %c0_8 = arith.constant 0 : index
    %c0_9 = arith.constant 0 : index
    %c0_10 = arith.constant 0 : index
    %4 = vector.load %arg3[%c0_7, %c0_8, %c0_9, %c0_10] : memref<1x4x17x8xbf16, #tpu.memory_space<vmem>>, vector<1x4x17x8xbf16>
    %5 = vector.shape_cast %4 : vector<1x4x17x8xbf16> to vector<4x17x8xbf16>
    "tpu.trace_start"() <{level = 10 : i32, message = "htd,hsd->hts"}> : () -> ()
    %cst = arith.constant dense<0.000000e+00> : vector<4x17x17xf32>
    %6 = tpu.matmul %1, %3, %cst {dimension_numbers = #tpu.dot_dimension_numbers<[2], [2], [1], [1], [0, 0, 0, 1, 1, 1], [0], [0]>} : vector<4x17x8xbf16>, vector<4x17x8xbf16>, vector<4x17x17xf32> -> vector<4x17x17xf32>
    "tpu.trace_stop"() : () -> ()
    %cst_11 = arith.constant 0.353553385 : f32
    %7 = vector.broadcast %cst_11 : f32 to vector<4x17x17xf32>
    %8 = arith.mulf %6, %7 : vector<4x17x17xf32>
    %cst_12 = arith.constant dense<0xFF800000> : vector<4x17xf32>
    %9 = vector.multi_reduction <maximumf>, %8, %cst_12 [2] : vector<4x17x17xf32> to vector<4x17xf32>
    %10 = vector.shape_cast %9 : vector<4x17xf32> to vector<4x17x1xf32>
    %11 = vector.broadcast %10 : vector<4x17x1xf32> to vector<4x17x17xf32>
    %12 = arith.subf %8, %11 : vector<4x17x17xf32>
    %13 = math.exp %12 : vector<4x17x17xf32>
    %cst_13 = arith.constant dense<0.000000e+00> : vector<4x17xf32>
    %14 = vector.multi_reduction <add>, %13, %cst_13 [2] : vector<4x17x17xf32> to vector<4x17xf32>
    %15 = vector.shape_cast %14 : vector<4x17xf32> to vector<4x17x1xf32>
    %16 = tpu.reciprocal %15 {approx = true} : vector<4x17x1xf32> -> vector<4x17x1xf32>
    %17 = vector.broadcast %16 : vector<4x17x1xf32> to vector<4x17x17xf32>
    %18 = arith.mulf %13, %17 : vector<4x17x17xf32>
    %19 = arith.truncf %18 : vector<4x17x17xf32> to vector<4x17x17xbf16>
    "tpu.trace_start"() <{level = 10 : i32, message = "hts,hsd->htd"}> : () -> ()
    %cst_14 = arith.constant dense<0.000000e+00> : vector<4x17x8xf32>
    %20 = tpu.matmul %19, %5, %cst_14 {dimension_numbers = #tpu.dot_dimension_numbers<[2], [1], [1], [2], [0, 0, 0, 1, 1, 2], [0], [0]>} : vector<4x17x17xbf16>, vector<4x17x8xbf16>, vector<4x17x8xf32> -> vector<4x17x8xf32>
    "tpu.trace_stop"() : () -> ()
    %21 = arith.truncf %20 : vector<4x17x8xf32> to vector<4x17x8xbf16>
    %c0_15 = arith.constant 0 : index
    %c0_16 = arith.constant 0 : index
    %c0_17 = arith.constant 0 : index
    %c0_18 = arith.constant 0 : index
    %22 = vector.load %arg4[%c0_15, %c0_16, %c0_17, %c0_18] : memref<1x4x17x8xbf16, #tpu.memory_space<vmem>>, vector<1x4x17x8xbf16>
    %23 = vector.shape_cast %22 : vector<1x4x17x8xbf16> to vector<4x17x8xbf16>
    %24 = vector.shape_cast %21 : vector<4x17x8xbf16> to vector<1x4x17x8xbf16>
    tpu.vector_store %arg4[%c0_15, %c0_16, %c0_17, %c0_18], %24 {strides = array<i32>} : memref<1x4x17x8xbf16, #tpu.memory_space<vmem>>, vector<1x4x17x8xbf16>,
    return
  }
  func.func @transform_0(%arg0: i32) -> (i32, i32, i32, i32) {
    %c0_i32 = arith.constant 0 : i32
    %c0_i32_0 = arith.constant 0 : i32
    %c0_i32_1 = arith.constant 0 : i32
    %c0_i32_2 = arith.constant 0 : i32
    return %arg0, %c0_i32, %c0_i32_0, %c0_i32_1 : i32, i32, i32, i32
  }
  func.func @transform_1(%arg0: i32) -> (i32, i32, i32, i32) {
    %c0_i32 = arith.constant 0 : i32
    %c0_i32_0 = arith.constant 0 : i32
    %c0_i32_1 = arith.constant 0 : i32
    %c0_i32_2 = arith.constant 0 : i32
    return %arg0, %c0_i32, %c0_i32_0, %c0_i32_1 : i32, i32, i32, i32
  }
  func.func @transform_2(%arg0: i32) -> (i32, i32, i32, i32) {
    %c0_i32 = arith.constant 0 : i32
    %c0_i32_0 = arith.constant 0 : i32
    %c0_i32_1 = arith.constant 0 : i32
    %c0_i32_2 = arith.constant 0 : i32
    return %arg0, %c0_i32, %c0_i32_0, %c0_i32_1 : i32, i32, i32, i32
  }
  func.func @transform_3(%arg0: i32) -> (i32, i32, i32, i32) {
    %c0_i32 = arith.constant 0 : i32
    %c0_i32_0 = arith.constant 0 : i32
    %c0_i32_1 = arith.constant 0 : i32
    %c0_i32_2 = arith.constant 0 : i32
    return %arg0, %c0_i32, %c0_i32_0, %c0_i32_1 : i32, i32, i32, i32
  }
}

module attributes {stable_mosaic.version = 11 : i64} {
  func.func @_linear_res_kernel(%arg0: i32, %arg1: i32, %arg2: i32, %arg3: memref<40x128xbf16, #tpu.memory_space<vmem>>, %arg4: memref<128x128xbf16, #tpu.memory_space<vmem>>, %arg5: memref<1x128xf32, #tpu.memory_space<vmem>>, %arg6: memref<40x128xf32, #tpu.memory_space<vmem>>, %arg7: memref<40x128xf32, #tpu.memory_space<vmem>>, %arg8: memref<40x128xf32, #tpu.memory_space<vmem>>) attributes {dimension_semantics = [#tpu.dimension_semantics<parallel>, #tpu.dimension_semantics<parallel>, #tpu.dimension_semantics<arbitrary>], iteration_bounds = array<i64: 1, 1, 1>, scalar_prefetch = 0 : i64, scratch_operands = 1 : i64, tpu.core_type = #tpu.core_type<tc>, window_params = [{transform_indices = @transform_0, window_bounds = array<i64: 40, 128>}, {transform_indices = @transform_1, window_bounds = array<i64: 128, 128>}, {transform_indices = @transform_2, window_bounds = array<i64: 1, 128>}, {transform_indices = @transform_3, window_bounds = array<i64: 40, 128>}, {transform_indices = @transform_4, window_bounds = array<i64: 40, 128>}]} {
    %c0_i32 = arith.constant 0 : i32
    %0 = arith.cmpi eq, %arg2, %c0_i32 : i32
    %1 = arith.extui %0 : i1 to i32
    %c0_i32_0 = arith.constant 0 : i32
    %2 = arith.cmpi ne, %1, %c0_i32_0 : i32
    scf.if %2 {
      %cst_10 = arith.constant 0.000000e+00 : f32
      %12 = vector.broadcast %cst_10 : f32 to vector<40x128xf32>
      %c0_11 = arith.constant 0 : index
      %c0_12 = arith.constant 0 : index
      %13 = vector.load %arg8[%c0_11, %c0_12] : memref<40x128xf32, #tpu.memory_space<vmem>>, vector<40x128xf32>
      tpu.vector_store %arg8[%c0_11, %c0_12], %12 {strides = array<i32>} : memref<40x128xf32, #tpu.memory_space<vmem>>, vector<40x128xf32>,
    } else {
    }
    %c0 = arith.constant 0 : index
    %c0_1 = arith.constant 0 : index
    %3 = vector.load %arg8[%c0, %c0_1] : memref<40x128xf32, #tpu.memory_space<vmem>>, vector<40x128xf32>
    %c0_2 = arith.constant 0 : index
    %c0_3 = arith.constant 0 : index
    %4 = vector.load %arg3[%c0_2, %c0_3] : memref<40x128xbf16, #tpu.memory_space<vmem>>, vector<40x128xbf16>
    %c0_4 = arith.constant 0 : index
    %c0_5 = arith.constant 0 : index
    %5 = vector.load %arg4[%c0_4, %c0_5] : memref<128x128xbf16, #tpu.memory_space<vmem>>, vector<128x128xbf16>
    %cst = arith.constant dense<0.000000e+00> : vector<40x128xf32>
    %6 = tpu.matmul %4, %5, %cst {dimension_numbers = #tpu.dot_dimension_numbers<[1], [0], [0], [1], [0, 0, 1, 1], [], []>} : vector<40x128xbf16>, vector<128x128xbf16>, vector<40x128xf32> -> vector<40x128xf32>
    %7 = arith.addf %3, %6 : vector<40x128xf32>
    %c0_6 = arith.constant 0 : index
    %c0_7 = arith.constant 0 : index
    %8 = vector.load %arg8[%c0_6, %c0_7] : memref<40x128xf32, #tpu.memory_space<vmem>>, vector<40x128xf32>
    tpu.vector_store %arg8[%c0_6, %c0_7], %7 {strides = array<i32>} : memref<40x128xf32, #tpu.memory_space<vmem>>, vector<40x128xf32>,
    %c0_i32_8 = arith.constant 0 : i32
    %9 = arith.cmpi eq, %arg2, %c0_i32_8 : i32
    %10 = arith.extui %9 : i1 to i32
    %c0_i32_9 = arith.constant 0 : i32
    %11 = arith.cmpi ne, %10, %c0_i32_9 : i32
    scf.if %11 {
      %c0_10 = arith.constant 0 : index
      %c0_11 = arith.constant 0 : index
      %12 = vector.load %arg8[%c0_10, %c0_11] : memref<40x128xf32, #tpu.memory_space<vmem>>, vector<40x128xf32>
      %c0_12 = arith.constant 0 : index
      %c0_13 = arith.constant 0 : index
      %13 = vector.load %arg5[%c0_12, %c0_13] : memref<1x128xf32, #tpu.memory_space<vmem>>, vector<1x128xf32>
      %14 = vector.broadcast %13 : vector<1x128xf32> to vector<40x128xf32>
      %15 = arith.addf %12, %14 : vector<40x128xf32>
      %c0_14 = arith.constant 0 : index
      %c0_15 = arith.constant 0 : index
      %16 = vector.load %arg6[%c0_14, %c0_15] : memref<40x128xf32, #tpu.memory_space<vmem>>, vector<40x128xf32>
      %17 = arith.addf %15, %16 : vector<40x128xf32>
      %c0_16 = arith.constant 0 : index
      %c0_17 = arith.constant 0 : index
      %18 = vector.load %arg7[%c0_16, %c0_17] : memref<40x128xf32, #tpu.memory_space<vmem>>, vector<40x128xf32>
      tpu.vector_store %arg7[%c0_16, %c0_17], %17 {strides = array<i32>} : memref<40x128xf32, #tpu.memory_space<vmem>>, vector<40x128xf32>,
    } else {
    }
    return
  }
  func.func @transform_0(%arg0: i32, %arg1: i32, %arg2: i32) -> (i32, i32) {
    %c0_i32 = arith.constant 0 : i32
    return %arg0, %arg2 : i32, i32
  }
  func.func @transform_1(%arg0: i32, %arg1: i32, %arg2: i32) -> (i32, i32) {
    %c0_i32 = arith.constant 0 : i32
    return %arg2, %arg1 : i32, i32
  }
  func.func @transform_2(%arg0: i32, %arg1: i32, %arg2: i32) -> (i32, i32) {
    %c0_i32 = arith.constant 0 : i32
    %c0_i32_0 = arith.constant 0 : i32
    return %c0_i32, %arg1 : i32, i32
  }
  func.func @transform_3(%arg0: i32, %arg1: i32, %arg2: i32) -> (i32, i32) {
    %c0_i32 = arith.constant 0 : i32
    return %arg0, %arg1 : i32, i32
  }
  func.func @transform_4(%arg0: i32, %arg1: i32, %arg2: i32) -> (i32, i32) {
    %c0_i32 = arith.constant 0 : i32
    return %arg0, %arg1 : i32, i32
  }
}

module attributes {stable_mosaic.version = 11 : i64} {
  func.func @_linear_kernel(%arg0: i32, %arg1: i32, %arg2: i32, %arg3: memref<40x128xbf16, #tpu.memory_space<vmem>>, %arg4: memref<128x128xbf16, #tpu.memory_space<vmem>>, %arg5: memref<1x128xf32, #tpu.memory_space<vmem>>, %arg6: memref<40x128xbf16, #tpu.memory_space<vmem>>, %arg7: memref<40x128xf32, #tpu.memory_space<vmem>>) attributes {dimension_semantics = [#tpu.dimension_semantics<parallel>, #tpu.dimension_semantics<parallel>, #tpu.dimension_semantics<arbitrary>], iteration_bounds = array<i64: 1, 1, 1>, scalar_prefetch = 0 : i64, scratch_operands = 1 : i64, tpu.core_type = #tpu.core_type<tc>, window_params = [{transform_indices = @transform_0, window_bounds = array<i64: 40, 128>}, {transform_indices = @transform_1, window_bounds = array<i64: 128, 128>}, {transform_indices = @transform_2, window_bounds = array<i64: 1, 128>}, {transform_indices = @transform_3, window_bounds = array<i64: 40, 128>}]} {
    %c0_i32 = arith.constant 0 : i32
    %0 = arith.cmpi eq, %arg2, %c0_i32 : i32
    %1 = arith.extui %0 : i1 to i32
    %c0_i32_0 = arith.constant 0 : i32
    %2 = arith.cmpi ne, %1, %c0_i32_0 : i32
    scf.if %2 {
      %cst_10 = arith.constant 0.000000e+00 : f32
      %12 = vector.broadcast %cst_10 : f32 to vector<40x128xf32>
      %c0_11 = arith.constant 0 : index
      %c0_12 = arith.constant 0 : index
      %13 = vector.load %arg7[%c0_11, %c0_12] : memref<40x128xf32, #tpu.memory_space<vmem>>, vector<40x128xf32>
      tpu.vector_store %arg7[%c0_11, %c0_12], %12 {strides = array<i32>} : memref<40x128xf32, #tpu.memory_space<vmem>>, vector<40x128xf32>,
    } else {
    }
    %c0 = arith.constant 0 : index
    %c0_1 = arith.constant 0 : index
    %3 = vector.load %arg7[%c0, %c0_1] : memref<40x128xf32, #tpu.memory_space<vmem>>, vector<40x128xf32>
    %c0_2 = arith.constant 0 : index
    %c0_3 = arith.constant 0 : index
    %4 = vector.load %arg3[%c0_2, %c0_3] : memref<40x128xbf16, #tpu.memory_space<vmem>>, vector<40x128xbf16>
    %c0_4 = arith.constant 0 : index
    %c0_5 = arith.constant 0 : index
    %5 = vector.load %arg4[%c0_4, %c0_5] : memref<128x128xbf16, #tpu.memory_space<vmem>>, vector<128x128xbf16>
    %cst = arith.constant dense<0.000000e+00> : vector<40x128xf32>
    %6 = tpu.matmul %4, %5, %cst {dimension_numbers = #tpu.dot_dimension_numbers<[1], [0], [0], [1], [0, 0, 1, 1], [], []>} : vector<40x128xbf16>, vector<128x128xbf16>, vector<40x128xf32> -> vector<40x128xf32>
    %7 = arith.addf %3, %6 : vector<40x128xf32>
    %c0_6 = arith.constant 0 : index
    %c0_7 = arith.constant 0 : index
    %8 = vector.load %arg7[%c0_6, %c0_7] : memref<40x128xf32, #tpu.memory_space<vmem>>, vector<40x128xf32>
    tpu.vector_store %arg7[%c0_6, %c0_7], %7 {strides = array<i32>} : memref<40x128xf32, #tpu.memory_space<vmem>>, vector<40x128xf32>,
    %c0_i32_8 = arith.constant 0 : i32
    %9 = arith.cmpi eq, %arg2, %c0_i32_8 : i32
    %10 = arith.extui %9 : i1 to i32
    %c0_i32_9 = arith.constant 0 : i32
    %11 = arith.cmpi ne, %10, %c0_i32_9 : i32
    scf.if %11 {
      %c0_10 = arith.constant 0 : index
      %c0_11 = arith.constant 0 : index
      %12 = vector.load %arg7[%c0_10, %c0_11] : memref<40x128xf32, #tpu.memory_space<vmem>>, vector<40x128xf32>
      %c0_12 = arith.constant 0 : index
      %c0_13 = arith.constant 0 : index
      %13 = vector.load %arg5[%c0_12, %c0_13] : memref<1x128xf32, #tpu.memory_space<vmem>>, vector<1x128xf32>
      %14 = vector.broadcast %13 : vector<1x128xf32> to vector<40x128xf32>
      %15 = arith.addf %12, %14 : vector<40x128xf32>
      %cst_14 = arith.constant 5.000000e-01 : f32
      %16 = vector.broadcast %cst_14 : f32 to vector<40x128xf32>
      %17 = arith.mulf %16, %15 : vector<40x128xf32>
      %cst_15 = arith.constant 4.471500e-02 : f32
      %18 = vector.broadcast %cst_15 : f32 to vector<40x128xf32>
      %19 = arith.mulf %18, %15 : vector<40x128xf32>
      %20 = arith.mulf %19, %15 : vector<40x128xf32>
      %21 = arith.mulf %20, %15 : vector<40x128xf32>
      %22 = arith.addf %15, %21 : vector<40x128xf32>
      %cst_16 = arith.constant 0.797884583 : f32
      %23 = vector.broadcast %cst_16 : f32 to vector<40x128xf32>
      %24 = arith.mulf %23, %22 : vector<40x128xf32>
      %25 = math.tanh %24 : vector<40x128xf32>
      %cst_17 = arith.constant 1.000000e+00 : f32
      %26 = vector.broadcast %cst_17 : f32 to vector<40x128xf32>
      %27 = arith.addf %26, %25 : vector<40x128xf32>
      %28 = arith.mulf %17, %27 : vector<40x128xf32>
      %29 = arith.truncf %28 : vector<40x128xf32> to vector<40x128xbf16>
      %c0_18 = arith.constant 0 : index
      %c0_19 = arith.constant 0 : index
      %30 = vector.load %arg6[%c0_18, %c0_19] : memref<40x128xbf16, #tpu.memory_space<vmem>>, vector<40x128xbf16>
      tpu.vector_store %arg6[%c0_18, %c0_19], %29 {strides = array<i32>} : memref<40x128xbf16, #tpu.memory_space<vmem>>, vector<40x128xbf16>,
    } else {
    }
    return
  }
  func.func @transform_0(%arg0: i32, %arg1: i32, %arg2: i32) -> (i32, i32) {
    %c0_i32 = arith.constant 0 : i32
    return %arg0, %arg2 : i32, i32
  }
  func.func @transform_1(%arg0: i32, %arg1: i32, %arg2: i32) -> (i32, i32) {
    %c0_i32 = arith.constant 0 : i32
    return %arg2, %arg1 : i32, i32
  }
  func.func @transform_2(%arg0: i32, %arg1: i32, %arg2: i32) -> (i32, i32) {
    %c0_i32 = arith.constant 0 : i32
    %c0_i32_0 = arith.constant 0 : i32
    return %c0_i32, %arg1 : i32, i32
  }
  func.func @transform_3(%arg0: i32, %arg1: i32, %arg2: i32) -> (i32, i32) {
    %c0_i32 = arith.constant 0 : i32
    return %arg0, %arg1 : i32, i32
  }
}

module attributes {stable_mosaic.version = 11 : i64} {
  func.func @_head_kernel(%arg0: memref<8x32xf32, #tpu.memory_space<vmem>>, %arg1: memref<1x32xf32, #tpu.memory_space<vmem>>, %arg2: memref<1x32xf32, #tpu.memory_space<vmem>>, %arg3: memref<32x16xf32, #tpu.memory_space<vmem>>, %arg4: memref<1x16xf32, #tpu.memory_space<vmem>>, %arg5: memref<16x1xf32, #tpu.memory_space<vmem>>, %arg6: memref<1x1xf32, #tpu.memory_space<vmem>>, %arg7: memref<8x1xf32, #tpu.memory_space<vmem>>) attributes {dimension_semantics = [], scalar_prefetch = 0 : i64, scratch_operands = 0 : i64, tpu.core_type = #tpu.core_type<tc>} {
    %c0 = arith.constant 0 : index
    %c0_0 = arith.constant 0 : index
    %0 = vector.load %arg0[%c0, %c0_0] : memref<8x32xf32, #tpu.memory_space<vmem>>, vector<8x32xf32>
    %cst = arith.constant dense<0.000000e+00> : vector<8xf32>
    %1 = vector.multi_reduction <add>, %0, %cst [1] : vector<8x32xf32> to vector<8xf32>
    %2 = vector.shape_cast %1 : vector<8xf32> to vector<8x1xf32>
    %cst_1 = arith.constant 3.200000e+01 : f32
    %3 = vector.broadcast %cst_1 : f32 to vector<8x1xf32>
    %4 = arith.divf %2, %3 : vector<8x1xf32>
    %5 = vector.broadcast %4 : vector<8x1xf32> to vector<8x32xf32>
    %6 = arith.subf %0, %5 : vector<8x32xf32>
    %7 = arith.mulf %6, %6 : vector<8x32xf32>
    %cst_2 = arith.constant dense<0.000000e+00> : vector<8xf32>
    %8 = vector.multi_reduction <add>, %7, %cst_2 [1] : vector<8x32xf32> to vector<8xf32>
    %9 = vector.shape_cast %8 : vector<8xf32> to vector<8x1xf32>
    %cst_3 = arith.constant 3.200000e+01 : f32
    %10 = vector.broadcast %cst_3 : f32 to vector<8x1xf32>
    %11 = arith.divf %9, %10 : vector<8x1xf32>
    %cst_4 = arith.constant 9.99999997E-7 : f32
    %12 = vector.broadcast %cst_4 : f32 to vector<8x1xf32>
    %13 = arith.addf %11, %12 : vector<8x1xf32>
    %14 = math.rsqrt %13 : vector<8x1xf32>
    %15 = vector.broadcast %14 : vector<8x1xf32> to vector<8x32xf32>
    %16 = arith.mulf %6, %15 : vector<8x32xf32>
    %c0_5 = arith.constant 0 : index
    %c0_6 = arith.constant 0 : index
    %17 = vector.load %arg1[%c0_5, %c0_6] : memref<1x32xf32, #tpu.memory_space<vmem>>, vector<1x32xf32>
    %18 = vector.broadcast %17 : vector<1x32xf32> to vector<8x32xf32>
    %19 = arith.mulf %16, %18 : vector<8x32xf32>
    %c0_7 = arith.constant 0 : index
    %c0_8 = arith.constant 0 : index
    %20 = vector.load %arg2[%c0_7, %c0_8] : memref<1x32xf32, #tpu.memory_space<vmem>>, vector<1x32xf32>
    %21 = vector.broadcast %20 : vector<1x32xf32> to vector<8x32xf32>
    %22 = arith.addf %19, %21 : vector<8x32xf32>
    %c0_9 = arith.constant 0 : index
    %c0_10 = arith.constant 0 : index
    %23 = vector.load %arg3[%c0_9, %c0_10] : memref<32x16xf32, #tpu.memory_space<vmem>>, vector<32x16xf32>
    %cst_11 = arith.constant dense<0.000000e+00> : vector<8x16xf32>
    %24 = tpu.matmul %22, %23, %cst_11 {dimension_numbers = #tpu.dot_dimension_numbers<[1], [0], [0], [1], [0, 0, 1, 1], [], []>} : vector<8x32xf32>, vector<32x16xf32>, vector<8x16xf32> -> vector<8x16xf32>
    %c0_12 = arith.constant 0 : index
    %c0_13 = arith.constant 0 : index
    %25 = vector.load %arg4[%c0_12, %c0_13] : memref<1x16xf32, #tpu.memory_space<vmem>>, vector<1x16xf32>
    %26 = vector.broadcast %25 : vector<1x16xf32> to vector<8x16xf32>
    %27 = arith.addf %24, %26 : vector<8x16xf32>
    %c0_14 = arith.constant 0 : index
    %c0_15 = arith.constant 0 : index
    %28 = vector.load %arg5[%c0_14, %c0_15] : memref<16x1xf32, #tpu.memory_space<vmem>>, vector<16x1xf32>
    %cst_16 = arith.constant dense<0.000000e+00> : vector<8x1xf32>
    %29 = tpu.matmul %27, %28, %cst_16 {dimension_numbers = #tpu.dot_dimension_numbers<[1], [0], [0], [1], [0, 0, 1, 1], [], []>} : vector<8x16xf32>, vector<16x1xf32>, vector<8x1xf32> -> vector<8x1xf32>
    %c0_17 = arith.constant 0 : index
    %c0_18 = arith.constant 0 : index
    %30 = vector.load %arg6[%c0_17, %c0_18] : memref<1x1xf32, #tpu.memory_space<vmem>>, vector<1x1xf32>
    %31 = vector.broadcast %30 : vector<1x1xf32> to vector<8x1xf32>
    %32 = arith.addf %29, %31 : vector<8x1xf32>
    %cst_19 = arith.constant 0.000000e+00 : f32
    %33 = vector.broadcast %cst_19 : f32 to vector<8x1xf32>
    %34 = arith.maximumf %32, %33 : vector<8x1xf32>
    %c0_20 = arith.constant 0 : index
    %c0_21 = arith.constant 0 : index
    %35 = vector.load %arg7[%c0_20, %c0_21] : memref<8x1xf32, #tpu.memory_space<vmem>>, vector<8x1xf32>
    tpu.vector_store %arg7[%c0_20, %c0_21], %34 {strides = array<i32>} : memref<8x1xf32, #tpu.memory_space<vmem>>, vector<8x1xf32>,
    return
  }
}

</mosaic_0001>

<llo_original>
// kernel: image_vit_forward.18
$region0: #{image_vit_forward.18}
  #allocation0 [shape = 'u32[]', space=smem, size = 0x4, offset = 0x4, fixed_abs, tag = 'smem constant byte address 0x4 - core index']
  #allocation1 [shape = 'u32[144,128]{1,0:T(1,128)}', space=vmem, size = 0x12000, scoped, tag = 'internal scratch']
  #allocation2 [shape = 'f32[40,128]{1,0:T(8,128)}', space=vmem, size = 0x5000, scoped, tag = 'scratch operand']
  %s0 = inlined_call_operand.vmem [shape: bf16[40,128], index: 0, kind: input, shape index: {}]
  %s1 = inlined_call_operand.vmem [shape: bf16[128,128], index: 1, kind: input, shape index: {}]
  %s2 = inlined_call_operand.vmem [shape: f32[1,128], index: 2, kind: input, shape index: {}]
  %s3 = inlined_call_operand.vmem [shape: bf16[40,128], index: 3, kind: output, shape index: {}]
  %s4 = sld [smem:[#allocation0]]
  $region30: #{image_vit_forward.18} parent=0
    _
  %s6 = ssub.s32 1, %s4
  %s7 = scalar_select 0, %s6, %s4
  // Predicated region
  $region2: #{image_vit_forward.18} parent=0 // pred_check
    _
  $region3: #{image_vit_forward.18} parent=0 // pred_check_branch
    %9 = sbr.rel (0) target = $region5
  $region4: #{image_vit_forward.18} parent=0 // pred_region
    _
  $region5: #{image_vit_forward.18} parent=0 // pred_fallthru
    _
  // Predicated region
  $region6: #{image_vit_forward.18} parent=0 // pred_check
    _
  $region7: #{image_vit_forward.18} parent=0 // pred_check_branch
    %11 = sbr.rel (0) target = $region9
  $region8: #{image_vit_forward.18} parent=0 // pred_region
    _
  $region9: #{image_vit_forward.18} parent=0 // pred_fallthru
    _
  // Predicated region
  $region10: #{image_vit_forward.18} parent=0 // pred_check
    _
  $region11: #{image_vit_forward.18} parent=0 // pred_check_branch
    %13 = sbr.rel (0) target = $region13
  $region12: #{image_vit_forward.18} parent=0 // pred_region
    _
  $region13: #{image_vit_forward.18} parent=0 // pred_fallthru
    _
  %p15 = scmp.eq.s32.totalorder 0, 0
  // Predicated region
  $region14: #{image_vit_forward.18} parent=0 // pred_check
    %p16 = pneg %p15
  $region15: #{image_vit_forward.18} parent=0 // pred_check_branch
    %18 = sbr.rel (%p16) target = $region17
  $region16: #{image_vit_forward.18} parent=0 // pred_region
    %19 = vst [vmem:[#allocation2] sm:$0xff] 0.0
    %20 = vst [vmem:[#allocation2 + $0x8] sm:$0xff] 0.0
    %21 = vst [vmem:[#allocation2 + $0x10] sm:$0xff] 0.0
    %22 = vst [vmem:[#allocation2 + $0x18] sm:$0xff] 0.0
    %23 = vst [vmem:[#allocation2 + $0x20] sm:$0xff] 0.0
  $region17: #{image_vit_forward.18} parent=0 // pred_fallthru
    _
  %v24 = vld [vmem:[#allocation2] sm:$0xff]
  %v25 = vld [vmem:[#allocation2 + $0x8] sm:$0xff]
  %v26 = vld [vmem:[#allocation2 + $0x10] sm:$0xff]
  %v27 = vld [vmem:[#allocation2 + $0x18] sm:$0xff]
  %v28 = vld [vmem:[#allocation2 + $0x20] sm:$0xff]
  %v29 = vld [vmem:[%s0] sm:$0xf]
  %v30 = vld [vmem:[%s0 + $0x4] sm:$0xf]
  %v31 = vld [vmem:[%s0 + $0x8] sm:$0xf]
  %v32 = vld [vmem:[%s0 + $0xc] sm:$0xf]
  %v33 = vld [vmem:[%s0 + $0x10] sm:$0xf]
  %v34 = vld [vmem:[%s1] sm:$0xf]
  %v35 = vld [vmem:[%s1 + $0x4] sm:$0xf]
  %v36 = vld [vmem:[%s1 + $0x8] sm:$0xf]
  %v37 = vld [vmem:[%s1 + $0xc] sm:$0xf]
  %v38 = vld [vmem:[%s1 + $0x10] sm:$0xf]
  %v39 = vld [vmem:[%s1 + $0x14] sm:$0xf]
  %v40 = vld [vmem:[%s1 + $0x18] sm:$0xf]
  %v41 = vld [vmem:[%s1 + $0x1c] sm:$0xf]
  %v42 = vld [vmem:[%s1 + $0x20] sm:$0xf]
  %v43 = vld [vmem:[%s1 + $0x24] sm:$0xf]
  %v44 = vld [vmem:[%s1 + $0x28] sm:$0xf]
  %v45 = vld [vmem:[%s1 + $0x2c] sm:$0xf]
  %v46 = vld [vmem:[%s1 + $0x30] sm:$0xf]
  %v47 = vld [vmem:[%s1 + $0x34] sm:$0xf]
  %v48 = vld [vmem:[%s1 + $0x38] sm:$0xf]
  %v49 = vld [vmem:[%s1 + $0x3c] sm:$0xf]
  %v55 = vunpack.c.l.b16 %v29
  %v56 = vunpack.c.l.b16 %v30
  %v57 = vunpack.c.l.b16 %v31
  %v58 = vunpack.c.l.b16 %v32
  %v59 = vunpack.c.l.b16 %v33
  %v60 = vpack.c.b16 %v56, %v55
  %v61 = vpack.c.b16 %v58, %v57
  %v62 = vpack.c.b16 %v59, %v59
  %v82 = vunpack.c.l.b16 %v34
  %v83 = vunpack.c.l.b16 %v35
  %v84 = vunpack.c.l.b16 %v36
  %v85 = vunpack.c.l.b16 %v37
  %v86 = vunpack.c.l.b16 %v38
  %v87 = vunpack.c.l.b16 %v39
  %v88 = vunpack.c.l.b16 %v40
  %v89 = vunpack.c.l.b16 %v41
  %v90 = vunpack.c.l.b16 %v42
  %v91 = vunpack.c.l.b16 %v43
  %v92 = vunpack.c.l.b16 %v44
  %v93 = vunpack.c.l.b16 %v45
  %v94 = vunpack.c.l.b16 %v46
  %v95 = vunpack.c.l.b16 %v47
  %v96 = vunpack.c.l.b16 %v48
  %v97 = vunpack.c.l.b16 %v49
  %v98 = vpack.c.b16 %v83, %v82
  %v99 = vpack.c.b16 %v85, %v84
  %v100 = vpack.c.b16 %v87, %v86
  %v101 = vpack.c.b16 %v89, %v88
  %v102 = vpack.c.b16 %v91, %v90
  %v103 = vpack.c.b16 %v93, %v92
  %v104 = vpack.c.b16 %v95, %v94
  %v105 = vpack.c.b16 %v97, %v96
  %114 = vmatprep.subr.bf16.mxu0 0
  %115 = vmatpush1.bf16.msra.mxu0 %v98
  %116 = vmatprep.subr.bf16.mxu0 0
  %117 = vmatpush1.bf16.msra.mxu0 %v99
  %118 = vmatprep.subr.bf16.mxu0 0
  %119 = vmatpush1.bf16.msra.mxu0 %v100
  %120 = vmatprep.subr.bf16.mxu0 0
  %121 = vmatpush1.bf16.msra.mxu0 %v101
  %122 = vmatprep.subr.bf16.mxu0 0
  %123 = vmatpush1.bf16.msra.mxu0 %v102
  %124 = vmatprep.subr.bf16.mxu0 0
  %125 = vmatpush1.bf16.msra.mxu0 %v103
  %126 = vmatprep.subr.bf16.mxu0 0
  %127 = vmatpush1.bf16.msra.mxu0 %v104
  %128 = vmatprep.subr.bf16.mxu0 0
  %129 = vmatpush1.bf16.msra.mxu0 %v105
  %130 = vmatprep.subr.bf16.mxu0 0
  %131 = vmatpush1.bf16.msra.mxu0 0
  %132 = vmatprep.subr.bf16.mxu0 0
  %133 = vmatpush1.bf16.msra.mxu0 0
  %134 = vmatprep.subr.bf16.mxu0 0
  %135 = vmatpush1.bf16.msra.mxu0 0
  %136 = vmatprep.subr.bf16.mxu0 0
  %137 = vmatpush1.bf16.msra.mxu0 0
  %138 = vmatprep.subr.bf16.mxu0 0
  %139 = vmatpush1.bf16.msra.mxu0 0
  %140 = vmatprep.subr.bf16.mxu0 0
  %141 = vmatpush1.bf16.msra.mxu0 0
  %142 = vmatprep.subr.bf16.mxu0 0
  %143 = vmatpush1.bf16.msra.mxu0 0
  %144 = vmatprep.subr.bf16.mxu0 0
  %145 = vmatpush1.bf16.msra.mxu0 0
  %146 = vmatprep.mubr.bf16.mxu0 0
  %147 = vmatmul.mubr.bf16.gmra.mrb[0].mxu0 %v60
  %v148 = vpop.f32.mrb[0].mxu0
  %v149 = vadd.f32 0.0, %v148
  %v150 = vpop.f32.mrb[0].mxu0
  %v151 = vpop.f32.mrb[0].mxu0
  %v152 = vadd.f32 0.0, %v151
  %v153 = vpop.f32.mrb[0].mxu0
  %154 = vmatprep.mubr.bf16.mxu0 0
  %155 = vmatmul.mubr.bf16.gmra.mrb[0].mxu0 %v61
  %v156 = vpop.f32.mrb[0].mxu0
  %v157 = vadd.f32 0.0, %v156
  %v158 = vpop.f32.mrb[0].mxu0
  %v159 = vpop.f32.mrb[0].mxu0
  %v160 = vadd.f32 0.0, %v159
  %v161 = vpop.f32.mrb[0].mxu0
  %162 = vmatprep.mubr.bf16.mxu0 0
  %163 = vmatmul.mubr.bf16.gmra.mrb[0].mxu0 %v62
  %v164 = vpop.f32.mrb[0].mxu0
  %v165 = vadd.f32 0.0, %v164
  %v166 = vpop.f32.mrb[0].mxu0
  %v167 = vpop.f32.mrb[0].mxu0
  %v168 = vpop.f32.mrb[0].mxu0
  %169 = vdwg.mxu0
  %v170 = vadd.f32 %v24, %v149
  %v171 = vadd.f32 %v25, %v152
  %v172 = vadd.f32 %v26, %v157
  %v173 = vadd.f32 %v27, %v160
  %v174 = vadd.f32 %v28, %v165
  %175 = vst [vmem:[#allocation2] sm:$0xff] %v170
  %176 = vst [vmem:[#allocation2 + $0x8] sm:$0xff] %v171
  %177 = vst [vmem:[#allocation2 + $0x10] sm:$0xff] %v172
  %178 = vst [vmem:[#allocation2 + $0x18] sm:$0xff] %v173
  %179 = vst [vmem:[#allocation2 + $0x20] sm:$0xff] %v174
  // Predicated region
  $region18: #{image_vit_forward.18} parent=0 // pred_check
    %p180 = pneg %p15
  $region19: #{image_vit_forward.18} parent=0 // pred_check_branch
    %182 = sbr.rel (%p180) target = $region21
  $region20: #{image_vit_forward.18} parent=0 // pred_region
    %v183 = vld [vmem:[#allocation2] sm:$0xff]
    %v184 = vld [vmem:[#allocation2 + $0x8] sm:$0xff]
    %v185 = vld [vmem:[#allocation2 + $0x10] sm:$0xff]
    %v186 = vld [vmem:[#allocation2 + $0x18] sm:$0xff]
    %v187 = vld [vmem:[#allocation2 + $0x20] sm:$0xff]
    %v188 = vld [vmem:[%s2] sm:$0x1]
    %v190 = vlaneseq
    %v191 = vshrl.u32 %v190, 7
    %v192 = vsub.s32 0, %v191
    %v193 = vrot.slane %v188, %v192
    %v195 = vadd.f32 %v183, %v193
    %v196 = vadd.f32 %v184, %v193
    %v197 = vadd.f32 %v185, %v193
    %v198 = vadd.f32 %v186, %v193
    %v199 = vadd.f32 %v187, %v193
    %v200 = vpack.c.bf16 %v196, %v195
    %v201 = vpack.c.bf16 %v198, %v197
    %v202 = vpack.c.bf16 %v199, %v199
    %v206 = vunpack.c.l.b16 %v200
    %v207 = vunpack.c.h.b16 %v200
    %v208 = vunpack.c.l.b16 %v201
    %v209 = vunpack.c.h.b16 %v201
    %v210 = vunpack.c.l.b16 %v202
    %v211 = vpack.c.b16 %v206, %v206
    %v212 = vpack.c.b16 %v207, %v207
    %v213 = vpack.c.b16 %v208, %v208
    %v214 = vpack.c.b16 %v209, %v209
    %v215 = vpack.c.b16 %v210, %v210
    %221 = vst [vmem:[%s3] sm:$0xf] %v211
    %222 = vst [vmem:[%s3 + $0x4] sm:$0xf] %v212
    %223 = vst [vmem:[%s3 + $0x8] sm:$0xf] %v213
    %224 = vst [vmem:[%s3 + $0xc] sm:$0xf] %v214
    %225 = vst [vmem:[%s3 + $0x10] sm:$0xf] %v215
  $region21: #{image_vit_forward.18} parent=0 // pred_fallthru
    _
  // Predicated region
  $region22: #{image_vit_forward.18} parent=0 // pred_check
    _
  $region23: #{image_vit_forward.18} parent=0 // pred_check_branch
    %227 = sbr.rel (0) target = $region25
  $region24: #{image_vit_forward.18} parent=0 // pred_region
    _
  $region25: #{image_vit_forward.18} parent=0 // pred_fallthru
    _
  // Predicated region
  $region26: #{image_vit_forward.18} parent=0 // pred_check
    _
  $region27: #{image_vit_forward.18} parent=0 // pred_check_branch
    %229 = sbr.rel (0) target = $region29
  $region28: #{image_vit_forward.18} parent=0 // pred_region
    _
  $region29: #{image_vit_forward.18} parent=0 // pred_fallthru
    _

// kernel: image_vit_forward.17
$region0: #{image_vit_forward.17}
  #allocation0 [shape = 'u32[]', space=smem, size = 0x4, offset = 0x4, fixed_abs, tag = 'smem constant byte address 0x4 - core index']
  #allocation1 [shape = 'u32[144,128]{1,0:T(1,128)}', space=vmem, size = 0x12000, scoped, tag = 'internal scratch']
  %s0 = inlined_call_operand.vmem [shape: f32[40,32], index: 0, kind: input, shape index: {}]
  %s1 = inlined_call_operand.vmem [shape: f32[1,32], index: 1, kind: input, shape index: {}]
  %s2 = inlined_call_operand.vmem [shape: f32[1,32], index: 2, kind: input, shape index: {}]
  %s3 = inlined_call_operand.vmem [shape: f32[40,32], index: 3, kind: output, shape index: {}]
  %s4 = sld [smem:[#allocation0]]
  $region22: #{image_vit_forward.17} parent=0
    _
  %s6 = ssub.s32 1, %s4
  %s7 = scalar_select 0, %s6, %s4
  // Predicated region
  $region2: #{image_vit_forward.17} parent=0 // pred_check
    _
  $region3: #{image_vit_forward.17} parent=0 // pred_check_branch
    %9 = sbr.rel (0) target = $region5
  $region4: #{image_vit_forward.17} parent=0 // pred_region
    _
  $region5: #{image_vit_forward.17} parent=0 // pred_fallthru
    _
  // Predicated region
  $region6: #{image_vit_forward.17} parent=0 // pred_check
    _
  $region7: #{image_vit_forward.17} parent=0 // pred_check_branch
    %11 = sbr.rel (0) target = $region9
  $region8: #{image_vit_forward.17} parent=0 // pred_region
    _
  $region9: #{image_vit_forward.17} parent=0 // pred_fallthru
    _
  // Predicated region
  $region10: #{image_vit_forward.17} parent=0 // pred_check
    _
  $region11: #{image_vit_forward.17} parent=0 // pred_check_branch
    %13 = sbr.rel (0) target = $region13
  $region12: #{image_vit_forward.17} parent=0 // pred_region
    _
  $region13: #{image_vit_forward.17} parent=0 // pred_fallthru
    _
  %v14 = vld [vmem:[%s0] sm:$0xff]
  %v15 = vld [vmem:[%s0 + $0x8] sm:$0xff]
  %v16 = vld [vmem:[%s0 + $0x10] sm:$0xff]
  %v17 = vld [vmem:[%s0 + $0x18] sm:$0xff]
  %v18 = vld [vmem:[%s0 + $0x20] sm:$0xff]
  %vm19 = vcmask 261120
  %v20 = vsel %vm19, %v14, 0.0
  %21 = vadd.xlane.f32.xlu0 %v20
  %v22 = vpop.xlane.xlu0 %21
  %v23 = vsel %vm19, %v15, 0.0
  %24 = vadd.xlane.f32.xlu0 %v23
  %v25 = vpop.xlane.xlu0 %24
  %v26 = vsel %vm19, %v16, 0.0
  %27 = vadd.xlane.f32.xlu0 %v26
  %v28 = vpop.xlane.xlu0 %27
  %v29 = vsel %vm19, %v17, 0.0
  %30 = vadd.xlane.f32.xlu0 %v29
  %v31 = vpop.xlane.xlu0 %30
  %v32 = vsel %vm19, %v18, 0.0
  %33 = vadd.xlane.f32.xlu0 %v32
  %v34 = vpop.xlane.xlu0 %33
  %v35 = vrcp.pop 32.0
  %v36 = vmul.f32 %v22, %v35
  %v37 = vmul.f32 %v25, %v35
  %v38 = vmul.f32 %v28, %v35
  %v39 = vmul.f32 %v31, %v35
  %v40 = vmul.f32 %v34, %v35
  %v41 = vsub.f32 %v14, %v36
  %v42 = vsub.f32 %v15, %v37
  %v43 = vsub.f32 %v16, %v38
  %v44 = vsub.f32 %v17, %v39
  %v45 = vsub.f32 %v18, %v40
  %v46 = vmul.f32 %v41, %v41
  %v47 = vmul.f32 %v42, %v42
  %v48 = vmul.f32 %v43, %v43
  %v49 = vmul.f32 %v44, %v44
  %v50 = vmul.f32 %v45, %v45
  %v51 = vsel %vm19, %v46, 0.0
  %52 = vadd.xlane.f32.xlu0 %v51
  %v53 = vpop.xlane.xlu0 %52
  %v54 = vsel %vm19, %v47, 0.0
  %55 = vadd.xlane.f32.xlu0 %v54
  %v56 = vpop.xlane.xlu0 %55
  %v57 = vsel %vm19, %v48, 0.0
  %58 = vadd.xlane.f32.xlu0 %v57
  %v59 = vpop.xlane.xlu0 %58
  %v60 = vsel %vm19, %v49, 0.0
  %61 = vadd.xlane.f32.xlu0 %v60
  %v62 = vpop.xlane.xlu0 %61
  %v63 = vsel %vm19, %v50, 0.0
  %64 = vadd.xlane.f32.xlu0 %v63
  %v65 = vpop.xlane.xlu0 %64
  %v66 = vmul.f32 %v53, %v35
  %v67 = vmul.f32 %v56, %v35
  %v68 = vmul.f32 %v59, %v35
  %v69 = vmul.f32 %v62, %v35
  %v70 = vmul.f32 %v65, %v35
  %v71 = vadd.f32 %v66, 1e-06
  %v72 = vadd.f32 %v67, 1e-06
  %v73 = vadd.f32 %v68, 1e-06
  %v74 = vadd.f32 %v69, 1e-06
  %v75 = vadd.f32 %v70, 1e-06
  %v76 = vrsqrt.pop %v71
  %v77 = vrsqrt.pop %v72
  %v78 = vrsqrt.pop %v73
  %v79 = vrsqrt.pop %v74
  %v80 = vrsqrt.pop %v75
  %v81 = vmul.f32 %v41, %v76
  %v82 = vmul.f32 %v42, %v77
  %v83 = vmul.f32 %v43, %v78
  %v84 = vmul.f32 %v44, %v79
  %v85 = vmul.f32 %v45, %v80
  %v86 = vld [vmem:[%s1] sm:$0x1]
  %v88 = vlaneseq
  %v89 = vshrl.u32 %v88, 7
  %v90 = vsub.s32 0, %v89
  %v91 = vrot.slane %v86, %v90
  %v93 = vmul.f32 %v81, %v91
  %v94 = vmul.f32 %v82, %v91
  %v95 = vmul.f32 %v83, %v91
  %v96 = vmul.f32 %v84, %v91
  %v97 = vmul.f32 %v85, %v91
  %v98 = vld [vmem:[%s2] sm:$0x1]
  %v100 = vlaneseq
  %v101 = vshrl.u32 %v100, 7
  %v102 = vsub.s32 0, %v101
  %v103 = vrot.slane %v98, %v102
  %v105 = vadd.f32 %v93, %v103
  %v106 = vadd.f32 %v94, %v103
  %v107 = vadd.f32 %v95, %v103
  %v108 = vadd.f32 %v96, %v103
  %v109 = vadd.f32 %v97, %v103
  %110 = vst.msk [vmem:[%s3] sm:$0xff] %vm19, %v105
  %111 = vst.msk [vmem:[%s3 + $0x8] sm:$0xff] %vm19, %v106
  %112 = vst.msk [vmem:[%s3 + $0x10] sm:$0xff] %vm19, %v107
  %113 = vst.msk [vmem:[%s3 + $0x18] sm:$0xff] %vm19, %v108
  %114 = vst.msk [vmem:[%s3 + $0x20] sm:$0xff] %vm19, %v109
  // Predicated region
  $region14: #{image_vit_forward.17} parent=0 // pred_check
    _
  $region15: #{image_vit_forward.17} parent=0 // pred_check_branch
    %116 = sbr.rel (0) target = $region17
  $region16: #{image_vit_forward.17} parent=0 // pred_region
    _
  $region17: #{image_vit_forward.17} parent=0 // pred_fallthru
    _
  // Predicated region
  $region18: #{image_vit_forward.17} parent=0 // pred_check
    _
  $region19: #{image_vit_forward.17} parent=0 // pred_check_branch
    %118 = sbr.rel (0) target = $region21
  $region20: #{image_vit_forward.17} parent=0 // pred_region
    _
  $region21: #{image_vit_forward.17} parent=0 // pred_fallthru
    _

// kernel: image_vit_forward.16
$region0: #{image_vit_forward.16}
  #allocation0 [shape = 'u32[]', space=smem, size = 0x4, offset = 0x4, fixed_abs, tag = 'smem constant byte address 0x4 - core index']
  #allocation1 [shape = 'u32[144,128]{1,0:T(1,128)}', space=vmem, size = 0x12000, scoped, tag = 'internal scratch']
  #allocation2 [shape = 'f32[32,128]{1,0:T(8,128)}', space=vmem, size = 0x4000, scoped, tag = 'scratch operand']
  %s0 = inlined_call_operand.vmem [shape: bf16[32,256], index: 0, kind: input, shape index: {}]
  %s1 = inlined_call_operand.vmem [shape: bf16[256,128], index: 1, kind: input, shape index: {}]
  %s2 = inlined_call_operand.vmem [shape: f32[1,128], index: 2, kind: input, shape index: {}]
  %s3 = inlined_call_operand.vmem [shape: f32[32,128], index: 3, kind: output, shape index: {}]
  %s4 = sld [smem:[#allocation0]]
  $region30: #{image_vit_forward.16} parent=0
    _
  %s6 = ssub.s32 1, %s4
  %s7 = scalar_select 0, %s6, %s4
  // Predicated region
  $region2: #{image_vit_forward.16} parent=0 // pred_check
    _
  $region3: #{image_vit_forward.16} parent=0 // pred_check_branch
    %9 = sbr.rel (0) target = $region5
  $region4: #{image_vit_forward.16} parent=0 // pred_region
    _
  $region5: #{image_vit_forward.16} parent=0 // pred_fallthru
    _
  // Predicated region
  $region6: #{image_vit_forward.16} parent=0 // pred_check
    _
  $region7: #{image_vit_forward.16} parent=0 // pred_check_branch
    %11 = sbr.rel (0) target = $region9
  $region8: #{image_vit_forward.16} parent=0 // pred_region
    _
  $region9: #{image_vit_forward.16} parent=0 // pred_fallthru
    _
  // Predicated region
  $region10: #{image_vit_forward.16} parent=0 // pred_check
    _
  $region11: #{image_vit_forward.16} parent=0 // pred_check_branch
    %13 = sbr.rel (0) target = $region13
  $region12: #{image_vit_forward.16} parent=0 // pred_region
    _
  $region13: #{image_vit_forward.16} parent=0 // pred_fallthru
    _
  %p15 = scmp.eq.s32.totalorder 0, 0
  // Predicated region
  $region14: #{image_vit_forward.16} parent=0 // pred_check
    %p16 = pneg %p15
  $region15: #{image_vit_forward.16} parent=0 // pred_check_branch
    %18 = sbr.rel (%p16) target = $region17
  $region16: #{image_vit_forward.16} parent=0 // pred_region
    %19 = vst [vmem:[#allocation2] sm:$0xff] 0.0
    %20 = vst [vmem:[#allocation2 + $0x8] sm:$0xff] 0.0
    %21 = vst [vmem:[#allocation2 + $0x10] sm:$0xff] 0.0
    %22 = vst [vmem:[#allocation2 + $0x18] sm:$0xff] 0.0
  $region17: #{image_vit_forward.16} parent=0 // pred_fallthru
    _
  %v23 = vld [vmem:[#allocation2] sm:$0xff]
  %v24 = vld [vmem:[#allocation2 + $0x8] sm:$0xff]
  %v25 = vld [vmem:[#allocation2 + $0x10] sm:$0xff]
  %v26 = vld [vmem:[#allocation2 + $0x18] sm:$0xff]
  %v27 = vld [vmem:[%s0] sm:$0xff]
  %v28 = vld [vmem:[%s0 + $0x8] sm:$0xff]
  %v29 = vld [vmem:[%s0 + $0x10] sm:$0xff]
  %v30 = vld [vmem:[%s0 + $0x18] sm:$0xff]
  %v31 = vld [vmem:[%s1] sm:$0xf]
  %v32 = vld [vmem:[%s1 + $0x4] sm:$0xf]
  %v33 = vld [vmem:[%s1 + $0x8] sm:$0xf]
  %v34 = vld [vmem:[%s1 + $0xc] sm:$0xf]
  %v35 = vld [vmem:[%s1 + $0x10] sm:$0xf]
  %v36 = vld [vmem:[%s1 + $0x14] sm:$0xf]
  %v37 = vld [vmem:[%s1 + $0x18] sm:$0xf]
  %v38 = vld [vmem:[%s1 + $0x1c] sm:$0xf]
  %v39 = vld [vmem:[%s1 + $0x20] sm:$0xf]
  %v40 = vld [vmem:[%s1 + $0x24] sm:$0xf]
  %v41 = vld [vmem:[%s1 + $0x28] sm:$0xf]
  %v42 = vld [vmem:[%s1 + $0x2c] sm:$0xf]
  %v43 = vld [vmem:[%s1 + $0x30] sm:$0xf]
  %v44 = vld [vmem:[%s1 + $0x34] sm:$0xf]
  %v45 = vld [vmem:[%s1 + $0x38] sm:$0xf]
  %v46 = vld [vmem:[%s1 + $0x3c] sm:$0xf]
  %v47 = vld [vmem:[%s1 + $0x40] sm:$0xf]
  %v48 = vld [vmem:[%s1 + $0x44] sm:$0xf]
  %v49 = vld [vmem:[%s1 + $0x48] sm:$0xf]
  %v50 = vld [vmem:[%s1 + $0x4c] sm:$0xf]
  %v51 = vld [vmem:[%s1 + $0x50] sm:$0xf]
  %v52 = vld [vmem:[%s1 + $0x54] sm:$0xf]
  %v53 = vld [vmem:[%s1 + $0x58] sm:$0xf]
  %v54 = vld [vmem:[%s1 + $0x5c] sm:$0xf]
  %v55 = vld [vmem:[%s1 + $0x60] sm:$0xf]
  %v56 = vld [vmem:[%s1 + $0x64] sm:$0xf]
  %v57 = vld [vmem:[%s1 + $0x68] sm:$0xf]
  %v58 = vld [vmem:[%s1 + $0x6c] sm:$0xf]
  %v59 = vld [vmem:[%s1 + $0x70] sm:$0xf]
  %v60 = vld [vmem:[%s1 + $0x74] sm:$0xf]
  %v61 = vld [vmem:[%s1 + $0x78] sm:$0xf]
  %v62 = vld [vmem:[%s1 + $0x7c] sm:$0xf]
  %v67 = vunpack.c.l.b16 %v27
  %v68 = vunpack.c.h.b16 %v27
  %v69 = vunpack.c.l.b16 %v28
  %v70 = vunpack.c.h.b16 %v28
  %v71 = vunpack.c.l.b16 %v29
  %v72 = vunpack.c.h.b16 %v29
  %v73 = vunpack.c.l.b16 %v30
  %v74 = vunpack.c.h.b16 %v30
  %v75 = vpack.c.b16 %v69, %v67
  %v76 = vpack.c.b16 %v70, %v68
  %v77 = vpack.c.b16 %v73, %v71
  %v78 = vpack.c.b16 %v74, %v72
  %v115 = vunpack.c.l.b16 %v31
  %v116 = vunpack.c.l.b16 %v32
  %v117 = vunpack.c.l.b16 %v33
  %v118 = vunpack.c.l.b16 %v34
  %v119 = vunpack.c.l.b16 %v35
  %v120 = vunpack.c.l.b16 %v36
  %v121 = vunpack.c.l.b16 %v37
  %v122 = vunpack.c.l.b16 %v38
  %v123 = vunpack.c.l.b16 %v39
  %v124 = vunpack.c.l.b16 %v40
  %v125 = vunpack.c.l.b16 %v41
  %v126 = vunpack.c.l.b16 %v42
  %v127 = vunpack.c.l.b16 %v43
  %v128 = vunpack.c.l.b16 %v44
  %v129 = vunpack.c.l.b16 %v45
  %v130 = vunpack.c.l.b16 %v46
  %v131 = vunpack.c.l.b16 %v47
  %v132 = vunpack.c.l.b16 %v48
  %v133 = vunpack.c.l.b16 %v49
  %v134 = vunpack.c.l.b16 %v50
  %v135 = vunpack.c.l.b16 %v51
  %v136 = vunpack.c.l.b16 %v52
  %v137 = vunpack.c.l.b16 %v53
  %v138 = vunpack.c.l.b16 %v54
  %v139 = vunpack.c.l.b16 %v55
  %v140 = vunpack.c.l.b16 %v56
  %v141 = vunpack.c.l.b16 %v57
  %v142 = vunpack.c.l.b16 %v58
  %v143 = vunpack.c.l.b16 %v59
  %v144 = vunpack.c.l.b16 %v60
  %v145 = vunpack.c.l.b16 %v61
  %v146 = vunpack.c.l.b16 %v62
  %v147 = vpack.c.b16 %v116, %v115
  %v148 = vpack.c.b16 %v118, %v117
  %v149 = vpack.c.b16 %v120, %v119
  %v150 = vpack.c.b16 %v122, %v121
  %v151 = vpack.c.b16 %v124, %v123
  %v152 = vpack.c.b16 %v126, %v125
  %v153 = vpack.c.b16 %v128, %v127
  %v154 = vpack.c.b16 %v130, %v129
  %v155 = vpack.c.b16 %v132, %v131
  %v156 = vpack.c.b16 %v134, %v133
  %v157 = vpack.c.b16 %v136, %v135
  %v158 = vpack.c.b16 %v138, %v137
  %v159 = vpack.c.b16 %v140, %v139
  %v160 = vpack.c.b16 %v142, %v141
  %v161 = vpack.c.b16 %v144, %v143
  %v162 = vpack.c.b16 %v146, %v145
  %179 = vmatprep.subr.bf16.mxu0 0
  %180 = vmatpush1.bf16.msra.mxu0 %v147
  %181 = vmatprep.subr.bf16.mxu0 0
  %182 = vmatpush1.bf16.msra.mxu0 %v148
  %183 = vmatprep.subr.bf16.mxu0 0
  %184 = vmatpush1.bf16.msra.mxu0 %v149
  %185 = vmatprep.subr.bf16.mxu0 0
  %186 = vmatpush1.bf16.msra.mxu0 %v150
  %187 = vmatprep.subr.bf16.mxu0 0
  %188 = vmatpush1.bf16.msra.mxu0 %v151
  %189 = vmatprep.subr.bf16.mxu0 0
  %190 = vmatpush1.bf16.msra.mxu0 %v152
  %191 = vmatprep.subr.bf16.mxu0 0
  %192 = vmatpush1.bf16.msra.mxu0 %v153
  %193 = vmatprep.subr.bf16.mxu0 0
  %194 = vmatpush1.bf16.msra.mxu0 %v154
  %195 = vmatprep.subr.bf16.mxu0 0
  %196 = vmatpush1.bf16.msra.mxu0 %v155
  %197 = vmatprep.subr.bf16.mxu0 0
  %198 = vmatpush1.bf16.msra.mxu0 %v156
  %199 = vmatprep.subr.bf16.mxu0 0
  %200 = vmatpush1.bf16.msra.mxu0 %v157
  %201 = vmatprep.subr.bf16.mxu0 0
  %202 = vmatpush1.bf16.msra.mxu0 %v158
  %203 = vmatprep.subr.bf16.mxu0 0
  %204 = vmatpush1.bf16.msra.mxu0 %v159
  %205 = vmatprep.subr.bf16.mxu0 0
  %206 = vmatpush1.bf16.msra.mxu0 %v160
  %207 = vmatprep.subr.bf16.mxu0 0
  %208 = vmatpush1.bf16.msra.mxu0 %v161
  %209 = vmatprep.subr.bf16.mxu0 0
  %210 = vmatpush1.bf16.msra.mxu0 %v162
  %211 = vmatprep.mubr.bf16.mxu0 %v76
  %212 = vmatmul.mubr.bf16.gmra.mrb[0].mxu0 %v75
  %v213 = vpop.f32.mrb[0].mxu0
  %v214 = vadd.f32 0.0, %v213
  %v215 = vpop.f32.mrb[0].mxu0
  %v216 = vpop.f32.mrb[0].mxu0
  %v217 = vadd.f32 0.0, %v216
  %v218 = vpop.f32.mrb[0].mxu0
  %219 = vmatprep.mubr.bf16.mxu0 %v78
  %220 = vmatmul.mubr.bf16.gmra.mrb[0].mxu0 %v77
  %v221 = vpop.f32.mrb[0].mxu0
  %v222 = vadd.f32 0.0, %v221
  %v223 = vpop.f32.mrb[0].mxu0
  %v224 = vpop.f32.mrb[0].mxu0
  %v225 = vadd.f32 0.0, %v224
  %v226 = vpop.f32.mrb[0].mxu0
  %227 = vdwg.mxu0
  %v228 = vadd.f32 %v23, %v214
  %v229 = vadd.f32 %v24, %v217
  %v230 = vadd.f32 %v25, %v222
  %v231 = vadd.f32 %v26, %v225
  %232 = vst [vmem:[#allocation2] sm:$0xff] %v228
  %233 = vst [vmem:[#allocation2 + $0x8] sm:$0xff] %v229
  %234 = vst [vmem:[#allocation2 + $0x10] sm:$0xff] %v230
  %235 = vst [vmem:[#allocation2 + $0x18] sm:$0xff] %v231
  // Predicated region
  $region18: #{image_vit_forward.16} parent=0 // pred_check
    %p236 = pneg %p15
  $region19: #{image_vit_forward.16} parent=0 // pred_check_branch
    %238 = sbr.rel (%p236) target = $region21
  $region20: #{image_vit_forward.16} parent=0 // pred_region
    %v239 = vld [vmem:[#allocation2] sm:$0xff]
    %v240 = vld [vmem:[#allocation2 + $0x8] sm:$0xff]
    %v241 = vld [vmem:[#allocation2 + $0x10] sm:$0xff]
    %v242 = vld [vmem:[#allocation2 + $0x18] sm:$0xff]
    %v243 = vld [vmem:[%s2] sm:$0x1]
    %v245 = vlaneseq
    %v246 = vshrl.u32 %v245, 7
    %v247 = vsub.s32 0, %v246
    %v248 = vrot.slane %v243, %v247
    %v250 = vadd.f32 %v239, %v248
    %v251 = vadd.f32 %v240, %v248
    %v252 = vadd.f32 %v241, %v248
    %v253 = vadd.f32 %v242, %v248
    %254 = vst [vmem:[%s3] sm:$0xff] %v250
    %255 = vst [vmem:[%s3 + $0x8] sm:$0xff] %v251
    %256 = vst [vmem:[%s3 + $0x10] sm:$0xff] %v252
    %257 = vst [vmem:[%s3 + $0x18] sm:$0xff] %v253
  $region21: #{image_vit_forward.16} parent=0 // pred_fallthru
    _
  // Predicated region
  $region22: #{image_vit_forward.16} parent=0 // pred_check
    _
  $region23: #{image_vit_forward.16} parent=0 // pred_check_branch
    %259 = sbr.rel (0) target = $region25
  $region24: #{image_vit_forward.16} parent=0 // pred_region
    _
  $region25: #{image_vit_forward.16} parent=0 // pred_fallthru
    _
  // Predicated region
  $region26: #{image_vit_forward.16} parent=0 // pred_check
    _
  $region27: #{image_vit_forward.16} parent=0 // pred_check_branch
    %261 = sbr.rel (0) target = $region29
  $region28: #{image_vit_forward.16} parent=0 // pred_region
    _
  $region29: #{image_vit_forward.16} parent=0 // pred_fallthru
    _

// kernel: image_vit_forward.20
$region0: #{image_vit_forward.20}
  #allocation0 [shape = 'u32[]', space=smem, size = 0x4, offset = 0x4, fixed_abs, tag = 'smem constant byte address 0x4 - core index']
  #allocation1 [shape = 'u32[144,128]{1,0:T(1,128)}', space=vmem, size = 0x12000, scoped, tag = 'internal scratch']
  #allocation2 [shape = 'f32[40,128]{1,0:T(8,128)}', space=vmem, size = 0x5000, scoped, tag = 'scratch operand']
  %s0 = inlined_call_operand.vmem [shape: bf16[40,128], index: 0, kind: input, shape index: {}]
  %s1 = inlined_call_operand.vmem [shape: bf16[128,128], index: 1, kind: input, shape index: {}]
  %s2 = inlined_call_operand.vmem [shape: f32[1,128], index: 2, kind: input, shape index: {}]
  %s3 = inlined_call_operand.vmem [shape: f32[40,128], index: 3, kind: input, shape index: {}]
  %s4 = inlined_call_operand.vmem [shape: f32[40,128], index: 4, kind: output, shape index: {}]
  %s5 = sld [smem:[#allocation0]]
  $region34: #{image_vit_forward.20} parent=0
    _
  %s7 = ssub.s32 1, %s5
  %s8 = scalar_select 0, %s7, %s5
  // Predicated region
  $region2: #{image_vit_forward.20} parent=0 // pred_check
    _
  $region3: #{image_vit_forward.20} parent=0 // pred_check_branch
    %10 = sbr.rel (0) target = $region5
  $region4: #{image_vit_forward.20} parent=0 // pred_region
    _
  $region5: #{image_vit_forward.20} parent=0 // pred_fallthru
    _
  // Predicated region
  $region6: #{image_vit_forward.20} parent=0 // pred_check
    _
  $region7: #{image_vit_forward.20} parent=0 // pred_check_branch
    %12 = sbr.rel (0) target = $region9
  $region8: #{image_vit_forward.20} parent=0 // pred_region
    _
  $region9: #{image_vit_forward.20} parent=0 // pred_fallthru
    _
  // Predicated region
  $region10: #{image_vit_forward.20} parent=0 // pred_check
    _
  $region11: #{image_vit_forward.20} parent=0 // pred_check_branch
    %14 = sbr.rel (0) target = $region13
  $region12: #{image_vit_forward.20} parent=0 // pred_region
    _
  $region13: #{image_vit_forward.20} parent=0 // pred_fallthru
    _
  // Predicated region
  $region14: #{image_vit_forward.20} parent=0 // pred_check
    _
  $region15: #{image_vit_forward.20} parent=0 // pred_check_branch
    %16 = sbr.rel (0) target = $region17
  $region16: #{image_vit_forward.20} parent=0 // pred_region
    _
  $region17: #{image_vit_forward.20} parent=0 // pred_fallthru
    _
  %p18 = scmp.eq.s32.totalorder 0, 0
  // Predicated region
  $region18: #{image_vit_forward.20} parent=0 // pred_check
    %p19 = pneg %p18
  $region19: #{image_vit_forward.20} parent=0 // pred_check_branch
    %21 = sbr.rel (%p19) target = $region21
  $region20: #{image_vit_forward.20} parent=0 // pred_region
    %22 = vst [vmem:[#allocation2] sm:$0xff] 0.0
    %23 = vst [vmem:[#allocation2 + $0x8] sm:$0xff] 0.0
    %24 = vst [vmem:[#allocation2 + $0x10] sm:$0xff] 0.0
    %25 = vst [vmem:[#allocation2 + $0x18] sm:$0xff] 0.0
    %26 = vst [vmem:[#allocation2 + $0x20] sm:$0xff] 0.0
  $region21: #{image_vit_forward.20} parent=0 // pred_fallthru
    _
  %v27 = vld [vmem:[#allocation2] sm:$0xff]
  %v28 = vld [vmem:[#allocation2 + $0x8] sm:$0xff]
  %v29 = vld [vmem:[#allocation2 + $0x10] sm:$0xff]
  %v30 = vld [vmem:[#allocation2 + $0x18] sm:$0xff]
  %v31 = vld [vmem:[#allocation2 + $0x20] sm:$0xff]
  %v32 = vld [vmem:[%s0] sm:$0xf]
  %v33 = vld [vmem:[%s0 + $0x4] sm:$0xf]
  %v34 = vld [vmem:[%s0 + $0x8] sm:$0xf]
  %v35 = vld [vmem:[%s0 + $0xc] sm:$0xf]
  %v36 = vld [vmem:[%s0 + $0x10] sm:$0xf]
  %v37 = vld [vmem:[%s1] sm:$0xf]
  %v38 = vld [vmem:[%s1 + $0x4] sm:$0xf]
  %v39 = vld [vmem:[%s1 + $0x8] sm:$0xf]
  %v40 = vld [vmem:[%s1 + $0xc] sm:$0xf]
  %v41 = vld [vmem:[%s1 + $0x10] sm:$0xf]
  %v42 = vld [vmem:[%s1 + $0x14] sm:$0xf]
  %v43 = vld [vmem:[%s1 + $0x18] sm:$0xf]
  %v44 = vld [vmem:[%s1 + $0x1c] sm:$0xf]
  %v45 = vld [vmem:[%s1 + $0x20] sm:$0xf]
  %v46 = vld [vmem:[%s1 + $0x24] sm:$0xf]
  %v47 = vld [vmem:[%s1 + $0x28] sm:$0xf]
  %v48 = vld [vmem:[%s1 + $0x2c] sm:$0xf]
  %v49 = vld [vmem:[%s1 + $0x30] sm:$0xf]
  %v50 = vld [vmem:[%s1 + $0x34] sm:$0xf]
  %v51 = vld [vmem:[%s1 + $0x38] sm:$0xf]
  %v52 = vld [vmem:[%s1 + $0x3c] sm:$0xf]
  %v58 = vunpack.c.l.b16 %v32
  %v59 = vunpack.c.l.b16 %v33
  %v60 = vunpack.c.l.b16 %v34
  %v61 = vunpack.c.l.b16 %v35
  %v62 = vunpack.c.l.b16 %v36
  %v63 = vpack.c.b16 %v59, %v58
  %v64 = vpack.c.b16 %v61, %v60
  %v65 = vpack.c.b16 %v62, %v62
  %v85 = vunpack.c.l.b16 %v37
  %v86 = vunpack.c.l.b16 %v38
  %v87 = vunpack.c.l.b16 %v39
  %v88 = vunpack.c.l.b16 %v40
  %v89 = vunpack.c.l.b16 %v41
  %v90 = vunpack.c.l.b16 %v42
  %v91 = vunpack.c.l.b16 %v43
  %v92 = vunpack.c.l.b16 %v44
  %v93 = vunpack.c.l.b16 %v45
  %v94 = vunpack.c.l.b16 %v46
  %v95 = vunpack.c.l.b16 %v47
  %v96 = vunpack.c.l.b16 %v48
  %v97 = vunpack.c.l.b16 %v49
  %v98 = vunpack.c.l.b16 %v50
  %v99 = vunpack.c.l.b16 %v51
  %v100 = vunpack.c.l.b16 %v52
  %v101 = vpack.c.b16 %v86, %v85
  %v102 = vpack.c.b16 %v88, %v87
  %v103 = vpack.c.b16 %v90, %v89
  %v104 = vpack.c.b16 %v92, %v91
  %v105 = vpack.c.b16 %v94, %v93
  %v106 = vpack.c.b16 %v96, %v95
  %v107 = vpack.c.b16 %v98, %v97
  %v108 = vpack.c.b16 %v100, %v99
  %117 = vmatprep.subr.bf16.mxu0 0
  %118 = vmatpush1.bf16.msra.mxu0 %v101
  %119 = vmatprep.subr.bf16.mxu0 0
  %120 = vmatpush1.bf16.msra.mxu0 %v102
  %121 = vmatprep.subr.bf16.mxu0 0
  %122 = vmatpush1.bf16.msra.mxu0 %v103
  %123 = vmatprep.subr.bf16.mxu0 0
  %124 = vmatpush1.bf16.msra.mxu0 %v104
  %125 = vmatprep.subr.bf16.mxu0 0
  %126 = vmatpush1.bf16.msra.mxu0 %v105
  %127 = vmatprep.subr.bf16.mxu0 0
  %128 = vmatpush1.bf16.msra.mxu0 %v106
  %129 = vmatprep.subr.bf16.mxu0 0
  %130 = vmatpush1.bf16.msra.mxu0 %v107
  %131 = vmatprep.subr.bf16.mxu0 0
  %132 = vmatpush1.bf16.msra.mxu0 %v108
  %133 = vmatprep.subr.bf16.mxu0 0
  %134 = vmatpush1.bf16.msra.mxu0 0
  %135 = vmatprep.subr.bf16.mxu0 0
  %136 = vmatpush1.bf16.msra.mxu0 0
  %137 = vmatprep.subr.bf16.mxu0 0
  %138 = vmatpush1.bf16.msra.mxu0 0
  %139 = vmatprep.subr.bf16.mxu0 0
  %140 = vmatpush1.bf16.msra.mxu0 0
  %141 = vmatprep.subr.bf16.mxu0 0
  %142 = vmatpush1.bf16.msra.mxu0 0
  %143 = vmatprep.subr.bf16.mxu0 0
  %144 = vmatpush1.bf16.msra.mxu0 0
  %145 = vmatprep.subr.bf16.mxu0 0
  %146 = vmatpush1.bf16.msra.mxu0 0
  %147 = vmatprep.subr.bf16.mxu0 0
  %148 = vmatpush1.bf16.msra.mxu0 0
  %149 = vmatprep.mubr.bf16.mxu0 0
  %150 = vmatmul.mubr.bf16.gmra.mrb[0].mxu0 %v63
  %v151 = vpop.f32.mrb[0].mxu0
  %v152 = vadd.f32 0.0, %v151
  %v153 = vpop.f32.mrb[0].mxu0
  %v154 = vpop.f32.mrb[0].mxu0
  %v155 = vadd.f32 0.0, %v154
  %v156 = vpop.f32.mrb[0].mxu0
  %157 = vmatprep.mubr.bf16.mxu0 0
  %158 = vmatmul.mubr.bf16.gmra.mrb[0].mxu0 %v64
  %v159 = vpop.f32.mrb[0].mxu0
  %v160 = vadd.f32 0.0, %v159
  %v161 = vpop.f32.mrb[0].mxu0
  %v162 = vpop.f32.mrb[0].mxu0
  %v163 = vadd.f32 0.0, %v162
  %v164 = vpop.f32.mrb[0].mxu0
  %165 = vmatprep.mubr.bf16.mxu0 0
  %166 = vmatmul.mubr.bf16.gmra.mrb[0].mxu0 %v65
  %v167 = vpop.f32.mrb[0].mxu0
  %v168 = vadd.f32 0.0, %v167
  %v169 = vpop.f32.mrb[0].mxu0
  %v170 = vpop.f32.mrb[0].mxu0
  %v171 = vpop.f32.mrb[0].mxu0
  %172 = vdwg.mxu0
  %v173 = vadd.f32 %v27, %v152
  %v174 = vadd.f32 %v28, %v155
  %v175 = vadd.f32 %v29, %v160
  %v176 = vadd.f32 %v30, %v163
  %v177 = vadd.f32 %v31, %v168
  %178 = vst [vmem:[#allocation2] sm:$0xff] %v173
  %179 = vst [vmem:[#allocation2 + $0x8] sm:$0xff] %v174
  %180 = vst [vmem:[#allocation2 + $0x10] sm:$0xff] %v175
  %181 = vst [vmem:[#allocation2 + $0x18] sm:$0xff] %v176
  %182 = vst [vmem:[#allocation2 + $0x20] sm:$0xff] %v177
  // Predicated region
  $region22: #{image_vit_forward.20} parent=0 // pred_check
    %p183 = pneg %p18
  $region23: #{image_vit_forward.20} parent=0 // pred_check_branch
    %185 = sbr.rel (%p183) target = $region25
  $region24: #{image_vit_forward.20} parent=0 // pred_region
    %v186 = vld [vmem:[#allocation2] sm:$0xff]
    %v187 = vld [vmem:[#allocation2 + $0x8] sm:$0xff]
    %v188 = vld [vmem:[#allocation2 + $0x10] sm:$0xff]
    %v189 = vld [vmem:[#allocation2 + $0x18] sm:$0xff]
    %v190 = vld [vmem:[#allocation2 + $0x20] sm:$0xff]
    %v191 = vld [vmem:[%s2] sm:$0x1]
    %v193 = vlaneseq
    %v194 = vshrl.u32 %v193, 7
    %v195 = vsub.s32 0, %v194
    %v196 = vrot.slane %v191, %v195
    %v198 = vadd.f32 %v186, %v196
    %v199 = vadd.f32 %v187, %v196
    %v200 = vadd.f32 %v188, %v196
    %v201 = vadd.f32 %v189, %v196
    %v202 = vadd.f32 %v190, %v196
    %v203 = vld [vmem:[%s3] sm:$0xff]
    %v204 = vld [vmem:[%s3 + $0x8] sm:$0xff]
    %v205 = vld [vmem:[%s3 + $0x10] sm:$0xff]
    %v206 = vld [vmem:[%s3 + $0x18] sm:$0xff]
    %v207 = vld [vmem:[%s3 + $0x20] sm:$0xff]
    %v208 = vadd.f32 %v198, %v203
    %v209 = vadd.f32 %v199, %v204
    %v210 = vadd.f32 %v200, %v205
    %v211 = vadd.f32 %v201, %v206
    %v212 = vadd.f32 %v202, %v207
    %213 = vst [vmem:[%s4] sm:$0xff] %v208
    %214 = vst [vmem:[%s4 + $0x8] sm:$0xff] %v209
    %215 = vst [vmem:[%s4 + $0x10] sm:$0xff] %v210
    %216 = vst [vmem:[%s4 + $0x18] sm:$0xff] %v211
    %217 = vst [vmem:[%s4 + $0x20] sm:$0xff] %v212
  $region25: #{image_vit_forward.20} parent=0 // pred_fallthru
    _
  // Predicated region
  $region26: #{image_vit_forward.20} parent=0 // pred_check
    _
  $region27: #{image_vit_forward.20} parent=0 // pred_check_branch
    %219 = sbr.rel (0) target = $region29
  $region28: #{image_vit_forward.20} parent=0 // pred_region
    _
  $region29: #{image_vit_forward.20} parent=0 // pred_fallthru
    _
  // Predicated region
  $region30: #{image_vit_forward.20} parent=0 // pred_check
    _
  $region31: #{image_vit_forward.20} parent=0 // pred_check_branch
    %221 = sbr.rel (0) target = $region33
  $region32: #{image_vit_forward.20} parent=0 // pred_region
    _
  $region33: #{image_vit_forward.20} parent=0 // pred_fallthru
    _

// kernel: image_vit_forward.22
$region0: #{image_vit_forward.22}
  #allocation0 [shape = 'u32[]', space=smem, size = 0x4, offset = 0x4, fixed_abs, tag = 'smem constant byte address 0x4 - core index']
  #allocation1 [shape = 'u32[144,128]{1,0:T(1,128)}', space=vmem, size = 0x12000, scoped, tag = 'internal scratch']
  #allocation2 [shape = 'f32[40,128]{1,0:T(8,128)}', space=vmem, size = 0x5000, scoped, tag = 'scratch operand']
  %s0 = inlined_call_operand.vmem [shape: bf16[40,128], index: 0, kind: input, shape index: {}]
  %s1 = inlined_call_operand.vmem [shape: bf16[128,128], index: 1, kind: input, shape index: {}]
  %s2 = inlined_call_operand.vmem [shape: f32[1,128], index: 2, kind: input, shape index: {}]
  %s3 = inlined_call_operand.vmem [shape: bf16[40,128], index: 3, kind: output, shape index: {}]
  %s4 = sld [smem:[#allocation0]]
  $region30: #{image_vit_forward.22} parent=0
    _
  %s6 = ssub.s32 1, %s4
  %s7 = scalar_select 0, %s6, %s4
  // Predicated region
  $region2: #{image_vit_forward.22} parent=0 // pred_check
    _
  $region3: #{image_vit_forward.22} parent=0 // pred_check_branch
    %9 = sbr.rel (0) target = $region5
  $region4: #{image_vit_forward.22} parent=0 // pred_region
    _
  $region5: #{image_vit_forward.22} parent=0 // pred_fallthru
    _
  // Predicated region
  $region6: #{image_vit_forward.22} parent=0 // pred_check
    _
  $region7: #{image_vit_forward.22} parent=0 // pred_check_branch
    %11 = sbr.rel (0) target = $region9
  $region8: #{image_vit_forward.22} parent=0 // pred_region
    _
  $region9: #{image_vit_forward.22} parent=0 // pred_fallthru
    _
  // Predicated region
  $region10: #{image_vit_forward.22} parent=0 // pred_check
    _
  $region11: #{image_vit_forward.22} parent=0 // pred_check_branch
    %13 = sbr.rel (0) target = $region13
  $region12: #{image_vit_forward.22} parent=0 // pred_region
    _
  $region13: #{image_vit_forward.22} parent=0 // pred_fallthru
    _
  %p15 = scmp.eq.s32.totalorder 0, 0
  // Predicated region
  $region14: #{image_vit_forward.22} parent=0 // pred_check
    %p16 = pneg %p15
  $region15: #{image_vit_forward.22} parent=0 // pred_check_branch
    %18 = sbr.rel (%p16) target = $region17
  $region16: #{image_vit_forward.22} parent=0 // pred_region
    %19 = vst [vmem:[#allocation2] sm:$0xff] 0.0
    %20 = vst [vmem:[#allocation2 + $0x8] sm:$0xff] 0.0
    %21 = vst [vmem:[#allocation2 + $0x10] sm:$0xff] 0.0
    %22 = vst [vmem:[#allocation2 + $0x18] sm:$0xff] 0.0
    %23 = vst [vmem:[#allocation2 + $0x20] sm:$0xff] 0.0
  $region17: #{image_vit_forward.22} parent=0 // pred_fallthru
    _
  %v24 = vld [vmem:[#allocation2] sm:$0xff]
  %v25 = vld [vmem:[#allocation2 + $0x8] sm:$0xff]
  %v26 = vld [vmem:[#allocation2 + $0x10] sm:$0xff]
  %v27 = vld [vmem:[#allocation2 + $0x18] sm:$0xff]
  %v28 = vld [vmem:[#allocation2 + $0x20] sm:$0xff]
  %v29 = vld [vmem:[%s0] sm:$0xf]
  %v30 = vld [vmem:[%s0 + $0x4] sm:$0xf]
  %v31 = vld [vmem:[%s0 + $0x8] sm:$0xf]
  %v32 = vld [vmem:[%s0 + $0xc] sm:$0xf]
  %v33 = vld [vmem:[%s0 + $0x10] sm:$0xf]
  %v34 = vld [vmem:[%s1] sm:$0xf]
  %v35 = vld [vmem:[%s1 + $0x4] sm:$0xf]
  %v36 = vld [vmem:[%s1 + $0x8] sm:$0xf]
  %v37 = vld [vmem:[%s1 + $0xc] sm:$0xf]
  %v38 = vld [vmem:[%s1 + $0x10] sm:$0xf]
  %v39 = vld [vmem:[%s1 + $0x14] sm:$0xf]
  %v40 = vld [vmem:[%s1 + $0x18] sm:$0xf]
  %v41 = vld [vmem:[%s1 + $0x1c] sm:$0xf]
  %v42 = vld [vmem:[%s1 + $0x20] sm:$0xf]
  %v43 = vld [vmem:[%s1 + $0x24] sm:$0xf]
  %v44 = vld [vmem:[%s1 + $0x28] sm:$0xf]
  %v45 = vld [vmem:[%s1 + $0x2c] sm:$0xf]
  %v46 = vld [vmem:[%s1 + $0x30] sm:$0xf]
  %v47 = vld [vmem:[%s1 + $0x34] sm:$0xf]
  %v48 = vld [vmem:[%s1 + $0x38] sm:$0xf]
  %v49 = vld [vmem:[%s1 + $0x3c] sm:$0xf]
  %v55 = vunpack.c.l.b16 %v29
  %v56 = vunpack.c.l.b16 %v30
  %v57 = vunpack.c.l.b16 %v31
  %v58 = vunpack.c.l.b16 %v32
  %v59 = vunpack.c.l.b16 %v33
  %v60 = vpack.c.b16 %v56, %v55
  %v61 = vpack.c.b16 %v58, %v57
  %v62 = vpack.c.b16 %v59, %v59
  %v82 = vunpack.c.l.b16 %v34
  %v83 = vunpack.c.l.b16 %v35
  %v84 = vunpack.c.l.b16 %v36
  %v85 = vunpack.c.l.b16 %v37
  %v86 = vunpack.c.l.b16 %v38
  %v87 = vunpack.c.l.b16 %v39
  %v88 = vunpack.c.l.b16 %v40
  %v89 = vunpack.c.l.b16 %v41
  %v90 = vunpack.c.l.b16 %v42
  %v91 = vunpack.c.l.b16 %v43
  %v92 = vunpack.c.l.b16 %v44
  %v93 = vunpack.c.l.b16 %v45
  %v94 = vunpack.c.l.b16 %v46
  %v95 = vunpack.c.l.b16 %v47
  %v96 = vunpack.c.l.b16 %v48
  %v97 = vunpack.c.l.b16 %v49
  %v98 = vpack.c.b16 %v83, %v82
  %v99 = vpack.c.b16 %v85, %v84
  %v100 = vpack.c.b16 %v87, %v86
  %v101 = vpack.c.b16 %v89, %v88
  %v102 = vpack.c.b16 %v91, %v90
  %v103 = vpack.c.b16 %v93, %v92
  %v104 = vpack.c.b16 %v95, %v94
  %v105 = vpack.c.b16 %v97, %v96
  %114 = vmatprep.subr.bf16.mxu0 0
  %115 = vmatpush1.bf16.msra.mxu0 %v98
  %116 = vmatprep.subr.bf16.mxu0 0
  %117 = vmatpush1.bf16.msra.mxu0 %v99
  %118 = vmatprep.subr.bf16.mxu0 0
  %119 = vmatpush1.bf16.msra.mxu0 %v100
  %120 = vmatprep.subr.bf16.mxu0 0
  %121 = vmatpush1.bf16.msra.mxu0 %v101
  %122 = vmatprep.subr.bf16.mxu0 0
  %123 = vmatpush1.bf16.msra.mxu0 %v102
  %124 = vmatprep.subr.bf16.mxu0 0
  %125 = vmatpush1.bf16.msra.mxu0 %v103
  %126 = vmatprep.subr.bf16.mxu0 0
  %127 = vmatpush1.bf16.msra.mxu0 %v104
  %128 = vmatprep.subr.bf16.mxu0 0
  %129 = vmatpush1.bf16.msra.mxu0 %v105
  %130 = vmatprep.subr.bf16.mxu0 0
  %131 = vmatpush1.bf16.msra.mxu0 0
  %132 = vmatprep.subr.bf16.mxu0 0
  %133 = vmatpush1.bf16.msra.mxu0 0
  %134 = vmatprep.subr.bf16.mxu0 0
  %135 = vmatpush1.bf16.msra.mxu0 0
  %136 = vmatprep.subr.bf16.mxu0 0
  %137 = vmatpush1.bf16.msra.mxu0 0
  %138 = vmatprep.subr.bf16.mxu0 0
  %139 = vmatpush1.bf16.msra.mxu0 0
  %140 = vmatprep.subr.bf16.mxu0 0
  %141 = vmatpush1.bf16.msra.mxu0 0
  %142 = vmatprep.subr.bf16.mxu0 0
  %143 = vmatpush1.bf16.msra.mxu0 0
  %144 = vmatprep.subr.bf16.mxu0 0
  %145 = vmatpush1.bf16.msra.mxu0 0
  %146 = vmatprep.mubr.bf16.mxu0 0
  %147 = vmatmul.mubr.bf16.gmra.mrb[0].mxu0 %v60
  %v148 = vpop.f32.mrb[0].mxu0
  %v149 = vadd.f32 0.0, %v148
  %v150 = vpop.f32.mrb[0].mxu0
  %v151 = vpop.f32.mrb[0].mxu0
  %v152 = vadd.f32 0.0, %v151
  %v153 = vpop.f32.mrb[0].mxu0
  %154 = vmatprep.mubr.bf16.mxu0 0
  %155 = vmatmul.mubr.bf16.gmra.mrb[0].mxu0 %v61
  %v156 = vpop.f32.mrb[0].mxu0
  %v157 = vadd.f32 0.0, %v156
  %v158 = vpop.f32.mrb[0].mxu0
  %v159 = vpop.f32.mrb[0].mxu0
  %v160 = vadd.f32 0.0, %v159
  %v161 = vpop.f32.mrb[0].mxu0
  %162 = vmatprep.mubr.bf16.mxu0 0
  %163 = vmatmul.mubr.bf16.gmra.mrb[0].mxu0 %v62
  %v164 = vpop.f32.mrb[0].mxu0
  %v165 = vadd.f32 0.0, %v164
  %v166 = vpop.f32.mrb[0].mxu0
  %v167 = vpop.f32.mrb[0].mxu0
  %v168 = vpop.f32.mrb[0].mxu0
  %169 = vdwg.mxu0
  %v170 = vadd.f32 %v24, %v149
  %v171 = vadd.f32 %v25, %v152
  %v172 = vadd.f32 %v26, %v157
  %v173 = vadd.f32 %v27, %v160
  %v174 = vadd.f32 %v28, %v165
  %175 = vst [vmem:[#allocation2] sm:$0xff] %v170
  %176 = vst [vmem:[#allocation2 + $0x8] sm:$0xff] %v171
  %177 = vst [vmem:[#allocation2 + $0x10] sm:$0xff] %v172
  %178 = vst [vmem:[#allocation2 + $0x18] sm:$0xff] %v173
  %179 = vst [vmem:[#allocation2 + $0x20] sm:$0xff] %v174
  // Predicated region
  $region18: #{image_vit_forward.22} parent=0 // pred_check
    %p180 = pneg %p15
  $region19: #{image_vit_forward.22} parent=0 // pred_check_branch
    %182 = sbr.rel (%p180) target = $region21
  $region20: #{image_vit_forward.22} parent=0 // pred_region
    %v183 = vld [vmem:[#allocation2] sm:$0xff]
    %v184 = vld [vmem:[#allocation2 + $0x8] sm:$0xff]
    %v185 = vld [vmem:[#allocation2 + $0x10] sm:$0xff]
    %v186 = vld [vmem:[#allocation2 + $0x18] sm:$0xff]
    %v187 = vld [vmem:[#allocation2 + $0x20] sm:$0xff]
    %v188 = vld [vmem:[%s2] sm:$0x1]
    %v190 = vlaneseq
    %v191 = vshrl.u32 %v190, 7
    %v192 = vsub.s32 0, %v191
    %v193 = vrot.slane %v188, %v192
    %v195 = vadd.f32 %v183, %v193
    %v196 = vadd.f32 %v184, %v193
    %v197 = vadd.f32 %v185, %v193
    %v198 = vadd.f32 %v186, %v193
    %v199 = vadd.f32 %v187, %v193
    %v200 = vmul.f32 %v195, 0.5
    %v201 = vmul.f32 %v196, 0.5
    %v202 = vmul.f32 %v197, 0.5
    %v203 = vmul.f32 %v198, 0.5
    %v204 = vmul.f32 %v199, 0.5
    %v205 = vmul.f32 %v195, 0.044715
    %v206 = vmul.f32 %v196, 0.044715
    %v207 = vmul.f32 %v197, 0.044715
    %v208 = vmul.f32 %v198, 0.044715
    %v209 = vmul.f32 %v199, 0.044715
    %v210 = vmul.f32 %v205, %v195
    %v211 = vmul.f32 %v206, %v196
    %v212 = vmul.f32 %v207, %v197
    %v213 = vmul.f32 %v208, %v198
    %v214 = vmul.f32 %v209, %v199
    %v215 = vmul.f32 %v210, %v195
    %v216 = vmul.f32 %v211, %v196
    %v217 = vmul.f32 %v212, %v197
    %v218 = vmul.f32 %v213, %v198
    %v219 = vmul.f32 %v214, %v199
    %v220 = vadd.f32 %v195, %v215
    %v221 = vadd.f32 %v196, %v216
    %v222 = vadd.f32 %v197, %v217
    %v223 = vadd.f32 %v198, %v218
    %v224 = vadd.f32 %v199, %v219
    %v225 = vmul.f32 %v220, 0.7978846
    %v226 = vmul.f32 %v221, 0.7978846
    %v227 = vmul.f32 %v222, 0.7978846
    %v228 = vmul.f32 %v223, 0.7978846
    %v229 = vmul.f32 %v224, 0.7978846
    %v230 = vtanh.pop %v225
    %v231 = vtanh.pop %v226
    %v232 = vtanh.pop %v227
    %v233 = vtanh.pop %v228
    %v234 = vtanh.pop %v229
    %v235 = vadd.f32 %v230, 1.0
    %v236 = vadd.f32 %v231, 1.0
    %v237 = vadd.f32 %v232, 1.0
    %v238 = vadd.f32 %v233, 1.0
    %v239 = vadd.f32 %v234, 1.0
    %v240 = vmul.f32 %v200, %v235
    %v241 = vmul.f32 %v201, %v236
    %v242 = vmul.f32 %v202, %v237
    %v243 = vmul.f32 %v203, %v238
    %v244 = vmul.f32 %v204, %v239
    %v245 = vpack.c.bf16 %v241, %v240
    %v246 = vpack.c.bf16 %v243, %v242
    %v247 = vpack.c.bf16 %v244, %v244
    %v251 = vunpack.c.l.b16 %v245
    %v252 = vunpack.c.h.b16 %v245
    %v253 = vunpack.c.l.b16 %v246
    %v254 = vunpack.c.h.b16 %v246
    %v255 = vunpack.c.l.b16 %v247
    %v256 = vpack.c.b16 %v251, %v251
    %v257 = vpack.c.b16 %v252, %v252
    %v258 = vpack.c.b16 %v253, %v253
    %v259 = vpack.c.b16 %v254, %v254
    %v260 = vpack.c.b16 %v255, %v255
    %266 = vst [vmem:[%s3] sm:$0xf] %v256
    %267 = vst [vmem:[%s3 + $0x4] sm:$0xf] %v257
    %268 = vst [vmem:[%s3 + $0x8] sm:$0xf] %v258
    %269 = vst [vmem:[%s3 + $0xc] sm:$0xf] %v259
    %270 = vst [vmem:[%s3 + $0x10] sm:$0xf] %v260
  $region21: #{image_vit_forward.22} parent=0 // pred_fallthru
    _
  // Predicated region
  $region22: #{image_vit_forward.22} parent=0 // pred_check
    _
  $region23: #{image_vit_forward.22} parent=0 // pred_check_branch
    %272 = sbr.rel (0) target = $region25
  $region24: #{image_vit_forward.22} parent=0 // pred_region
    _
  $region25: #{image_vit_forward.22} parent=0 // pred_fallthru
    _
  // Predicated region
  $region26: #{image_vit_forward.22} parent=0 // pred_check
    _
  $region27: #{image_vit_forward.22} parent=0 // pred_check_branch
    %274 = sbr.rel (0) target = $region29
  $region28: #{image_vit_forward.22} parent=0 // pred_region
    _
  $region29: #{image_vit_forward.22} parent=0 // pred_fallthru
    _

// kernel: image_vit_forward.19
$region0: #{image_vit_forward.19}
  #allocation0 [shape = 'u32[]', space=smem, size = 0x4, offset = 0x4, fixed_abs, tag = 'smem constant byte address 0x4 - core index']
  #allocation1 [shape = 'u32[144,128]{1,0:T(1,128)}', space=vmem, size = 0x12000, scoped, tag = 'internal scratch']
  %s0 = inlined_call_operand.vmem [shape: bf16[2,4,17,8], index: 0, kind: input, shape index: {}]
  %s1 = inlined_call_operand.vmem [shape: bf16[2,4,17,8], index: 1, kind: input, shape index: {}]
  %s2 = inlined_call_operand.vmem [shape: bf16[2,4,17,8], index: 2, kind: input, shape index: {}]
  %s3 = inlined_call_operand.vmem [shape: bf16[2,4,17,8], index: 3, kind: output, shape index: {}]
  %s4 = sld [smem:[#allocation0]]
  $region45: #{image_vit_forward.19} parent=0
    _
  %s6 = ssub.s32 1, %s4
  %s7 = scalar_select 0, %s6, %s4
  loop: start=0, step=1, limit=4
  $region2: #{image_vit_forward.19} parent=0 // loop_pre_header
    _
  $region3: #{image_vit_forward.19} parent=0 // loop_header
    %s9 = sphi 0, %s13
    %p10 = scmp.ge.s32.totalorder %s9, 4
    %s19 = sphi 0, %s21
    %s22 = sphi 0, %s19
    %s23 = sphi 0, %s22
    %s39 = sphi 0, %s23
    %s45 = sphi 0, %s47
    %s48 = sphi 0, %s45
    %s49 = sphi 0, %s48
    %s65 = sphi 0, %s49
    %s71 = sphi 0, %s73
    %s74 = sphi 0, %s71
    %s75 = sphi 0, %s74
    %s91 = sphi 0, %s75
    %s97 = sphi 0, %s99
    %s100 = sphi 0, %s97
    %s101 = sphi 0, %s100
    %s117 = sphi 0, %s101
  $region4: #{image_vit_forward.19} parent=0 // loop_header_branch
    %12 = sbr.rel (%p10) target = $region8
  $region5: #{image_vit_forward.19} parent=0 // loop_body
    %s14 = ssub.s32 %s9, 1
    %s15 = ssub.s32 %s9, 2
    %s16 = sadd.s32 %s9, 1
    %s17 = ssub.s32 %s9, %s16
    %p18 = scmp.eq.s32.totalorder %s17, 0
    %s20 = sadd.s32 %s19, 1
    %s21 = scalar_select %p18, %s19, %s20
    %p24 = pneg %p18
    %p25 = scmp.eq.s32.totalorder %s9, 1
    %p26 = por %p24, %p25
    %p27 = scmp.ne.s32.totalorder %s19, %s22
    %p28 = scmp.eq.s32.totalorder %s9, 0
    %p29 = por %p27, %p28
    %p30 = scmp.ne.s32.totalorder %s19, %s22
    %p31 = scmp.eq.s32.totalorder %s14, 1
    %p32 = por %p30, %p31
    %p33 = scmp.ne.s32.totalorder %s22, %s23
    %p34 = scmp.eq.s32.totalorder %s14, 0
    %p35 = por %p33, %p34
    %p36 = scmp.ne.s32.totalorder %s22, %s23
    %p37 = scmp.eq.s32.totalorder %s15, 1
    %p38 = por %p36, %p37
    %p40 = scmp.ne.s32.totalorder %s23, %s39
    %p41 = scmp.eq.s32.totalorder %s15, 0
    %p42 = por %p40, %p41
    %s43 = ssub.s32 %s9, %s16
    %p44 = scmp.eq.s32.totalorder %s43, 0
    %s46 = sadd.s32 %s45, 1
    %s47 = scalar_select %p44, %s45, %s46
    %p50 = pneg %p44
    %p51 = scmp.eq.s32.totalorder %s9, 1
    %p52 = por %p50, %p51
    %p53 = scmp.ne.s32.totalorder %s45, %s48
    %p54 = scmp.eq.s32.totalorder %s9, 0
    %p55 = por %p53, %p54
    %p56 = scmp.ne.s32.totalorder %s45, %s48
    %p57 = scmp.eq.s32.totalorder %s14, 1
    %p58 = por %p56, %p57
    %p59 = scmp.ne.s32.totalorder %s48, %s49
    %p60 = scmp.eq.s32.totalorder %s14, 0
    %p61 = por %p59, %p60
    %p62 = scmp.ne.s32.totalorder %s48, %s49
    %p63 = scmp.eq.s32.totalorder %s15, 1
    %p64 = por %p62, %p63
    %p66 = scmp.ne.s32.totalorder %s49, %s65
    %p67 = scmp.eq.s32.totalorder %s15, 0
    %p68 = por %p66, %p67
    %s69 = ssub.s32 %s9, %s16
    %p70 = scmp.eq.s32.totalorder %s69, 0
    %s72 = sadd.s32 %s71, 1
    %s73 = scalar_select %p70, %s71, %s72
    %p76 = pneg %p70
    %p77 = scmp.eq.s32.totalorder %s9, 1
    %p78 = por %p76, %p77
    %p79 = scmp.ne.s32.totalorder %s71, %s74
    %p80 = scmp.eq.s32.totalorder %s9, 0
    %p81 = por %p79, %p80
    %p82 = scmp.ne.s32.totalorder %s71, %s74
    %p83 = scmp.eq.s32.totalorder %s14, 1
    %p84 = por %p82, %p83
    %p85 = scmp.ne.s32.totalorder %s74, %s75
    %p86 = scmp.eq.s32.totalorder %s14, 0
    %p87 = por %p85, %p86
    %p88 = scmp.ne.s32.totalorder %s74, %s75
    %p89 = scmp.eq.s32.totalorder %s15, 1
    %p90 = por %p88, %p89
    %p92 = scmp.ne.s32.totalorder %s75, %s91
    %p93 = scmp.eq.s32.totalorder %s15, 0
    %p94 = por %p92, %p93
    %s95 = ssub.s32 %s9, %s16
    %p96 = scmp.eq.s32.totalorder %s95, 0
    %s98 = sadd.s32 %s97, 1
    %s99 = scalar_select %p96, %s97, %s98
    %p102 = pneg %p96
    %p103 = scmp.eq.s32.totalorder %s9, 1
    %p104 = por %p102, %p103
    %p105 = scmp.ne.s32.totalorder %s97, %s100
    %p106 = scmp.eq.s32.totalorder %s9, 0
    %p107 = por %p105, %p106
    %p108 = scmp.ne.s32.totalorder %s97, %s100
    %p109 = scmp.eq.s32.totalorder %s14, 1
    %p110 = por %p108, %p109
    %p111 = scmp.ne.s32.totalorder %s100, %s101
    %p112 = scmp.eq.s32.totalorder %s14, 0
    %p113 = por %p111, %p112
    %p114 = scmp.ne.s32.totalorder %s100, %s101
    %p115 = scmp.eq.s32.totalorder %s15, 1
    %p116 = por %p114, %p115
    %p118 = scmp.ne.s32.totalorder %s101, %s117
    %p119 = scmp.eq.s32.totalorder %s15, 0
    %p120 = por %p118, %p119
    %p121 = scmp.le.s32.totalorder 1, %s9
    %p122 = scmp.lt.s32.totalorder %s9, 3
    %p123 = pnand %p121, %p122
    %p124 = pneg %p123
    // Predicated region
    $region9: #{image_vit_forward.19} parent=5 // pred_check
      _
    $region10: #{image_vit_forward.19} parent=5 // pred_check_branch
      %126 = sbr.rel (%p123) target = $region12
    $region11: #{image_vit_forward.19} parent=5 // pred_region
      %s127 = ssub.s32 %s9, 1
    $region12: #{image_vit_forward.19} parent=5 // pred_fallthru
      _
    %p128 = scmp.lt.s32.totalorder %s9, 2
    // Predicated region
    $region13: #{image_vit_forward.19} parent=5 // pred_check
      %p129 = pneg %p128
    $region14: #{image_vit_forward.19} parent=5 // pred_check_branch
      %131 = sbr.rel (%p129) target = $region16
    $region15: #{image_vit_forward.19} parent=5 // pred_region
      // Predicated region
      $region17: #{image_vit_forward.19} parent=15 // pred_check
        %p132 = pneg %p29
      $region18: #{image_vit_forward.19} parent=15 // pred_check_branch
        %134 = sbr.rel (%p132) target = $region20
      $region19: #{image_vit_forward.19} parent=15 // pred_region
        %p135 = scmp.lt.s32.totalorder %s9, 1
        %s136 = scalar_select %p135, %s9, 1
        %s137 = smul.addr %s136, 12
        %s138 = smul.addr %s137, 4
        %s139 = scalar_lea.vmem %s0, %s138
      $region20: #{image_vit_forward.19} parent=15 // pred_fallthru
        _
      // Predicated region
      $region21: #{image_vit_forward.19} parent=15 // pred_check
        %p140 = pneg %p55
      $region22: #{image_vit_forward.19} parent=15 // pred_check_branch
        %142 = sbr.rel (%p140) target = $region24
      $region23: #{image_vit_forward.19} parent=15 // pred_region
        %p143 = scmp.lt.s32.totalorder %s9, 1
        %s144 = scalar_select %p143, %s9, 1
        %s145 = smul.addr %s144, 12
        %s146 = smul.addr %s145, 4
        %s147 = scalar_lea.vmem %s1, %s146
      $region24: #{image_vit_forward.19} parent=15 // pred_fallthru
        _
      // Predicated region
      $region25: #{image_vit_forward.19} parent=15 // pred_check
        %p148 = pneg %p81
      $region26: #{image_vit_forward.19} parent=15 // pred_check_branch
        %150 = sbr.rel (%p148) target = $region28
      $region27: #{image_vit_forward.19} parent=15 // pred_region
        %p151 = scmp.lt.s32.totalorder %s9, 1
        %s152 = scalar_select %p151, %s9, 1
        %s153 = smul.addr %s152, 12
        %s154 = smul.addr %s153, 4
        %s155 = scalar_lea.vmem %s2, %s154
      $region28: #{image_vit_forward.19} parent=15 // pred_fallthru
        _
    $region16: #{image_vit_forward.19} parent=5 // pred_fallthru
      _
    %p156 = scmp.le.s32.totalorder 1, %s9
    %p157 = scmp.lt.s32.totalorder %s9, 3
    %p158 = pnand %p156, %p157
    %p159 = pneg %p158
    // Predicated region
    $region29: #{image_vit_forward.19} parent=5 // pred_check
      _
    $region30: #{image_vit_forward.19} parent=5 // pred_check_branch
      %161 = sbr.rel (%p158) target = $region32
    $region31: #{image_vit_forward.19} parent=5 // pred_region
      %s162 = ssub.s32 %s9, 1
      %p163 = scmp.lt.s32.totalorder %s14, 1
      %s164 = scalar_select %p163, %s14, 1
      %s165 = smul.addr %s164, 12
      %s166 = smul.addr %s165, 4
      %s167 = scalar_lea.vmem %s0, %s166
      %p168 = pneg %p35
      %p169 = pneg %p32
      %p170 = scmp.lt.s32.totalorder %s14, 1
      %s171 = scalar_select %p170, %s14, 1
      %s172 = smul.addr %s171, 12
      %s173 = smul.addr %s172, 4
      %s174 = scalar_lea.vmem %s1, %s173
      %p175 = pneg %p61
      %p176 = pneg %p58
      %p177 = scmp.lt.s32.totalorder %s14, 1
      %s178 = scalar_select %p177, %s14, 1
      %s179 = smul.addr %s178, 12
      %s180 = smul.addr %s179, 4
      %s181 = scalar_lea.vmem %s2, %s180
      %p182 = pneg %p87
      %p183 = pneg %p84
      %p184 = pneg %p113
      %p185 = pneg %p110
      %p186 = scmp.lt.s32.totalorder %s14, 1
      %s187 = scalar_select %p186, %s14, 1
      %s188 = smul.addr %s187, 12
      %s189 = smul.addr %s188, 4
      %s190 = scalar_lea.vmem %s3, %s189
      %p191 = scmp.lt.s32.totalorder %s14, 1
      %s192 = scalar_select %p191, %s14, 1
      %s193 = smul.addr %s192, 12
      %s194 = smul.addr %s193, 4
      %s195 = scalar_lea.vmem %s0, %s194
      %p196 = scmp.lt.s32.totalorder %s14, 1
      %s197 = scalar_select %p196, %s14, 1
      %s198 = smul.addr %s197, 12
      %s199 = smul.addr %s198, 4
      %s200 = scalar_lea.vmem %s1, %s199
      %p201 = scmp.lt.s32.totalorder %s14, 1
      %s202 = scalar_select %p201, %s14, 1
      %s203 = smul.addr %s202, 12
      %s204 = smul.addr %s203, 4
      %s205 = scalar_lea.vmem %s2, %s204
      %p206 = scmp.lt.s32.totalorder %s14, 1
      %s207 = scalar_select %p206, %s14, 1
      %s208 = smul.addr %s207, 12
      %s209 = smul.addr %s208, 4
      %s210 = scalar_lea.vmem %s3, %s209
      %v212 = vld [vmem:[%s195] sm:$0xf]
      %v213 = vld [vmem:[%s195 + $0x4] sm:$0xf]
      %v214 = vld [vmem:[%s195 + $0x8] sm:$0x1]
      %v215 = vld [vmem:[%s195 + $0xc] sm:$0xf]
      %v216 = vld [vmem:[%s195 + $0x10] sm:$0xf]
      %v217 = vld [vmem:[%s195 + $0x14] sm:$0x1]
      %v218 = vld [vmem:[%s195 + $0x18] sm:$0xf]
      %v219 = vld [vmem:[%s195 + $0x1c] sm:$0xf]
      %v220 = vld [vmem:[%s195 + $0x20] sm:$0x1]
      %v221 = vld [vmem:[%s195 + $0x24] sm:$0xf]
      %v222 = vld [vmem:[%s195 + $0x28] sm:$0xf]
      %v223 = vld [vmem:[%s195 + $0x2c] sm:$0x1]
      %v224 = vld [vmem:[%s200] sm:$0xf]
      %v225 = vld [vmem:[%s200 + $0x4] sm:$0xf]
      %v226 = vld [vmem:[%s200 + $0x8] sm:$0x1]
      %v227 = vld [vmem:[%s200 + $0xc] sm:$0xf]
      %v228 = vld [vmem:[%s200 + $0x10] sm:$0xf]
      %v229 = vld [vmem:[%s200 + $0x14] sm:$0x1]
      %v230 = vld [vmem:[%s200 + $0x18] sm:$0xf]
      %v231 = vld [vmem:[%s200 + $0x1c] sm:$0xf]
      %v232 = vld [vmem:[%s200 + $0x20] sm:$0x1]
      %v233 = vld [vmem:[%s200 + $0x24] sm:$0xf]
      %v234 = vld [vmem:[%s200 + $0x28] sm:$0xf]
      %v235 = vld [vmem:[%s200 + $0x2c] sm:$0x1]
      %v236 = vld [vmem:[%s205] sm:$0xf]
      %v237 = vld [vmem:[%s205 + $0x4] sm:$0xf]
      %v238 = vld [vmem:[%s205 + $0x8] sm:$0x1]
      %v239 = vld [vmem:[%s205 + $0xc] sm:$0xf]
      %v240 = vld [vmem:[%s205 + $0x10] sm:$0xf]
      %v241 = vld [vmem:[%s205 + $0x14] sm:$0x1]
      %v242 = vld [vmem:[%s205 + $0x18] sm:$0xf]
      %v243 = vld [vmem:[%s205 + $0x1c] sm:$0xf]
      %v244 = vld [vmem:[%s205 + $0x20] sm:$0x1]
      %v245 = vld [vmem:[%s205 + $0x24] sm:$0xf]
      %v246 = vld [vmem:[%s205 + $0x28] sm:$0xf]
      %v247 = vld [vmem:[%s205 + $0x2c] sm:$0x1]
      %v251 = vunpack.c.l.b16 %v212
      %v252 = vunpack.c.l.b16 %v213
      %v253 = vunpack.c.l.b16 %v214
      %v254 = vpack.c.b16 %v252, %v251
      %v255 = vpack.c.b16 %v253, %v253
      %v259 = vunpack.c.l.b16 %v224
      %v260 = vunpack.c.l.b16 %v225
      %v261 = vunpack.c.l.b16 %v226
      %v262 = vpack.c.b16 %v260, %v259
      %v263 = vpack.c.b16 %v261, %v261
      %vm264 = vcmask 64512
      %v266 = vsel %vm264, %v254, 0
      %v269 = vsel %vm264, %v255, 0
      %v272 = vsel %vm264, %v262, 0
      %v275 = vsel %vm264, %v263, 0
      %277 = vmatprep.subr.bf16.mxu0 0
      %278 = vmatpush1.bf16.xpose.msra.mxu0 %v272
      %279 = vmatprep.subr.bf16.mxu0 0
      %280 = vmatpush1.bf16.xpose.msra.mxu0 %v275
      %281 = vmatprep.subr.bf16.mxu0 0
      %282 = vmatpush1.bf16.xpose.msra.mxu0 0
      %283 = vmatprep.subr.bf16.mxu0 0
      %284 = vmatpush1.bf16.xpose.msra.mxu0 0
      %285 = vmatprep.subr.bf16.mxu0 0
      %286 = vmatpush1.bf16.xpose.msra.mxu0 0
      %287 = vmatprep.subr.bf16.mxu0 0
      %288 = vmatpush1.bf16.xpose.msra.mxu0 0
      %289 = vmatprep.subr.bf16.mxu0 0
      %290 = vmatpush1.bf16.xpose.msra.mxu0 0
      %291 = vmatprep.subr.bf16.mxu0 0
      %292 = vmatpush1.bf16.xpose.msra.mxu0 0
      %293 = vmatprep.subr.bf16.mxu0 0
      %294 = vmatpush1.bf16.xpose.msra.mxu0 0
      %295 = vmatprep.subr.bf16.mxu0 0
      %296 = vmatpush1.bf16.xpose.msra.mxu0 0
      %297 = vmatprep.subr.bf16.mxu0 0
      %298 = vmatpush1.bf16.xpose.msra.mxu0 0
      %299 = vmatprep.subr.bf16.mxu0 0
      %300 = vmatpush1.bf16.xpose.msra.mxu0 0
      %301 = vmatprep.subr.bf16.mxu0 0
      %302 = vmatpush1.bf16.xpose.msra.mxu0 0
      %303 = vmatprep.subr.bf16.mxu0 0
      %304 = vmatpush1.bf16.xpose.msra.mxu0 0
      %305 = vmatprep.subr.bf16.mxu0 0
      %306 = vmatpush1.bf16.xpose.msra.mxu0 0
      %307 = vmatprep.subr.bf16.mxu0 0
      %308 = vmatpush1.bf16.xpose.msra.mxu0 0
      %309 = vmatprep.mubr.bf16.mxu0 0
      %310 = vmatmul.mubr.bf16.gmra.mrb[0].mxu0 %v266
      %v311 = vpop.f32.mrb[0].mxu0
      %v312 = vadd.f32 0.0, %v311
      %v313 = vpop.f32.mrb[0].mxu0
      %v314 = vpop.f32.mrb[0].mxu0
      %v315 = vadd.f32 0.0, %v314
      %v316 = vpop.f32.mrb[0].mxu0
      %317 = vmatprep.mubr.bf16.mxu0 0
      %318 = vmatmul.mubr.bf16.gmra.mrb[0].mxu0 %v269
      %v319 = vpop.f32.mrb[0].mxu0
      %v320 = vadd.f32 0.0, %v319
      %v321 = vpop.f32.mrb[0].mxu0
      %v322 = vpop.f32.mrb[0].mxu0
      %v323 = vpop.f32.mrb[0].mxu0
      %324 = vdwg.mxu0
      %v328 = vunpack.c.l.b16 %v215
      %v329 = vunpack.c.l.b16 %v216
      %v330 = vunpack.c.l.b16 %v217
      %v331 = vpack.c.b16 %v329, %v328
      %v332 = vpack.c.b16 %v330, %v330
      %v336 = vunpack.c.l.b16 %v227
      %v337 = vunpack.c.l.b16 %v228
      %v338 = vunpack.c.l.b16 %v229
      %v339 = vpack.c.b16 %v337, %v336
      %v340 = vpack.c.b16 %v338, %v338
      %v342 = vsel %vm264, %v331, 0
      %v345 = vsel %vm264, %v332, 0
      %v348 = vsel %vm264, %v339, 0
      %v351 = vsel %vm264, %v340, 0
      %353 = vmatprep.subr.bf16.mxu0 0
      %354 = vmatpush1.bf16.xpose.msra.mxu0 %v348
      %355 = vmatprep.subr.bf16.mxu0 0
      %356 = vmatpush1.bf16.xpose.msra.mxu0 %v351
      %357 = vmatprep.subr.bf16.mxu0 0
      %358 = vmatpush1.bf16.xpose.msra.mxu0 0
      %359 = vmatprep.subr.bf16.mxu0 0
      %360 = vmatpush1.bf16.xpose.msra.mxu0 0
      %361 = vmatprep.subr.bf16.mxu0 0
      %362 = vmatpush1.bf16.xpose.msra.mxu0 0
      %363 = vmatprep.subr.bf16.mxu0 0
      %364 = vmatpush1.bf16.xpose.msra.mxu0 0
      %365 = vmatprep.subr.bf16.mxu0 0
      %366 = vmatpush1.bf16.xpose.msra.mxu0 0
      %367 = vmatprep.subr.bf16.mxu0 0
      %368 = vmatpush1.bf16.xpose.msra.mxu0 0
      %369 = vmatprep.subr.bf16.mxu0 0
      %370 = vmatpush1.bf16.xpose.msra.mxu0 0
      %371 = vmatprep.subr.bf16.mxu0 0
      %372 = vmatpush1.bf16.xpose.msra.mxu0 0
      %373 = vmatprep.subr.bf16.mxu0 0
      %374 = vmatpush1.bf16.xpose.msra.mxu0 0
      %375 = vmatprep.subr.bf16.mxu0 0
      %376 = vmatpush1.bf16.xpose.msra.mxu0 0
      %377 = vmatprep.subr.bf16.mxu0 0
      %378 = vmatpush1.bf16.xpose.msra.mxu0 0
      %379 = vmatprep.subr.bf16.mxu0 0
      %380 = vmatpush1.bf16.xpose.msra.mxu0 0
      %381 = vmatprep.subr.bf16.mxu0 0
      %382 = vmatpush1.bf16.xpose.msra.mxu0 0
      %383 = vmatprep.subr.bf16.mxu0 0
      %384 = vmatpush1.bf16.xpose.msra.mxu0 0
      %385 = vmatprep.mubr.bf16.mxu0 0
      %386 = vmatmul.mubr.bf16.gmra.mrb[0].mxu0 %v342
      %v387 = vpop.f32.mrb[0].mxu0
      %v388 = vadd.f32 0.0, %v387
      %v389 = vpop.f32.mrb[0].mxu0
      %v390 = vpop.f32.mrb[0].mxu0
      %v391 = vadd.f32 0.0, %v390
      %v392 = vpop.f32.mrb[0].mxu0
      %393 = vmatprep.mubr.bf16.mxu0 0
      %394 = vmatmul.mubr.bf16.gmra.mrb[0].mxu0 %v345
      %v395 = vpop.f32.mrb[0].mxu0
      %v396 = vadd.f32 0.0, %v395
      %v397 = vpop.f32.mrb[0].mxu0
      %v398 = vpop.f32.mrb[0].mxu0
      %v399 = vpop.f32.mrb[0].mxu0
      %400 = vdwg.mxu0
      %v404 = vunpack.c.l.b16 %v218
      %v405 = vunpack.c.l.b16 %v219
      %v406 = vunpack.c.l.b16 %v220
      %v407 = vpack.c.b16 %v405, %v404
      %v408 = vpack.c.b16 %v406, %v406
      %v412 = vunpack.c.l.b16 %v230
      %v413 = vunpack.c.l.b16 %v231
      %v414 = vunpack.c.l.b16 %v232
      %v415 = vpack.c.b16 %v413, %v412
      %v416 = vpack.c.b16 %v414, %v414
      %v418 = vsel %vm264, %v407, 0
      %v421 = vsel %vm264, %v408, 0
      %v424 = vsel %vm264, %v415, 0
      %v427 = vsel %vm264, %v416, 0
      %429 = vmatprep.subr.bf16.mxu0 0
      %430 = vmatpush1.bf16.xpose.msra.mxu0 %v424
      %431 = vmatprep.subr.bf16.mxu0 0
      %432 = vmatpush1.bf16.xpose.msra.mxu0 %v427
      %433 = vmatprep.subr.bf16.mxu0 0
      %434 = vmatpush1.bf16.xpose.msra.mxu0 0
      %435 = vmatprep.subr.bf16.mxu0 0
      %436 = vmatpush1.bf16.xpose.msra.mxu0 0
      %437 = vmatprep.subr.bf16.mxu0 0
      %438 = vmatpush1.bf16.xpose.msra.mxu0 0
      %439 = vmatprep.subr.bf16.mxu0 0
      %440 = vmatpush1.bf16.xpose.msra.mxu0 0
      %441 = vmatprep.subr.bf16.mxu0 0
      %442 = vmatpush1.bf16.xpose.msra.mxu0 0
      %443 = vmatprep.subr.bf16.mxu0 0
      %444 = vmatpush1.bf16.xpose.msra.mxu0 0
      %445 = vmatprep.subr.bf16.mxu0 0
      %446 = vmatpush1.bf16.xpose.msra.mxu0 0
      %447 = vmatprep.subr.bf16.mxu0 0
      %448 = vmatpush1.bf16.xpose.msra.mxu0 0
      %449 = vmatprep.subr.bf16.mxu0 0
      %450 = vmatpush1.bf16.xpose.msra.mxu0 0
      %451 = vmatprep.subr.bf16.mxu0 0
      %452 = vmatpush1.bf16.xpose.msra.mxu0 0
      %453 = vmatprep.subr.bf16.mxu0 0
      %454 = vmatpush1.bf16.xpose.msra.mxu0 0
      %455 = vmatprep.subr.bf16.mxu0 0
      %456 = vmatpush1.bf16.xpose.msra.mxu0 0
      %457 = vmatprep.subr.bf16.mxu0 0
      %458 = vmatpush1.bf16.xpose.msra.mxu0 0
      %459 = vmatprep.subr.bf16.mxu0 0
      %460 = vmatpush1.bf16.xpose.msra.mxu0 0
      %461 = vmatprep.mubr.bf16.mxu0 0
      %462 = vmatmul.mubr.bf16.gmra.mrb[0].mxu0 %v418
      %v463 = vpop.f32.mrb[0].mxu0
      %v464 = vadd.f32 0.0, %v463
      %v465 = vpop.f32.mrb[0].mxu0
      %v466 = vpop.f32.mrb[0].mxu0
      %v467 = vadd.f32 0.0, %v466
      %v468 = vpop.f32.mrb[0].mxu0
      %469 = vmatprep.mubr.bf16.mxu0 0
      %470 = vmatmul.mubr.bf16.gmra.mrb[0].mxu0 %v421
      %v471 = vpop.f32.mrb[0].mxu0
      %v472 = vadd.f32 0.0, %v471
      %v473 = vpop.f32.mrb[0].mxu0
      %v474 = vpop.f32.mrb[0].mxu0
      %v475 = vpop.f32.mrb[0].mxu0
      %476 = vdwg.mxu0
      %v480 = vunpack.c.l.b16 %v221
      %v481 = vunpack.c.l.b16 %v222
      %v482 = vunpack.c.l.b16 %v223
      %v483 = vpack.c.b16 %v481, %v480
      %v484 = vpack.c.b16 %v482, %v482
      %v488 = vunpack.c.l.b16 %v233
      %v489 = vunpack.c.l.b16 %v234
      %v490 = vunpack.c.l.b16 %v235
      %v491 = vpack.c.b16 %v489, %v488
      %v492 = vpack.c.b16 %v490, %v490
      %v494 = vsel %vm264, %v483, 0
      %v497 = vsel %vm264, %v484, 0
      %v500 = vsel %vm264, %v491, 0
      %v503 = vsel %vm264, %v492, 0
      %505 = vmatprep.subr.bf16.mxu0 0
      %506 = vmatpush1.bf16.xpose.msra.mxu0 %v500
      %507 = vmatprep.subr.bf16.mxu0 0
      %508 = vmatpush1.bf16.xpose.msra.mxu0 %v503
      %509 = vmatprep.subr.bf16.mxu0 0
      %510 = vmatpush1.bf16.xpose.msra.mxu0 0
      %511 = vmatprep.subr.bf16.mxu0 0
      %512 = vmatpush1.bf16.xpose.msra.mxu0 0
      %513 = vmatprep.subr.bf16.mxu0 0
      %514 = vmatpush1.bf16.xpose.msra.mxu0 0
      %515 = vmatprep.subr.bf16.mxu0 0
      %516 = vmatpush1.bf16.xpose.msra.mxu0 0
      %517 = vmatprep.subr.bf16.mxu0 0
      %518 = vmatpush1.bf16.xpose.msra.mxu0 0
      %519 = vmatprep.subr.bf16.mxu0 0
      %520 = vmatpush1.bf16.xpose.msra.mxu0 0
      %521 = vmatprep.subr.bf16.mxu0 0
      %522 = vmatpush1.bf16.xpose.msra.mxu0 0
      %523 = vmatprep.subr.bf16.mxu0 0
      %524 = vmatpush1.bf16.xpose.msra.mxu0 0
      %525 = vmatprep.subr.bf16.mxu0 0
      %526 = vmatpush1.bf16.xpose.msra.mxu0 0
      %527 = vmatprep.subr.bf16.mxu0 0
      %528 = vmatpush1.bf16.xpose.msra.mxu0 0
      %529 = vmatprep.subr.bf16.mxu0 0
      %530 = vmatpush1.bf16.xpose.msra.mxu0 0
      %531 = vmatprep.subr.bf16.mxu0 0
      %532 = vmatpush1.bf16.xpose.msra.mxu0 0
      %533 = vmatprep.subr.bf16.mxu0 0
      %534 = vmatpush1.bf16.xpose.msra.mxu0 0
      %535 = vmatprep.subr.bf16.mxu0 0
      %536 = vmatpush1.bf16.xpose.msra.mxu0 0
      %537 = vmatprep.mubr.bf16.mxu0 0
      %538 = vmatmul.mubr.bf16.gmra.mrb[0].mxu0 %v494
      %v539 = vpop.f32.mrb[0].mxu0
      %v540 = vadd.f32 0.0, %v539
      %v541 = vpop.f32.mrb[0].mxu0
      %v542 = vpop.f32.mrb[0].mxu0
      %v543 = vadd.f32 0.0, %v542
      %v544 = vpop.f32.mrb[0].mxu0
      %545 = vmatprep.mubr.bf16.mxu0 0
      %546 = vmatmul.mubr.bf16.gmra.mrb[0].mxu0 %v497
      %v547 = vpop.f32.mrb[0].mxu0
      %v548 = vadd.f32 0.0, %v547
      %v549 = vpop.f32.mrb[0].mxu0
      %v550 = vpop.f32.mrb[0].mxu0
      %v551 = vpop.f32.mrb[0].mxu0
      %552 = vdwg.mxu0
      %v553 = vmul.f32 %v312, 0.35355338
      %v554 = vmul.f32 %v315, 0.35355338
      %v555 = vmul.f32 %v320, 0.35355338
      %v556 = vmul.f32 %v388, 0.35355338
      %v557 = vmul.f32 %v391, 0.35355338
      %v558 = vmul.f32 %v396, 0.35355338
      %v559 = vmul.f32 %v464, 0.35355338
      %v560 = vmul.f32 %v467, 0.35355338
      %v561 = vmul.f32 %v472, 0.35355338
      %v562 = vmul.f32 %v540, 0.35355338
      %v563 = vmul.f32 %v543, 0.35355338
      %v564 = vmul.f32 %v548, 0.35355338
      %vm565 = vcmask 138240
      %v566 = vsel %vm565, %v553, -inf
      %567 = vmax.xlane.f32.xlu0 %v566
      %v568 = vpop.xlane.xlu0 %567
      %v569 = vsel %vm565, %v554, -inf
      %570 = vmax.xlane.f32.xlu0 %v569
      %v571 = vpop.xlane.xlu0 %570
      %vm572 = vcmask 131072
      %v573 = vsel %vm572, %v555, -inf
      %574 = vmax.xlane.f32.xlu0 %v573
      %v575 = vpop.xlane.xlu0 %574
      %v576 = vsel %vm565, %v556, -inf
      %577 = vmax.xlane.f32.xlu0 %v576
      %v578 = vpop.xlane.xlu0 %577
      %v579 = vsel %vm565, %v557, -inf
      %580 = vmax.xlane.f32.xlu0 %v579
      %v581 = vpop.xlane.xlu0 %580
      %v582 = vsel %vm572, %v558, -inf
      %583 = vmax.xlane.f32.xlu0 %v582
      %v584 = vpop.xlane.xlu0 %583
      %v585 = vsel %vm565, %v559, -inf
      %586 = vmax.xlane.f32.xlu0 %v585
      %v587 = vpop.xlane.xlu0 %586
      %v588 = vsel %vm565, %v560, -inf
      %589 = vmax.xlane.f32.xlu0 %v588
      %v590 = vpop.xlane.xlu0 %589
      %v591 = vsel %vm572, %v561, -inf
      %592 = vmax.xlane.f32.xlu0 %v591
      %v593 = vpop.xlane.xlu0 %592
      %v594 = vsel %vm565, %v562, -inf
      %595 = vmax.xlane.f32.xlu0 %v594
      %v596 = vpop.xlane.xlu0 %595
      %v597 = vsel %vm565, %v563, -inf
      %598 = vmax.xlane.f32.xlu0 %v597
      %v599 = vpop.xlane.xlu0 %598
      %v600 = vsel %vm572, %v564, -inf
      %601 = vmax.xlane.f32.xlu0 %v600
      %v602 = vpop.xlane.xlu0 %601
      %v603 = vsub.f32 %v553, %v568
      %v604 = vsub.f32 %v554, %v571
      %v605 = vsub.f32 %v555, %v575
      %v606 = vsub.f32 %v556, %v578
      %v607 = vsub.f32 %v557, %v581
      %v608 = vsub.f32 %v558, %v584
      %v609 = vsub.f32 %v559, %v587
      %v610 = vsub.f32 %v560, %v590
      %v611 = vsub.f32 %v561, %v593
      %v612 = vsub.f32 %v562, %v596
      %v613 = vsub.f32 %v563, %v599
      %v614 = vsub.f32 %v564, %v602
      %v615 = vmul.f32 %v603, 1.442695
      %v616 = vpow.pop %v615
      %v617 = vmul.f32 %v604, 1.442695
      %v618 = vpow.pop %v617
      %v619 = vmul.f32 %v605, 1.442695
      %v620 = vpow.pop %v619
      %v621 = vmul.f32 %v606, 1.442695
      %v622 = vpow.pop %v621
      %v623 = vmul.f32 %v607, 1.442695
      %v624 = vpow.pop %v623
      %v625 = vmul.f32 %v608, 1.442695
      %v626 = vpow.pop %v625
      %v627 = vmul.f32 %v609, 1.442695
      %v628 = vpow.pop %v627
      %v629 = vmul.f32 %v610, 1.442695
      %v630 = vpow.pop %v629
      %v631 = vmul.f32 %v611, 1.442695
      %v632 = vpow.pop %v631
      %v633 = vmul.f32 %v612, 1.442695
      %v634 = vpow.pop %v633
      %v635 = vmul.f32 %v613, 1.442695
      %v636 = vpow.pop %v635
      %v637 = vmul.f32 %v614, 1.442695
      %v638 = vpow.pop %v637
      %v639 = vsel %vm565, %v616, 0.0
      %640 = vadd.xlane.f32.xlu0 %v639
      %v641 = vpop.xlane.xlu0 %640
      %v642 = vsel %vm565, %v618, 0.0
      %643 = vadd.xlane.f32.xlu0 %v642
      %v644 = vpop.xlane.xlu0 %643
      %v645 = vsel %vm572, %v620, 0.0
      %646 = vadd.xlane.f32.xlu0 %v645
      %v647 = vpop.xlane.xlu0 %646
      %v648 = vsel %vm565, %v622, 0.0
      %649 = vadd.xlane.f32.xlu0 %v648
      %v650 = vpop.xlane.xlu0 %649
      %v651 = vsel %vm565, %v624, 0.0
      %652 = vadd.xlane.f32.xlu0 %v651
      %v653 = vpop.xlane.xlu0 %652
      %v654 = vsel %vm572, %v626, 0.0
      %655 = vadd.xlane.f32.xlu0 %v654
      %v656 = vpop.xlane.xlu0 %655
      %v657 = vsel %vm565, %v628, 0.0
      %658 = vadd.xlane.f32.xlu0 %v657
      %v659 = vpop.xlane.xlu0 %658
      %v660 = vsel %vm565, %v630, 0.0
      %661 = vadd.xlane.f32.xlu0 %v660
      %v662 = vpop.xlane.xlu0 %661
      %v663 = vsel %vm572, %v632, 0.0
      %664 = vadd.xlane.f32.xlu0 %v663
      %v665 = vpop.xlane.xlu0 %664
      %v666 = vsel %vm565, %v634, 0.0
      %667 = vadd.xlane.f32.xlu0 %v666
      %v668 = vpop.xlane.xlu0 %667
      %v669 = vsel %vm565, %v636, 0.0
      %670 = vadd.xlane.f32.xlu0 %v669
      %v671 = vpop.xlane.xlu0 %670
      %v672 = vsel %vm572, %v638, 0.0
      %673 = vadd.xlane.f32.xlu0 %v672
      %v674 = vpop.xlane.xlu0 %673
      %v675 = vrcp.pop %v641
      %v676 = vrcp.pop %v644
      %v677 = vrcp.pop %v647
      %v678 = vrcp.pop %v650
      %v679 = vrcp.pop %v653
      %v680 = vrcp.pop %v656
      %v681 = vrcp.pop %v659
      %v682 = vrcp.pop %v662
      %v683 = vrcp.pop %v665
      %v684 = vrcp.pop %v668
      %v685 = vrcp.pop %v671
      %v686 = vrcp.pop %v674
      %v687 = vmul.f32 %v616, %v675
      %v688 = vmul.f32 %v618, %v676
      %v689 = vmul.f32 %v620, %v677
      %v690 = vmul.f32 %v622, %v678
      %v691 = vmul.f32 %v624, %v679
      %v692 = vmul.f32 %v626, %v680
      %v693 = vmul.f32 %v628, %v681
      %v694 = vmul.f32 %v630, %v682
      %v695 = vmul.f32 %v632, %v683
      %v696 = vmul.f32 %v634, %v684
      %v697 = vmul.f32 %v636, %v685
      %v698 = vmul.f32 %v638, %v686
      %v699 = vpack.c.bf16 %v688, %v687
      %v700 = vpack.c.bf16 %v689, %v689
      %v701 = vpack.c.bf16 %v691, %v690
      %v702 = vpack.c.bf16 %v692, %v692
      %v703 = vpack.c.bf16 %v694, %v693
      %v704 = vpack.c.bf16 %v695, %v695
      %v705 = vpack.c.bf16 %v697, %v696
      %v706 = vpack.c.bf16 %v698, %v698
      %v710 = vunpack.c.l.b16 %v236
      %v711 = vunpack.c.l.b16 %v237
      %v712 = vunpack.c.l.b16 %v238
      %v713 = vpack.c.b16 %v711, %v710
      %v714 = vpack.c.b16 %v712, %v712
      %v717 = vsel %vm565, %v699, 0
      %v720 = vsel %vm565, %v700, 0
      %vm722 = vcmask 1040384
      %v723 = vsel 0, 4294967295, 65535
      %v724 = vsel %vm722, %v723, 0
      %v726 = vand.u32 %v714, %v724
      %728 = vmatprep.subr.bf16.mxu0 0
      %729 = vmatpush1.bf16.msra.mxu0 %v713
      %730 = vmatprep.subr.bf16.mxu0 0
      %731 = vmatpush1.bf16.msra.mxu0 %v726
      %732 = vmatprep.subr.bf16.mxu0 0
      %733 = vmatpush1.bf16.msra.mxu0 0
      %734 = vmatprep.subr.bf16.mxu0 0
      %735 = vmatpush1.bf16.msra.mxu0 0
      %736 = vmatprep.subr.bf16.mxu0 0
      %737 = vmatpush1.bf16.msra.mxu0 0
      %738 = vmatprep.subr.bf16.mxu0 0
      %739 = vmatpush1.bf16.msra.mxu0 0
      %740 = vmatprep.subr.bf16.mxu0 0
      %741 = vmatpush1.bf16.msra.mxu0 0
      %742 = vmatprep.subr.bf16.mxu0 0
      %743 = vmatpush1.bf16.msra.mxu0 0
      %744 = vmatprep.subr.bf16.mxu0 0
      %745 = vmatpush1.bf16.msra.mxu0 0
      %746 = vmatprep.subr.bf16.mxu0 0
      %747 = vmatpush1.bf16.msra.mxu0 0
      %748 = vmatprep.subr.bf16.mxu0 0
      %749 = vmatpush1.bf16.msra.mxu0 0
      %750 = vmatprep.subr.bf16.mxu0 0
      %751 = vmatpush1.bf16.msra.mxu0 0
      %752 = vmatprep.subr.bf16.mxu0 0
      %753 = vmatpush1.bf16.msra.mxu0 0
      %754 = vmatprep.subr.bf16.mxu0 0
      %755 = vmatpush1.bf16.msra.mxu0 0
      %756 = vmatprep.subr.bf16.mxu0 0
      %757 = vmatpush1.bf16.msra.mxu0 0
      %758 = vmatprep.subr.bf16.mxu0 0
      %759 = vmatpush1.bf16.msra.mxu0 0
      %760 = vmatprep.mubr.bf16.mxu0 0
      %761 = vmatmul.mubr.bf16.gmra.mrb[0].mxu0 %v717
      %v762 = vpop.f32.mrb[0].mxu0
      %v763 = vadd.f32 0.0, %v762
      %v764 = vpop.f32.mrb[0].mxu0
      %v765 = vpop.f32.mrb[0].mxu0
      %v766 = vadd.f32 0.0, %v765
      %v767 = vpop.f32.mrb[0].mxu0
      %768 = vmatprep.mubr.bf16.mxu0 0
      %769 = vmatmul.mubr.bf16.gmra.mrb[0].mxu0 %v720
      %v770 = vpop.f32.mrb[0].mxu0
      %v771 = vadd.f32 0.0, %v770
      %v772 = vpop.f32.mrb[0].mxu0
      %v773 = vpop.f32.mrb[0].mxu0
      %v774 = vpop.f32.mrb[0].mxu0
      %775 = vdwg.mxu0
      %v779 = vunpack.c.l.b16 %v239
      %v780 = vunpack.c.l.b16 %v240
      %v781 = vunpack.c.l.b16 %v241
      %v782 = vpack.c.b16 %v780, %v779
      %v783 = vpack.c.b16 %v781, %v781
      %v786 = vsel %vm565, %v701, 0
      %v789 = vsel %vm565, %v702, 0
      %v792 = vand.u32 %v783, %v724
      %794 = vmatprep.subr.bf16.mxu0 0
      %795 = vmatpush1.bf16.msra.mxu0 %v782
      %796 = vmatprep.subr.bf16.mxu0 0
      %797 = vmatpush1.bf16.msra.mxu0 %v792
      %798 = vmatprep.subr.bf16.mxu0 0
      %799 = vmatpush1.bf16.msra.mxu0 0
      %800 = vmatprep.subr.bf16.mxu0 0
      %801 = vmatpush1.bf16.msra.mxu0 0
      %802 = vmatprep.subr.bf16.mxu0 0
      %803 = vmatpush1.bf16.msra.mxu0 0
      %804 = vmatprep.subr.bf16.mxu0 0
      %805 = vmatpush1.bf16.msra.mxu0 0
      %806 = vmatprep.subr.bf16.mxu0 0
      %807 = vmatpush1.bf16.msra.mxu0 0
      %808 = vmatprep.subr.bf16.mxu0 0
      %809 = vmatpush1.bf16.msra.mxu0 0
      %810 = vmatprep.subr.bf16.mxu0 0
      %811 = vmatpush1.bf16.msra.mxu0 0
      %812 = vmatprep.subr.bf16.mxu0 0
      %813 = vmatpush1.bf16.msra.mxu0 0
      %814 = vmatprep.subr.bf16.mxu0 0
      %815 = vmatpush1.bf16.msra.mxu0 0
      %816 = vmatprep.subr.bf16.mxu0 0
      %817 = vmatpush1.bf16.msra.mxu0 0
      %818 = vmatprep.subr.bf16.mxu0 0
      %819 = vmatpush1.bf16.msra.mxu0 0
      %820 = vmatprep.subr.bf16.mxu0 0
      %821 = vmatpush1.bf16.msra.mxu0 0
      %822 = vmatprep.subr.bf16.mxu0 0
      %823 = vmatpush1.bf16.msra.mxu0 0
      %824 = vmatprep.subr.bf16.mxu0 0
      %825 = vmatpush1.bf16.msra.mxu0 0
      %826 = vmatprep.mubr.bf16.mxu0 0
      %827 = vmatmul.mubr.bf16.gmra.mrb[0].mxu0 %v786
      %v828 = vpop.f32.mrb[0].mxu0
      %v829 = vadd.f32 0.0, %v828
      %v830 = vpop.f32.mrb[0].mxu0
      %v831 = vpop.f32.mrb[0].mxu0
      %v832 = vadd.f32 0.0, %v831
      %v833 = vpop.f32.mrb[0].mxu0
      %834 = vmatprep.mubr.bf16.mxu0 0
      %835 = vmatmul.mubr.bf16.gmra.mrb[0].mxu0 %v789
      %v836 = vpop.f32.mrb[0].mxu0
      %v837 = vadd.f32 0.0, %v836
      %v838 = vpop.f32.mrb[0].mxu0
      %v839 = vpop.f32.mrb[0].mxu0
      %v840 = vpop.f32.mrb[0].mxu0
      %841 = vdwg.mxu0
      %v845 = vunpack.c.l.b16 %v242
      %v846 = vunpack.c.l.b16 %v243
      %v847 = vunpack.c.l.b16 %v244
      %v848 = vpack.c.b16 %v846, %v845
      %v849 = vpack.c.b16 %v847, %v847
      %v852 = vsel %vm565, %v703, 0
      %v855 = vsel %vm565, %v704, 0
      %v858 = vand.u32 %v849, %v724
      %860 = vmatprep.subr.bf16.mxu0 0
      %861 = vmatpush1.bf16.msra.mxu0 %v848
      %862 = vmatprep.subr.bf16.mxu0 0
      %863 = vmatpush1.bf16.msra.mxu0 %v858
      %864 = vmatprep.subr.bf16.mxu0 0
      %865 = vmatpush1.bf16.msra.mxu0 0
      %866 = vmatprep.subr.bf16.mxu0 0
      %867 = vmatpush1.bf16.msra.mxu0 0
      %868 = vmatprep.subr.bf16.mxu0 0
      %869 = vmatpush1.bf16.msra.mxu0 0
      %870 = vmatprep.subr.bf16.mxu0 0
      %871 = vmatpush1.bf16.msra.mxu0 0
      %872 = vmatprep.subr.bf16.mxu0 0
      %873 = vmatpush1.bf16.msra.mxu0 0
      %874 = vmatprep.subr.bf16.mxu0 0
      %875 = vmatpush1.bf16.msra.mxu0 0
      %876 = vmatprep.subr.bf16.mxu0 0
      %877 = vmatpush1.bf16.msra.mxu0 0
      %878 = vmatprep.subr.bf16.mxu0 0
      %879 = vmatpush1.bf16.msra.mxu0 0
      %880 = vmatprep.subr.bf16.mxu0 0
      %881 = vmatpush1.bf16.msra.mxu0 0
      %882 = vmatprep.subr.bf16.mxu0 0
      %883 = vmatpush1.bf16.msra.mxu0 0
      %884 = vmatprep.subr.bf16.mxu0 0
      %885 = vmatpush1.bf16.msra.mxu0 0
      %886 = vmatprep.subr.bf16.mxu0 0
      %887 = vmatpush1.bf16.msra.mxu0 0
      %888 = vmatprep.subr.bf16.mxu0 0
      %889 = vmatpush1.bf16.msra.mxu0 0
      %890 = vmatprep.subr.bf16.mxu0 0
      %891 = vmatpush1.bf16.msra.mxu0 0
      %892 = vmatprep.mubr.bf16.mxu0 0
      %893 = vmatmul.mubr.bf16.gmra.mrb[0].mxu0 %v852
      %v894 = vpop.f32.mrb[0].mxu0
      %v895 = vadd.f32 0.0, %v894
      %v896 = vpop.f32.mrb[0].mxu0
      %v897 = vpop.f32.mrb[0].mxu0
      %v898 = vadd.f32 0.0, %v897
      %v899 = vpop.f32.mrb[0].mxu0
      %900 = vmatprep.mubr.bf16.mxu0 0
      %901 = vmatmul.mubr.bf16.gmra.mrb[0].mxu0 %v855
      %v902 = vpop.f32.mrb[0].mxu0
      %v903 = vadd.f32 0.0, %v902
      %v904 = vpop.f32.mrb[0].mxu0
      %v905 = vpop.f32.mrb[0].mxu0
      %v906 = vpop.f32.mrb[0].mxu0
      %907 = vdwg.mxu0
      %v911 = vunpack.c.l.b16 %v245
      %v912 = vunpack.c.l.b16 %v246
      %v913 = vunpack.c.l.b16 %v247
      %v914 = vpack.c.b16 %v912, %v911
      %v915 = vpack.c.b16 %v913, %v913
      %v918 = vsel %vm565, %v705, 0
      %v921 = vsel %vm565, %v706, 0
      %v924 = vand.u32 %v915, %v724
      %926 = vmatprep.subr.bf16.mxu0 0
      %927 = vmatpush1.bf16.msra.mxu0 %v914
      %928 = vmatprep.subr.bf16.mxu0 0
      %929 = vmatpush1.bf16.msra.mxu0 %v924
      %930 = vmatprep.subr.bf16.mxu0 0
      %931 = vmatpush1.bf16.msra.mxu0 0
      %932 = vmatprep.subr.bf16.mxu0 0
      %933 = vmatpush1.bf16.msra.mxu0 0
      %934 = vmatprep.subr.bf16.mxu0 0
      %935 = vmatpush1.bf16.msra.mxu0 0
      %936 = vmatprep.subr.bf16.mxu0 0
      %937 = vmatpush1.bf16.msra.mxu0 0
      %938 = vmatprep.subr.bf16.mxu0 0
      %939 = vmatpush1.bf16.msra.mxu0 0
      %940 = vmatprep.subr.bf16.mxu0 0
      %941 = vmatpush1.bf16.msra.mxu0 0
      %942 = vmatprep.subr.bf16.mxu0 0
      %943 = vmatpush1.bf16.msra.mxu0 0
      %944 = vmatprep.subr.bf16.mxu0 0
      %945 = vmatpush1.bf16.msra.mxu0 0
      %946 = vmatprep.subr.bf16.mxu0 0
      %947 = vmatpush1.bf16.msra.mxu0 0
      %948 = vmatprep.subr.bf16.mxu0 0
      %949 = vmatpush1.bf16.msra.mxu0 0
      %950 = vmatprep.subr.bf16.mxu0 0
      %951 = vmatpush1.bf16.msra.mxu0 0
      %952 = vmatprep.subr.bf16.mxu0 0
      %953 = vmatpush1.bf16.msra.mxu0 0
      %954 = vmatprep.subr.bf16.mxu0 0
      %955 = vmatpush1.bf16.msra.mxu0 0
      %956 = vmatprep.subr.bf16.mxu0 0
      %957 = vmatpush1.bf16.msra.mxu0 0
      %958 = vmatprep.mubr.bf16.mxu0 0
      %959 = vmatmul.mubr.bf16.gmra.mrb[0].mxu0 %v918
      %v960 = vpop.f32.mrb[0].mxu0
      %v961 = vadd.f32 0.0, %v960
      %v962 = vpop.f32.mrb[0].mxu0
      %v963 = vpop.f32.mrb[0].mxu0
      %v964 = vadd.f32 0.0, %v963
      %v965 = vpop.f32.mrb[0].mxu0
      %966 = vmatprep.mubr.bf16.mxu0 0
      %967 = vmatmul.mubr.bf16.gmra.mrb[0].mxu0 %v921
      %v968 = vpop.f32.mrb[0].mxu0
      %v969 = vadd.f32 0.0, %v968
      %v970 = vpop.f32.mrb[0].mxu0
      %v971 = vpop.f32.mrb[0].mxu0
      %v972 = vpop.f32.mrb[0].mxu0
      %973 = vdwg.mxu0
      %v974 = vpack.c.bf16 %v766, %v763
      %v975 = vpack.c.bf16 %v771, %v771
      %v976 = vpack.c.bf16 %v832, %v829
      %v977 = vpack.c.bf16 %v837, %v837
      %v978 = vpack.c.bf16 %v898, %v895
      %v979 = vpack.c.bf16 %v903, %v903
      %v980 = vpack.c.bf16 %v964, %v961
      %v981 = vpack.c.bf16 %v969, %v969
      %v990 = vunpack.c.l.b16 %v974
      %v991 = vunpack.c.h.b16 %v974
      %v992 = vunpack.c.l.b16 %v975
      %v993 = vunpack.c.l.b16 %v976
      %v994 = vunpack.c.h.b16 %v976
      %v995 = vunpack.c.l.b16 %v977
      %v996 = vunpack.c.l.b16 %v978
      %v997 = vunpack.c.h.b16 %v978
      %v998 = vunpack.c.l.b16 %v979
      %v999 = vunpack.c.l.b16 %v980
      %v1000 = vunpack.c.h.b16 %v980
      %v1001 = vunpack.c.l.b16 %v981
      %v1002 = vpack.c.b16 %v990, %v990
      %v1003 = vpack.c.b16 %v991, %v991
      %v1004 = vpack.c.b16 %v992, %v992
      %v1005 = vpack.c.b16 %v993, %v993
      %v1006 = vpack.c.b16 %v994, %v994
      %v1007 = vpack.c.b16 %v995, %v995
      %v1008 = vpack.c.b16 %v996, %v996
      %v1009 = vpack.c.b16 %v997, %v997
      %v1010 = vpack.c.b16 %v998, %v998
      %v1011 = vpack.c.b16 %v999, %v999
      %v1012 = vpack.c.b16 %v1000, %v1000
      %v1013 = vpack.c.b16 %v1001, %v1001
      %vm1026 = vcmask 60416
      %1027 = vst.msk [vmem:[%s210] sm:$0xf] %vm1026, %v1002
      %1028 = vst.msk [vmem:[%s210 + $0x4] sm:$0xf] %vm1026, %v1003
      %vm1029 = vcmask 57344
      %vm1030 = vsmask.f32 256
      %vm1031 = vmand %vm1029, %vm1030
      %v1032 = vld [vmem:[%s210 + $0x8] sm:$0x1]
      %v1033 = vsel %vm1031, %v1004, %v1032
      %1034 = vst [vmem:[%s210 + $0x8] sm:$0x1] %v1033
      %1035 = vst.msk [vmem:[%s210 + $0xc] sm:$0xf] %vm1026, %v1005
      %1036 = vst.msk [vmem:[%s210 + $0x10] sm:$0xf] %vm1026, %v1006
      %v1037 = vld [vmem:[%s210 + $0x14] sm:$0x1]
      %v1038 = vsel %vm1031, %v1007, %v1037
      %1039 = vst [vmem:[%s210 + $0x14] sm:$0x1] %v1038
      %1040 = vst.msk [vmem:[%s210 + $0x18] sm:$0xf] %vm1026, %v1008
      %1041 = vst.msk [vmem:[%s210 + $0x1c] sm:$0xf] %vm1026, %v1009
      %v1042 = vld [vmem:[%s210 + $0x20] sm:$0x1]
      %v1043 = vsel %vm1031, %v1010, %v1042
      %1044 = vst [vmem:[%s210 + $0x20] sm:$0x1] %v1043
      %1045 = vst.msk [vmem:[%s210 + $0x24] sm:$0xf] %vm1026, %v1011
      %1046 = vst.msk [vmem:[%s210 + $0x28] sm:$0xf] %vm1026, %v1012
      %v1047 = vld [vmem:[%s210 + $0x2c] sm:$0x1]
      %v1048 = vsel %vm1031, %v1013, %v1047
      %1049 = vst [vmem:[%s210 + $0x2c] sm:$0x1] %v1048
      %p1050 = scmp.lt.s32.totalorder %s14, 1
      %s1051 = scalar_select %p1050, %s14, 1
      %s1052 = smul.addr %s1051, 12
      %s1053 = smul.addr %s1052, 4
      %s1054 = scalar_lea.vmem %s3, %s1053
      // Predicated region
      $region33: #{image_vit_forward.19} parent=31 // pred_check
        %p1055 = pneg %p110
      $region34: #{image_vit_forward.19} parent=31 // pred_check_branch
        %1057 = sbr.rel (%p1055) target = $region36
      $region35: #{image_vit_forward.19} parent=31 // pred_region
        _
      $region36: #{image_vit_forward.19} parent=31 // pred_fallthru
        _
    $region32: #{image_vit_forward.19} parent=5 // pred_fallthru
      _
    %p1058 = scmp.le.s32.totalorder 2, %s9
    // Predicated region
    $region37: #{image_vit_forward.19} parent=5 // pred_check
      %p1059 = pneg %p1058
    $region38: #{image_vit_forward.19} parent=5 // pred_check_branch
      %1061 = sbr.rel (%p1059) target = $region40
    $region39: #{image_vit_forward.19} parent=5 // pred_region
      %s1062 = ssub.s32 %s9, 2
      // Predicated region
      $region41: #{image_vit_forward.19} parent=39 // pred_check
        %p1063 = pneg %p116
      $region42: #{image_vit_forward.19} parent=39 // pred_check_branch
        %1065 = sbr.rel (%p1063) target = $region44
      $region43: #{image_vit_forward.19} parent=39 // pred_region
        %p1066 = scmp.lt.s32.totalorder %s15, 1
        %s1067 = scalar_select %p1066, %s15, 1
        %s1068 = smul.addr %s1067, 12
        %s1069 = smul.addr %s1068, 4
        %s1070 = scalar_lea.vmem %s3, %s1069
      $region44: #{image_vit_forward.19} parent=39 // pred_fallthru
        _
    $region40: #{image_vit_forward.19} parent=5 // pred_fallthru
      _
  $region6: #{image_vit_forward.19} parent=0 // loop_footer
    %s13 = sadd.s32 1, %s9
  $region7: #{image_vit_forward.19} parent=0 // loop_footer_branch
    %8 = sbr.rel target = $region3
  $region8: #{image_vit_forward.19} parent=0 // loop_exit
    _

// kernel: image_vit_forward.31
$region0: #{image_vit_forward.31}
  #allocation0 [shape = 'u32[]', space=smem, size = 0x4, offset = 0x4, fixed_abs, tag = 'smem constant byte address 0x4 - core index']
  #allocation1 [shape = 'u32[144,128]{1,0:T(1,128)}', space=vmem, size = 0x12000, scoped, tag = 'internal scratch']
  #allocation2 [shape = 'f32[1,1]{1,0:T(1,128)S(1)}', space=vmem, size = 0x200, scoped, tag = 'scoped memory for image_vit_forward.31']
  %s0 = inlined_call_operand.vmem [shape: f32[8,32], index: 0, kind: input, shape index: {}]
  %s1 = inlined_call_operand.vmem [shape: f32[1,32], index: 1, kind: input, shape index: {}]
  %s2 = inlined_call_operand.vmem [shape: f32[1,32], index: 2, kind: input, shape index: {}]
  %s3 = inlined_call_operand.vmem [shape: f32[32,16], index: 3, kind: input, shape index: {}]
  %s4 = inlined_call_operand.vmem [shape: f32[1,16], index: 4, kind: input, shape index: {}]
  %s5 = inlined_call_operand.vmem [shape: f32[16,1], index: 5, kind: input, shape index: {}]
  %s6 = inlined_call_operand.<no memory space> [shape: f32[1,1], index: 6, kind: input, shape index: {}]
  %s7 = inlined_call_operand.vmem [shape: f32[8,1], index: 7, kind: output, shape index: {}]
  %s8 = sld [smem:[#allocation0]]
  $region38: #{image_vit_forward.31} parent=0
    _
  %s10 = ssub.s32 1, %s8
  %s11 = scalar_select 0, %s10, %s8
  %v12 = vstv %s6
  %13 = vst [vmem:[#allocation2] sm:$0x1] %v12
  // Predicated region
  $region2: #{image_vit_forward.31} parent=0 // pred_check
    _
  $region3: #{image_vit_forward.31} parent=0 // pred_check_branch
    %15 = sbr.rel (0) target = $region5
  $region4: #{image_vit_forward.31} parent=0 // pred_region
    _
  $region5: #{image_vit_forward.31} parent=0 // pred_fallthru
    _
  // Predicated region
  $region6: #{image_vit_forward.31} parent=0 // pred_check
    _
  $region7: #{image_vit_forward.31} parent=0 // pred_check_branch
    %17 = sbr.rel (0) target = $region9
  $region8: #{image_vit_forward.31} parent=0 // pred_region
    _
  $region9: #{image_vit_forward.31} parent=0 // pred_fallthru
    _
  // Predicated region
  $region10: #{image_vit_forward.31} parent=0 // pred_check
    _
  $region11: #{image_vit_forward.31} parent=0 // pred_check_branch
    %19 = sbr.rel (0) target = $region13
  $region12: #{image_vit_forward.31} parent=0 // pred_region
    _
  $region13: #{image_vit_forward.31} parent=0 // pred_fallthru
    _
  // Predicated region
  $region14: #{image_vit_forward.31} parent=0 // pred_check
    _
  $region15: #{image_vit_forward.31} parent=0 // pred_check_branch
    %21 = sbr.rel (0) target = $region17
  $region16: #{image_vit_forward.31} parent=0 // pred_region
    _
  $region17: #{image_vit_forward.31} parent=0 // pred_fallthru
    _
  // Predicated region
  $region18: #{image_vit_forward.31} parent=0 // pred_check
    _
  $region19: #{image_vit_forward.31} parent=0 // pred_check_branch
    %23 = sbr.rel (0) target = $region21
  $region20: #{image_vit_forward.31} parent=0 // pred_region
    _
  $region21: #{image_vit_forward.31} parent=0 // pred_fallthru
    _
  // Predicated region
  $region22: #{image_vit_forward.31} parent=0 // pred_check
    _
  $region23: #{image_vit_forward.31} parent=0 // pred_check_branch
    %25 = sbr.rel (0) target = $region25
  $region24: #{image_vit_forward.31} parent=0 // pred_region
    _
  $region25: #{image_vit_forward.31} parent=0 // pred_fallthru
    _
  // Predicated region
  $region26: #{image_vit_forward.31} parent=0 // pred_check
    _
  $region27: #{image_vit_forward.31} parent=0 // pred_check_branch
    %27 = sbr.rel (0) target = $region29
  $region28: #{image_vit_forward.31} parent=0 // pred_region
    _
  $region29: #{image_vit_forward.31} parent=0 // pred_fallthru
    _
  %v28 = vld [vmem:[%s0] sm:$0xff]
  %vm29 = vcmask 261120
  %v30 = vsel %vm29, %v28, 0.0
  %31 = vadd.xlane.f32.xlu0 %v30
  %v32 = vpop.xlane.xlu0 %31
  %v33 = vrcp.pop 32.0
  %v34 = vmul.f32 %v32, %v33
  %v35 = vsub.f32 %v28, %v34
  %v36 = vmul.f32 %v35, %v35
  %v37 = vsel %vm29, %v36, 0.0
  %38 = vadd.xlane.f32.xlu0 %v37
  %v39 = vpop.xlane.xlu0 %38
  %v40 = vmul.f32 %v39, %v33
  %v41 = vadd.f32 %v40, 1e-06
  %v42 = vrsqrt.pop %v41
  %v43 = vmul.f32 %v35, %v42
  %v44 = vld [vmem:[%s1] sm:$0x1]
  %v46 = vlaneseq
  %v47 = vshrl.u32 %v46, 7
  %v48 = vsub.s32 0, %v47
  %v49 = vrot.slane %v44, %v48
  %v51 = vmul.f32 %v43, %v49
  %v52 = vld [vmem:[%s2] sm:$0x1]
  %v54 = vlaneseq
  %v55 = vshrl.u32 %v54, 7
  %v56 = vsub.s32 0, %v55
  %v57 = vrot.slane %v52, %v56
  %v59 = vadd.f32 %v51, %v57
  %v60 = vld [vmem:[%s3] sm:$0xff]
  %v61 = vld [vmem:[%s3 + $0x8] sm:$0xff]
  %v62 = vld [vmem:[%s3 + $0x10] sm:$0xff]
  %v63 = vld [vmem:[%s3 + $0x18] sm:$0xff]
  %v64 = vld [vmem:[%s4] sm:$0x1]
  %v66 = vlaneseq
  %v67 = vshrl.u32 %v66, 7
  %v68 = vsub.s32 0, %v67
  %v69 = vrot.slane %v64, %v68
  %v72 = vsel %vm29, %v59, 0
  %74 = vmatprep.subr.mxu0 0.0
  %75 = vmatpush1.msra.mxu0 %v60
  %76 = vmatprep.subr.mxu0 0.0
  %77 = vmatpush1.msra.mxu0 %v61
  %78 = vmatprep.subr.mxu0 0.0
  %79 = vmatpush1.msra.mxu0 %v62
  %80 = vmatprep.subr.mxu0 0.0
  %81 = vmatpush1.msra.mxu0 %v63
  %82 = vmatprep.subr.mxu0 0.0
  %83 = vmatpush1.msra.mxu0 0.0
  %84 = vmatprep.subr.mxu0 0.0
  %85 = vmatpush1.msra.mxu0 0.0
  %86 = vmatprep.subr.mxu0 0.0
  %87 = vmatpush1.msra.mxu0 0.0
  %88 = vmatprep.subr.mxu0 0.0
  %89 = vmatpush1.msra.mxu0 0.0
  %90 = vmatprep.subr.mxu0 0.0
  %91 = vmatpush1.msra.mxu0 0.0
  %92 = vmatprep.subr.mxu0 0.0
  %93 = vmatpush1.msra.mxu0 0.0
  %94 = vmatprep.subr.mxu0 0.0
  %95 = vmatpush1.msra.mxu0 0.0
  %96 = vmatprep.subr.mxu0 0.0
  %97 = vmatpush1.msra.mxu0 0.0
  %98 = vmatprep.subr.mxu0 0.0
  %99 = vmatpush1.msra.mxu0 0.0
  %100 = vmatprep.subr.mxu0 0.0
  %101 = vmatpush1.msra.mxu0 0.0
  %102 = vmatprep.subr.mxu0 0.0
  %103 = vmatpush1.msra.mxu0 0.0
  %104 = vmatprep.subr.mxu0 0.0
  %105 = vmatpush1.msra.mxu0 0.0
  %106 = vmatprep.subr.mxu0 0.0
  %107 = vmatpush1.msra.mxu0 0.0
  %108 = vmatprep.subr.mxu0 0.0
  %109 = vmatpush1.msra.mxu0 0.0
  %110 = vmatprep.subr.mxu0 0.0
  %111 = vmatpush1.msra.mxu0 0.0
  %112 = vmatprep.subr.mxu0 0.0
  %113 = vmatpush1.msra.mxu0 0.0
  %114 = vmatprep.subr.mxu0 0.0
  %115 = vmatpush1.msra.mxu0 0.0
  %116 = vmatprep.subr.mxu0 0.0
  %117 = vmatpush1.msra.mxu0 0.0
  %118 = vmatprep.subr.mxu0 0.0
  %119 = vmatpush1.msra.mxu0 0.0
  %120 = vmatprep.subr.mxu0 0.0
  %121 = vmatpush1.msra.mxu0 0.0
  %122 = vmatprep.subr.mxu0 0.0
  %123 = vmatpush1.msra.mxu0 0.0
  %124 = vmatprep.subr.mxu0 0.0
  %125 = vmatpush1.msra.mxu0 0.0
  %126 = vmatprep.subr.mxu0 0.0
  %127 = vmatpush1.msra.mxu0 0.0
  %128 = vmatprep.subr.mxu0 0.0
  %129 = vmatpush1.msra.mxu0 0.0
  %130 = vmatprep.subr.mxu0 0.0
  %131 = vmatpush1.msra.mxu0 0.0
  %132 = vmatprep.subr.mxu0 0.0
  %133 = vmatpush1.msra.mxu0 0.0
  %134 = vmatprep.subr.mxu0 0.0
  %135 = vmatpush1.msra.mxu0 0.0
  %136 = vmatprep.subr.mxu0 0.0
  %137 = vmatpush1.msra.mxu0 0.0
  %138 = vmatprep.mubr.f32.mxu0 0.0
  %139 = vmatmul.mubr.f32.gmra.mrb[0].mxu0 %v72
  %v140 = vpop.f32.mrb[0].mxu0
  %v141 = vadd.f32 %v69, %v140
  %v142 = vpop.f32.mrb[0].mxu0
  %143 = vdwg.mxu0
  %v144 = vld [vmem:[%s5] sm:$0xff]
  %v145 = vld [vmem:[%s5 + $0x8] sm:$0xff]
  %v146 = vld [vmem:[#allocation2] sm:$0x1]
  %v148 = vlaneseq
  %v149 = vshrl.u32 %v148, 7
  %v150 = vsub.s32 0, %v149
  %v151 = vrot.slane %v146, %v150
  %vm153 = vcmask 130048
  %v155 = vsel %vm153, %v141, 0
  %157 = vmatprep.subr.mxu0 0.0
  %158 = vmatpush1.msra.mxu0 %v144
  %159 = vmatprep.subr.mxu0 0.0
  %160 = vmatpush1.msra.mxu0 %v145
  %161 = vmatprep.subr.mxu0 0.0
  %162 = vmatpush1.msra.mxu0 0.0
  %163 = vmatprep.subr.mxu0 0.0
  %164 = vmatpush1.msra.mxu0 0.0
  %165 = vmatprep.subr.mxu0 0.0
  %166 = vmatpush1.msra.mxu0 0.0
  %167 = vmatprep.subr.mxu0 0.0
  %168 = vmatpush1.msra.mxu0 0.0
  %169 = vmatprep.subr.mxu0 0.0
  %170 = vmatpush1.msra.mxu0 0.0
  %171 = vmatprep.subr.mxu0 0.0
  %172 = vmatpush1.msra.mxu0 0.0
  %173 = vmatprep.subr.mxu0 0.0
  %174 = vmatpush1.msra.mxu0 0.0
  %175 = vmatprep.subr.mxu0 0.0
  %176 = vmatpush1.msra.mxu0 0.0
  %177 = vmatprep.subr.mxu0 0.0
  %178 = vmatpush1.msra.mxu0 0.0
  %179 = vmatprep.subr.mxu0 0.0
  %180 = vmatpush1.msra.mxu0 0.0
  %181 = vmatprep.subr.mxu0 0.0
  %182 = vmatpush1.msra.mxu0 0.0
  %183 = vmatprep.subr.mxu0 0.0
  %184 = vmatpush1.msra.mxu0 0.0
  %185 = vmatprep.subr.mxu0 0.0
  %186 = vmatpush1.msra.mxu0 0.0
  %187 = vmatprep.subr.mxu0 0.0
  %188 = vmatpush1.msra.mxu0 0.0
  %189 = vmatprep.subr.mxu0 0.0
  %190 = vmatpush1.msra.mxu0 0.0
  %191 = vmatprep.subr.mxu0 0.0
  %192 = vmatpush1.msra.mxu0 0.0
  %193 = vmatprep.subr.mxu0 0.0
  %194 = vmatpush1.msra.mxu0 0.0
  %195 = vmatprep.subr.mxu0 0.0
  %196 = vmatpush1.msra.mxu0 0.0
  %197 = vmatprep.subr.mxu0 0.0
  %198 = vmatpush1.msra.mxu0 0.0
  %199 = vmatprep.subr.mxu0 0.0
  %200 = vmatpush1.msra.mxu0 0.0
  %201 = vmatprep.subr.mxu0 0.0
  %202 = vmatpush1.msra.mxu0 0.0
  %203 = vmatprep.subr.mxu0 0.0
  %204 = vmatpush1.msra.mxu0 0.0
  %205 = vmatprep.subr.mxu0 0.0
  %206 = vmatpush1.msra.mxu0 0.0
  %207 = vmatprep.subr.mxu0 0.0
  %208 = vmatpush1.msra.mxu0 0.0
  %209 = vmatprep.subr.mxu0 0.0
  %210 = vmatpush1.msra.mxu0 0.0
  %211 = vmatprep.subr.mxu0 0.0
  %212 = vmatpush1.msra.mxu0 0.0
  %213 = vmatprep.subr.mxu0 0.0
  %214 = vmatpush1.msra.mxu0 0.0
  %215 = vmatprep.subr.mxu0 0.0
  %216 = vmatpush1.msra.mxu0 0.0
  %217 = vmatprep.subr.mxu0 0.0
  %218 = vmatpush1.msra.mxu0 0.0
  %219 = vmatprep.subr.mxu0 0.0
  %220 = vmatpush1.msra.mxu0 0.0
  %221 = vmatprep.mubr.f32.mxu0 0.0
  %222 = vmatmul.mubr.f32.gmra.mrb[0].mxu0 %v155
  %v223 = vpop.f32.mrb[0].mxu0
  %v224 = vadd.f32 %v151, %v223
  %v225 = vpop.f32.mrb[0].mxu0
  %226 = vdwg.mxu0
  %v227 = vmax.f32 %v224, 0.0
  %vm228 = vcmask 7168
  %229 = vst.msk [vmem:[%s7] sm:$0xff] %vm228, %v227
  // Predicated region
  $region30: #{image_vit_forward.31} parent=0 // pred_check
    _
  $region31: #{image_vit_forward.31} parent=0 // pred_check_branch
    %231 = sbr.rel (0) target = $region33
  $region32: #{image_vit_forward.31} parent=0 // pred_region
    _
  $region33: #{image_vit_forward.31} parent=0 // pred_fallthru
    _
  // Predicated region
  $region34: #{image_vit_forward.31} parent=0 // pred_check
    _
  $region35: #{image_vit_forward.31} parent=0 // pred_check_branch
    %233 = sbr.rel (0) target = $region37
  $region36: #{image_vit_forward.31} parent=0 // pred_region
    _
  $region37: #{image_vit_forward.31} parent=0 // pred_fallthru
    _

</llo_original>
